<compile_context>
chip_gen: v7x
topology: tpu7x:2x2x1
jax: 0.10.0
libtpu: 0.0.40
codegen_flags: <defaults>
</compile_context>

<pallas_src>
import functools

import jax
import jax.numpy as jnp
from jax.experimental import pallas as pl
from jax.experimental.pallas import tpu as pltpu


def _layernorm(x, gamma, beta, eps=1e-5):
    # x: (T, D), gamma/beta: (1, D). Biased variance, matching nn.LayerNorm.
    mean = jnp.mean(x, axis=-1, keepdims=True)
    var = jnp.mean((x - mean) ** 2, axis=-1, keepdims=True)
    return (x - mean) * jax.lax.rsqrt(var + eps) * gamma + beta


def encoder_block_kernel(
    xs_ref,      # (S, D)     full sequence block (resident per batch element)
    wq_ref,      # (D, D)     Q proj, pre-transposed, 1/sqrt(hd) folded in
    bq_ref,      # (1, D)     f32, scale folded in
    wkv_ref,     # (D, 2D)    [K | V] proj, pre-transposed
    bkv_ref,     # (1, 2D)    f32
    wo_ref,      # (D, D)     out proj, pre-transposed
    bo_ref,      # (1, D)
    g1_ref,      # (1, D)     LayerNorm1 gamma
    be1_ref,     # (1, D)     LayerNorm1 beta
    w1_ref,      # (D, H)     MLP up, pre-transposed
    b1_ref,      # (1, H)
    w2_ref,      # (H, D)     MLP down, pre-transposed
    b2_ref,      # (1, D)
    g2_ref,      # (1, D)     LayerNorm2 gamma
    be2_ref,     # (1, D)     LayerNorm2 beta
    o_ref,       # (TQ, D)
    kv_ref,      # (S, 2D)    VMEM scratch (compute dtype), persists across qt
    *,
    nheads,
    tq,
    compute_dtype,
):
    S, D = xs_ref.shape
    hd = D // nheads
    qt = pl.program_id(1)

    # ---- K/V projection: hoisted, computed once per batch element ----------
    @pl.when(qt == 0)
    def _():
        xc = xs_ref[...].astype(compute_dtype)                          # (S, D)
        kv = jnp.dot(xc, wkv_ref[...],
                     preferred_element_type=jnp.float32) + bkv_ref[...]
        kv_ref[...] = kv.astype(kv_ref.dtype)

    # ---- query tile sliced from the resident full-sequence block -----------
    row0 = pl.multiple_of(qt * tq, tq)
    x_q = xs_ref[pl.ds(row0, tq), :]                                    # (TQ, D) f32
    q_all = jnp.dot(x_q.astype(compute_dtype), wq_ref[...],
                    preferred_element_type=jnp.float32) + bq_ref[...]   # (TQ, D)

    kv = kv_ref[...]                                                    # (S, 2D)

    # ---- attention: head split only transiently around score / PV matmuls --
    ctx = []
    for h in range(nheads):
        qh = q_all[:, h * hd:(h + 1) * hd].astype(compute_dtype)        # (TQ, hd)
        kh = kv[:, h * hd:(h + 1) * hd]                                 # (S, hd)
        vh = kv[:, D + h * hd:D + (h + 1) * hd]                         # (S, hd)
        s = jnp.einsum('qd,kd->qk', qh, kh,
                       preferred_element_type=jnp.float32)              # (TQ, S)
        m = jnp.max(s, axis=-1, keepdims=True)
        e = jnp.exp(s - m)
        # TODO(synk): on v6e/v7x consider bf16 exp if the EUP becomes the
        #             binding slot at large S (measure first; keep f32 on v5e).
        p = e * pl.reciprocal(jnp.sum(e, axis=-1, keepdims=True), approx=True)
        ctx.append(jnp.dot(p.astype(compute_dtype), vh,
                           preferred_element_type=jnp.float32))          # (TQ, hd)
    a_cat = jnp.concatenate(ctx, axis=-1)                               # (TQ, D)
    attn = jnp.dot(a_cat.astype(compute_dtype), wo_ref[...],
                   preferred_element_type=jnp.float32) + bo_ref[...]    # (TQ, D)

    # ---- residual + LayerNorm1 ----------------------------------------------
    y1 = _layernorm(x_q + attn, g1_ref[...], be1_ref[...])

    # ---- feed-forward (MLP) ---------------------------------------------------
    h1 = jnp.dot(y1.astype(compute_dtype), w1_ref[...],
                 preferred_element_type=jnp.float32) + b1_ref[...]
    h1 = jnp.maximum(h1, 0.0)
    ff = jnp.dot(h1.astype(compute_dtype), w2_ref[...],
                 preferred_element_type=jnp.float32) + b2_ref[...]

    # ---- residual + LayerNorm2 ----------------------------------------------
    o_ref[...] = _layernorm(y1 + ff, g2_ref[...], be2_ref[...]).astype(o_ref.dtype)


def _default_vmem_limit():
    MiB = 1024 * 1024
    try:  # ~3/4 of physical VMEM: ~48 MiB on v7x, ~96 MiB on v5e/v6e
        cap = pltpu.get_tpu_info().vmem_capacity_bytes
        return int(min(cap * 3 // 4, 100 * MiB))
    except Exception:
        pass
    try:
        if "v7" in jax.devices()[0].device_kind.lower():
            return 48 * MiB
    except Exception:
        pass
    return 64 * MiB


def _default_tq(S):
    if S <= 256:
        return S
    pref = 256                      # fills the 256-wide MXU on v6e/v7x
    try:
        if "v5" in jax.devices()[0].device_kind.lower():
            pref = 128              # 128-wide MXU on v5e
    except Exception:
        pass
    for t in (pref, 256, 128, 64, 32, 16, 8):
        if S % t == 0:
            return t
    return S


def transformer_encoder_block(x, params, nheads, *, tq=None,
                              compute_dtype=jnp.float32,
                              vmem_limit_bytes=None,
                              single_buffer_weights=True):
    """x: (B, S, D) float32. Returns (out, attn_weights=None)."""
    B, S, D = x.shape
    assert D % nheads == 0
    hd = D // nheads
    H = params["w1"].shape[0]
    if tq is None:
        tq = _default_tq(S)
    assert S % tq == 0 and (tq == S or tq % 8 == 0)
    nq = S // tq
    if vmem_limit_bytes is None:
        vmem_limit_bytes = _default_vmem_limit()
    scale = 1.0 / (hd ** 0.5)

    # ---- host-side one-time weight re-layout (lane-dense, no in-kernel .T) ----
    wqkv = params["wqkv"]                                  # (3D, D) = [Wq; Wk; Wv]
    Wq, Wk, Wv = wqkv[:D], wqkv[D:2 * D], wqkv[2 * D:]
    wq_t = (Wq.T * scale).astype(compute_dtype)                           # (D, D)
    wkv_t = jnp.concatenate([Wk.T, Wv.T], axis=1).astype(compute_dtype)   # (D, 2D)
    bqkv = params["bqkv"].reshape(3 * D)
    bq_r = (bqkv[:D] * scale).reshape(1, D).astype(jnp.float32)
    bkv_r = bqkv[D:].reshape(1, 2 * D).astype(jnp.float32)
    wo_t = params["wo"].T.astype(compute_dtype)                           # (D, D)
    w1_t = params["w1"].T.astype(compute_dtype)                           # (D, H)
    w2_t = params["w2"].T.astype(compute_dtype)                           # (H, D)

    def build_specs(single_buf):
        kw = {"pipeline_mode": pl.Buffered(1)} if single_buf else {}

        def const(shape):  # constant index_map -> single-buffer the weights
            return pl.BlockSpec(shape, lambda b, qt: (0,) * len(shape), **kw)

        in_specs = [
            pl.BlockSpec((pl.Squeezed(), S, D), lambda b, qt: (b, 0, 0)),  # x
            const((D, D)),        # wq_t
            const((1, D)),        # bq
            const((D, 2 * D)),    # wkv_t
            const((1, 2 * D)),    # bkv
            const((D, D)),        # wo_t
            const((1, D)),        # bo
            const((1, D)),        # gamma1
            const((1, D)),        # beta1
            const((D, H)),        # w1_t
            const((1, H)),        # b1
            const((H, D)),        # w2_t
            const((1, D)),        # b2
            const((1, D)),        # gamma2
            const((1, D)),        # beta2
        ]
        out_specs = pl.BlockSpec((pl.Squeezed(), tq, D), lambda b, qt: (b, qt, 0))
        return in_specs, out_specs

    def run(single_buf):
        in_specs, out_specs = build_specs(single_buf)
        grid_spec = pltpu.PrefetchScalarGridSpec(
            num_scalar_prefetch=0,
            grid=(B, nq),                      # qt innermost -> K/V scratch reuse
            in_specs=in_specs,
            out_specs=out_specs,
            scratch_shapes=[pltpu.VMEM((S, 2 * D), compute_dtype)],
        )
        call = pl.pallas_call(
            functools.partial(encoder_block_kernel, nheads=nheads, tq=tq,
                              compute_dtype=compute_dtype),
            out_shape=jax.ShapeDtypeStruct((B, S, D), x.dtype),
            grid_spec=grid_spec,
            compiler_params=pltpu.CompilerParams(
                dimension_semantics=("parallel", "arbitrary"),
                vmem_limit_bytes=vmem_limit_bytes),
        )
        return call(x, wq_t, bq_r, wkv_t, bkv_r, wo_t,
                    params["bo"], params["gamma1"], params["beta1"],
                    w1_t, params["b1"], w2_t, params["b2"],
                    params["gamma2"], params["beta2"])

    if single_buffer_weights:
        try:
            out = jax.block_until_ready(run(True))
        except Exception:
            # TODO(synk): fall back if this Pallas build rejects pl.Buffered(1).
            out = run(False)
    else:
        out = run(False)
    return out, None  # need_weights=False -> attention weights not materialized


# ---------------------------- pure-JAX reference -----------------------------
def reference_block(x, params, nheads):
    B, S, D = x.shape
    hd = D // nheads
    qkv = jnp.einsum("bsd,ed->bse", x, params["wqkv"]) + params["bqkv"]
    q, k, v = qkv[..., :D], qkv[..., D:2 * D], qkv[..., 2 * D:]

    def split(t):  # (B,S,D) -> (B,nh,S,hd)
        return t.reshape(B, S, nheads, hd).transpose(0, 2, 1, 3)

    qh, kh, vh = split(q), split(k), split(v)
    s = jnp.einsum("bhqd,bhkd->bhqk", qh, kh) / (hd ** 0.5)
    p = jax.nn.softmax(s, axis=-1)
    a = jnp.einsum("bhqk,bhkd->bhqd", p, vh).transpose(0, 2, 1, 3).reshape(B, S, D)
    a = jnp.einsum("bsd,ed->bse", a, params["wo"]) + params["bo"]

    def ln(t, g, b, eps=1e-5):
        m = jnp.mean(t, -1, keepdims=True)
        v_ = jnp.mean((t - m) ** 2, -1, keepdims=True)
        return (t - m) / jnp.sqrt(v_ + eps) * g + b

    y1 = ln(x + a, params["gamma1"], params["beta1"])
    h = jax.nn.relu(jnp.einsum("bsd,hd->bsh", y1, params["w1"]) + params["b1"])
    ff = jnp.einsum("bsh,dh->bsd", h, params["w2"]) + params["b2"]
    return ln(y1 + ff, params["gamma2"], params["beta2"])


if __name__ == "__main__":
    B, S, D, NHEADS, TQ = 2, 16, 32, 4, 8
    H = 4 * D

    key = jax.random.PRNGKey(0)
    ks = jax.random.split(key, 10)
    scale = 0.05
    params = {
        "wqkv":   scale * jax.random.normal(ks[0], (3 * D, D), jnp.float32),
        "bqkv":   scale * jax.random.normal(ks[1], (1, 3 * D), jnp.float32),
        "wo":     scale * jax.random.normal(ks[2], (D, D), jnp.float32),
        "bo":     scale * jax.random.normal(ks[3], (1, D), jnp.float32),
        "gamma1": jnp.ones((1, D), jnp.float32),
        "beta1":  jnp.zeros((1, D), jnp.float32),
        "w1":     scale * jax.random.normal(ks[4], (H, D), jnp.float32),
        "b1":     scale * jax.random.normal(ks[5], (1, H), jnp.float32),
        "w2":     scale * jax.random.normal(ks[6], (D, H), jnp.float32),
        "b2":     scale * jax.random.normal(ks[7], (1, D), jnp.float32),
        "gamma2": jnp.ones((1, D), jnp.float32),
        "beta2":  jnp.zeros((1, D), jnp.float32),
    }
    x = jax.random.normal(ks[8], (B, S, D), jnp.float32)

    ref = reference_block(x, params, NHEADS)

    # f32 MXU-operand path; TQ=8 exercises the multi-tile K/V-hoist path.
    out_f32, attn_w = transformer_encoder_block(
        x, params, NHEADS, tq=TQ, compute_dtype=jnp.float32)
    out_f32 = jax.block_until_ready(out_f32)
    assert out_f32.shape == (B, S, D)
    assert attn_w is None
    assert jnp.allclose(out_f32, ref, atol=2e-3, rtol=2e-3), (
        float(jnp.max(jnp.abs(out_f32 - ref))))

    # bf16 MXU-operand path (f32 accumulation + f32 softmax/LN statistics).
    out_bf16, _ = transformer_encoder_block(
        x, params, NHEADS, tq=TQ, compute_dtype=jnp.bfloat16)
    out_bf16 = jax.block_until_ready(out_bf16)
    assert jnp.allclose(out_bf16, ref, atol=5e-2, rtol=5e-2), (
        float(jnp.max(jnp.abs(out_bf16 - ref))))

    print("KERNEL_OK")
</pallas_src>

<mosaic_0001>
module attributes {stable_mosaic.version = 11 : i64} {
  func.func @encoder_block_kernel(%arg0: i32, %arg1: i32, %arg2: memref<1x16x32xf32, #tpu.memory_space<vmem>>, %arg3: memref<32x32xf32, #tpu.memory_space<vmem>>, %arg4: memref<1x32xf32, #tpu.memory_space<vmem>>, %arg5: memref<32x64xf32, #tpu.memory_space<vmem>>, %arg6: memref<1x64xf32, #tpu.memory_space<vmem>>, %arg7: memref<32x32xf32, #tpu.memory_space<vmem>>, %arg8: memref<1x32xf32, #tpu.memory_space<vmem>>, %arg9: memref<1x32xf32, #tpu.memory_space<vmem>>, %arg10: memref<1x32xf32, #tpu.memory_space<vmem>>, %arg11: memref<32x128xf32, #tpu.memory_space<vmem>>, %arg12: memref<1x128xf32, #tpu.memory_space<vmem>>, %arg13: memref<128x32xf32, #tpu.memory_space<vmem>>, %arg14: memref<1x32xf32, #tpu.memory_space<vmem>>, %arg15: memref<1x32xf32, #tpu.memory_space<vmem>>, %arg16: memref<1x32xf32, #tpu.memory_space<vmem>>, %arg17: memref<1x8x32xf32, #tpu.memory_space<vmem>>, %arg18: memref<16x64xf32, #tpu.memory_space<vmem>>) attributes {dimension_semantics = [#tpu.dimension_semantics<parallel>, #tpu.dimension_semantics<arbitrary>], iteration_bounds = array<i64: 2, 2>, scalar_prefetch = 0 : i64, scratch_operands = 1 : i64, tpu.core_type = #tpu.core_type<tc>, window_params = [{transform_indices = @transform_0, window_bounds = array<i64: 1, 16, 32>}, {pipeline_mode = #tpu.pipeline_mode<synchronous>, transform_indices = @transform_1, window_bounds = array<i64: 32, 32>}, {pipeline_mode = #tpu.pipeline_mode<synchronous>, transform_indices = @transform_2, window_bounds = array<i64: 1, 32>}, {pipeline_mode = #tpu.pipeline_mode<synchronous>, transform_indices = @transform_3, window_bounds = array<i64: 32, 64>}, {pipeline_mode = #tpu.pipeline_mode<synchronous>, transform_indices = @transform_4, window_bounds = array<i64: 1, 64>}, {pipeline_mode = #tpu.pipeline_mode<synchronous>, transform_indices = @transform_5, window_bounds = array<i64: 32, 32>}, {pipeline_mode = #tpu.pipeline_mode<synchronous>, transform_indices = @transform_6, window_bounds = array<i64: 1, 32>}, {pipeline_mode = #tpu.pipeline_mode<synchronous>, transform_indices = @transform_7, window_bounds = array<i64: 1, 32>}, {pipeline_mode = #tpu.pipeline_mode<synchronous>, transform_indices = @transform_8, window_bounds = array<i64: 1, 32>}, {pipeline_mode = #tpu.pipeline_mode<synchronous>, transform_indices = @transform_9, window_bounds = array<i64: 32, 128>}, {pipeline_mode = #tpu.pipeline_mode<synchronous>, transform_indices = @transform_10, window_bounds = array<i64: 1, 128>}, {pipeline_mode = #tpu.pipeline_mode<synchronous>, transform_indices = @transform_11, window_bounds = array<i64: 128, 32>}, {pipeline_mode = #tpu.pipeline_mode<synchronous>, transform_indices = @transform_12, window_bounds = array<i64: 1, 32>}, {pipeline_mode = #tpu.pipeline_mode<synchronous>, transform_indices = @transform_13, window_bounds = array<i64: 1, 32>}, {pipeline_mode = #tpu.pipeline_mode<synchronous>, transform_indices = @transform_14, window_bounds = array<i64: 1, 32>}, {transform_indices = @transform_15, window_bounds = array<i64: 1, 8, 32>}]} {
    %c0_i32 = arith.constant 0 : i32
    %0 = arith.cmpi eq, %arg1, %c0_i32 : i32
    %1 = arith.extui %0 : i1 to i32
    %c0_i32_0 = arith.constant 0 : i32
    %2 = arith.cmpi ne, %1, %c0_i32_0 : i32
    scf.if %2 {
      %c0_61 = arith.constant 0 : index
      %c0_62 = arith.constant 0 : index
      %c0_63 = arith.constant 0 : index
      %145 = vector.load %arg2[%c0_61, %c0_62, %c0_63] : memref<1x16x32xf32, #tpu.memory_space<vmem>>, vector<1x16x32xf32>
      %146 = vector.shape_cast %145 : vector<1x16x32xf32> to vector<16x32xf32>
      %c0_64 = arith.constant 0 : index
      %c0_65 = arith.constant 0 : index
      %147 = vector.load %arg5[%c0_64, %c0_65] : memref<32x64xf32, #tpu.memory_space<vmem>>, vector<32x64xf32>
      %cst_66 = arith.constant dense<0.000000e+00> : vector<16x64xf32>
      %148 = tpu.matmul %146, %147, %cst_66 {dimension_numbers = #tpu.dot_dimension_numbers<[1], [0], [0], [1], [0, 0, 1, 1], [], []>} : vector<16x32xf32>, vector<32x64xf32>, vector<16x64xf32> -> vector<16x64xf32>
      %c0_67 = arith.constant 0 : index
      %c0_68 = arith.constant 0 : index
      %149 = vector.load %arg6[%c0_67, %c0_68] : memref<1x64xf32, #tpu.memory_space<vmem>>, vector<1x64xf32>
      %150 = vector.broadcast %149 : vector<1x64xf32> to vector<16x64xf32>
      %151 = arith.addf %148, %150 : vector<16x64xf32>
      %c0_69 = arith.constant 0 : index
      %c0_70 = arith.constant 0 : index
      %152 = vector.load %arg18[%c0_69, %c0_70] : memref<16x64xf32, #tpu.memory_space<vmem>>, vector<16x64xf32>
      tpu.vector_store %arg18[%c0_69, %c0_70], %151 {strides = array<i32>} : memref<16x64xf32, #tpu.memory_space<vmem>>, vector<16x64xf32>,
    } else {
    }
    %c8_i32 = arith.constant 8 : i32
    %3 = arith.muli %arg1, %c8_i32 : i32
    %4 = tpu.assume_multiple %3, 8 : i32
    %c0 = arith.constant 0 : index
    %5 = arith.index_cast %4 : i32 to index
    %c0_1 = arith.constant 0 : index
    %6 = vector.load %arg2[%c0, %5, %c0_1] : memref<1x16x32xf32, #tpu.memory_space<vmem>>, vector<1x8x32xf32>
    %7 = vector.shape_cast %6 : vector<1x8x32xf32> to vector<8x32xf32>
    %c0_2 = arith.constant 0 : index
    %c0_3 = arith.constant 0 : index
    %8 = vector.load %arg3[%c0_2, %c0_3] : memref<32x32xf32, #tpu.memory_space<vmem>>, vector<32x32xf32>
    %cst = arith.constant dense<0.000000e+00> : vector<8x32xf32>
    %9 = tpu.matmul %7, %8, %cst {dimension_numbers = #tpu.dot_dimension_numbers<[1], [0], [0], [1], [0, 0, 1, 1], [], []>} : vector<8x32xf32>, vector<32x32xf32>, vector<8x32xf32> -> vector<8x32xf32>
    %c0_4 = arith.constant 0 : index
    %c0_5 = arith.constant 0 : index
    %10 = vector.load %arg4[%c0_4, %c0_5] : memref<1x32xf32, #tpu.memory_space<vmem>>, vector<1x32xf32>
    %11 = vector.broadcast %10 : vector<1x32xf32> to vector<8x32xf32>
    %12 = arith.addf %9, %11 : vector<8x32xf32>
    %c0_6 = arith.constant 0 : index
    %c0_7 = arith.constant 0 : index
    %13 = vector.load %arg18[%c0_6, %c0_7] : memref<16x64xf32, #tpu.memory_space<vmem>>, vector<16x64xf32>
    %14 = vector.extract_strided_slice %12 {offsets = [0, 0], sizes = [8, 8], strides = [1, 1]} : vector<8x32xf32> to vector<8x8xf32>
    %15 = vector.extract_strided_slice %13 {offsets = [0, 0], sizes = [16, 8], strides = [1, 1]} : vector<16x64xf32> to vector<16x8xf32>
    %16 = vector.extract_strided_slice %13 {offsets = [0, 32], sizes = [16, 8], strides = [1, 1]} : vector<16x64xf32> to vector<16x8xf32>
    "tpu.trace_start"() <{level = 10 : i32, message = "qd,kd->qk"}> : () -> ()
    %cst_8 = arith.constant dense<0.000000e+00> : vector<8x16xf32>
    %17 = tpu.matmul %14, %15, %cst_8 {dimension_numbers = #tpu.dot_dimension_numbers<[1], [1], [0], [0], [0, 0, 1, 0], [], []>} : vector<8x8xf32>, vector<16x8xf32>, vector<8x16xf32> -> vector<8x16xf32>
    "tpu.trace_stop"() : () -> ()
    %cst_9 = arith.constant dense<0xFF800000> : vector<8xf32>
    %18 = vector.multi_reduction <maximumf>, %17, %cst_9 [1] : vector<8x16xf32> to vector<8xf32>
    %19 = vector.shape_cast %18 : vector<8xf32> to vector<8x1xf32>
    %20 = vector.broadcast %19 : vector<8x1xf32> to vector<8x16xf32>
    %21 = arith.subf %17, %20 : vector<8x16xf32>
    %22 = math.exp %21 : vector<8x16xf32>
    %cst_10 = arith.constant dense<0.000000e+00> : vector<8xf32>
    %23 = vector.multi_reduction <add>, %22, %cst_10 [1] : vector<8x16xf32> to vector<8xf32>
    %24 = vector.shape_cast %23 : vector<8xf32> to vector<8x1xf32>
    %25 = tpu.reciprocal %24 {approx = true} : vector<8x1xf32> -> vector<8x1xf32>
    %26 = vector.broadcast %25 : vector<8x1xf32> to vector<8x16xf32>
    %27 = arith.mulf %22, %26 : vector<8x16xf32>
    %cst_11 = arith.constant dense<0.000000e+00> : vector<8x8xf32>
    %28 = tpu.matmul %27, %16, %cst_11 {dimension_numbers = #tpu.dot_dimension_numbers<[1], [0], [0], [1], [0, 0, 1, 1], [], []>} : vector<8x16xf32>, vector<16x8xf32>, vector<8x8xf32> -> vector<8x8xf32>
    %29 = vector.extract_strided_slice %12 {offsets = [0, 8], sizes = [8, 8], strides = [1, 1]} : vector<8x32xf32> to vector<8x8xf32>
    %30 = vector.extract_strided_slice %13 {offsets = [0, 8], sizes = [16, 8], strides = [1, 1]} : vector<16x64xf32> to vector<16x8xf32>
    %31 = vector.extract_strided_slice %13 {offsets = [0, 40], sizes = [16, 8], strides = [1, 1]} : vector<16x64xf32> to vector<16x8xf32>
    "tpu.trace_start"() <{level = 10 : i32, message = "qd,kd->qk"}> : () -> ()
    %cst_12 = arith.constant dense<0.000000e+00> : vector<8x16xf32>
    %32 = tpu.matmul %29, %30, %cst_12 {dimension_numbers = #tpu.dot_dimension_numbers<[1], [1], [0], [0], [0, 0, 1, 0], [], []>} : vector<8x8xf32>, vector<16x8xf32>, vector<8x16xf32> -> vector<8x16xf32>
    "tpu.trace_stop"() : () -> ()
    %cst_13 = arith.constant dense<0xFF800000> : vector<8xf32>
    %33 = vector.multi_reduction <maximumf>, %32, %cst_13 [1] : vector<8x16xf32> to vector<8xf32>
    %34 = vector.shape_cast %33 : vector<8xf32> to vector<8x1xf32>
    %35 = vector.broadcast %34 : vector<8x1xf32> to vector<8x16xf32>
    %36 = arith.subf %32, %35 : vector<8x16xf32>
    %37 = math.exp %36 : vector<8x16xf32>
    %cst_14 = arith.constant dense<0.000000e+00> : vector<8xf32>
    %38 = vector.multi_reduction <add>, %37, %cst_14 [1] : vector<8x16xf32> to vector<8xf32>
    %39 = vector.shape_cast %38 : vector<8xf32> to vector<8x1xf32>
    %40 = tpu.reciprocal %39 {approx = true} : vector<8x1xf32> -> vector<8x1xf32>
    %41 = vector.broadcast %40 : vector<8x1xf32> to vector<8x16xf32>
    %42 = arith.mulf %37, %41 : vector<8x16xf32>
    %cst_15 = arith.constant dense<0.000000e+00> : vector<8x8xf32>
    %43 = tpu.matmul %42, %31, %cst_15 {dimension_numbers = #tpu.dot_dimension_numbers<[1], [0], [0], [1], [0, 0, 1, 1], [], []>} : vector<8x16xf32>, vector<16x8xf32>, vector<8x8xf32> -> vector<8x8xf32>
    %44 = vector.extract_strided_slice %12 {offsets = [0, 16], sizes = [8, 8], strides = [1, 1]} : vector<8x32xf32> to vector<8x8xf32>
    %45 = vector.extract_strided_slice %13 {offsets = [0, 16], sizes = [16, 8], strides = [1, 1]} : vector<16x64xf32> to vector<16x8xf32>
    %46 = vector.extract_strided_slice %13 {offsets = [0, 48], sizes = [16, 8], strides = [1, 1]} : vector<16x64xf32> to vector<16x8xf32>
    "tpu.trace_start"() <{level = 10 : i32, message = "qd,kd->qk"}> : () -> ()
    %cst_16 = arith.constant dense<0.000000e+00> : vector<8x16xf32>
    %47 = tpu.matmul %44, %45, %cst_16 {dimension_numbers = #tpu.dot_dimension_numbers<[1], [1], [0], [0], [0, 0, 1, 0], [], []>} : vector<8x8xf32>, vector<16x8xf32>, vector<8x16xf32> -> vector<8x16xf32>
    "tpu.trace_stop"() : () -> ()
    %cst_17 = arith.constant dense<0xFF800000> : vector<8xf32>
    %48 = vector.multi_reduction <maximumf>, %47, %cst_17 [1] : vector<8x16xf32> to vector<8xf32>
    %49 = vector.shape_cast %48 : vector<8xf32> to vector<8x1xf32>
    %50 = vector.broadcast %49 : vector<8x1xf32> to vector<8x16xf32>
    %51 = arith.subf %47, %50 : vector<8x16xf32>
    %52 = math.exp %51 : vector<8x16xf32>
    %cst_18 = arith.constant dense<0.000000e+00> : vector<8xf32>
    %53 = vector.multi_reduction <add>, %52, %cst_18 [1] : vector<8x16xf32> to vector<8xf32>
    %54 = vector.shape_cast %53 : vector<8xf32> to vector<8x1xf32>
    %55 = tpu.reciprocal %54 {approx = true} : vector<8x1xf32> -> vector<8x1xf32>
    %56 = vector.broadcast %55 : vector<8x1xf32> to vector<8x16xf32>
    %57 = arith.mulf %52, %56 : vector<8x16xf32>
    %cst_19 = arith.constant dense<0.000000e+00> : vector<8x8xf32>
    %58 = tpu.matmul %57, %46, %cst_19 {dimension_numbers = #tpu.dot_dimension_numbers<[1], [0], [0], [1], [0, 0, 1, 1], [], []>} : vector<8x16xf32>, vector<16x8xf32>, vector<8x8xf32> -> vector<8x8xf32>
    %59 = vector.extract_strided_slice %12 {offsets = [0, 24], sizes = [8, 8], strides = [1, 1]} : vector<8x32xf32> to vector<8x8xf32>
    %60 = vector.extract_strided_slice %13 {offsets = [0, 24], sizes = [16, 8], strides = [1, 1]} : vector<16x64xf32> to vector<16x8xf32>
    %61 = vector.extract_strided_slice %13 {offsets = [0, 56], sizes = [16, 8], strides = [1, 1]} : vector<16x64xf32> to vector<16x8xf32>
    "tpu.trace_start"() <{level = 10 : i32, message = "qd,kd->qk"}> : () -> ()
    %cst_20 = arith.constant dense<0.000000e+00> : vector<8x16xf32>
    %62 = tpu.matmul %59, %60, %cst_20 {dimension_numbers = #tpu.dot_dimension_numbers<[1], [1], [0], [0], [0, 0, 1, 0], [], []>} : vector<8x8xf32>, vector<16x8xf32>, vector<8x16xf32> -> vector<8x16xf32>
    "tpu.trace_stop"() : () -> ()
    %cst_21 = arith.constant dense<0xFF800000> : vector<8xf32>
    %63 = vector.multi_reduction <maximumf>, %62, %cst_21 [1] : vector<8x16xf32> to vector<8xf32>
    %64 = vector.shape_cast %63 : vector<8xf32> to vector<8x1xf32>
    %65 = vector.broadcast %64 : vector<8x1xf32> to vector<8x16xf32>
    %66 = arith.subf %62, %65 : vector<8x16xf32>
    %67 = math.exp %66 : vector<8x16xf32>
    %cst_22 = arith.constant dense<0.000000e+00> : vector<8xf32>
    %68 = vector.multi_reduction <add>, %67, %cst_22 [1] : vector<8x16xf32> to vector<8xf32>
    %69 = vector.shape_cast %68 : vector<8xf32> to vector<8x1xf32>
    %70 = tpu.reciprocal %69 {approx = true} : vector<8x1xf32> -> vector<8x1xf32>
    %71 = vector.broadcast %70 : vector<8x1xf32> to vector<8x16xf32>
    %72 = arith.mulf %67, %71 : vector<8x16xf32>
    %cst_23 = arith.constant dense<0.000000e+00> : vector<8x8xf32>
    %73 = tpu.matmul %72, %61, %cst_23 {dimension_numbers = #tpu.dot_dimension_numbers<[1], [0], [0], [1], [0, 0, 1, 1], [], []>} : vector<8x16xf32>, vector<16x8xf32>, vector<8x8xf32> -> vector<8x8xf32>
    %74 = tpu.concatenate %28, %43, %58, %73 in 1 : vector<8x8xf32>, vector<8x8xf32>, vector<8x8xf32>, vector<8x8xf32> -> vector<8x32xf32>
    %c0_24 = arith.constant 0 : index
    %c0_25 = arith.constant 0 : index
    %75 = vector.load %arg7[%c0_24, %c0_25] : memref<32x32xf32, #tpu.memory_space<vmem>>, vector<32x32xf32>
    %cst_26 = arith.constant dense<0.000000e+00> : vector<8x32xf32>
    %76 = tpu.matmul %74, %75, %cst_26 {dimension_numbers = #tpu.dot_dimension_numbers<[1], [0], [0], [1], [0, 0, 1, 1], [], []>} : vector<8x32xf32>, vector<32x32xf32>, vector<8x32xf32> -> vector<8x32xf32>
    %c0_27 = arith.constant 0 : index
    %c0_28 = arith.constant 0 : index
    %77 = vector.load %arg8[%c0_27, %c0_28] : memref<1x32xf32, #tpu.memory_space<vmem>>, vector<1x32xf32>
    %78 = vector.broadcast %77 : vector<1x32xf32> to vector<8x32xf32>
    %79 = arith.addf %76, %78 : vector<8x32xf32>
    %80 = arith.addf %7, %79 : vector<8x32xf32>
    %c0_29 = arith.constant 0 : index
    %c0_30 = arith.constant 0 : index
    %81 = vector.load %arg9[%c0_29, %c0_30] : memref<1x32xf32, #tpu.memory_space<vmem>>, vector<1x32xf32>
    %c0_31 = arith.constant 0 : index
    %c0_32 = arith.constant 0 : index
    %82 = vector.load %arg10[%c0_31, %c0_32] : memref<1x32xf32, #tpu.memory_space<vmem>>, vector<1x32xf32>
    %cst_33 = arith.constant dense<0.000000e+00> : vector<8xf32>
    %83 = vector.multi_reduction <add>, %80, %cst_33 [1] : vector<8x32xf32> to vector<8xf32>
    %84 = vector.shape_cast %83 : vector<8xf32> to vector<8x1xf32>
    %cst_34 = arith.constant 3.200000e+01 : f32
    %85 = vector.broadcast %cst_34 : f32 to vector<8x1xf32>
    %86 = arith.divf %84, %85 : vector<8x1xf32>
    %87 = vector.broadcast %86 : vector<8x1xf32> to vector<8x32xf32>
    %88 = arith.subf %80, %87 : vector<8x32xf32>
    %89 = arith.mulf %88, %88 : vector<8x32xf32>
    %cst_35 = arith.constant dense<0.000000e+00> : vector<8xf32>
    %90 = vector.multi_reduction <add>, %89, %cst_35 [1] : vector<8x32xf32> to vector<8xf32>
    %91 = vector.shape_cast %90 : vector<8xf32> to vector<8x1xf32>
    %cst_36 = arith.constant 3.200000e+01 : f32
    %92 = vector.broadcast %cst_36 : f32 to vector<8x1xf32>
    %93 = arith.divf %91, %92 : vector<8x1xf32>
    %94 = vector.broadcast %86 : vector<8x1xf32> to vector<8x32xf32>
    %95 = arith.subf %80, %94 : vector<8x32xf32>
    %cst_37 = arith.constant 9.99999974E-6 : f32
    %96 = vector.broadcast %cst_37 : f32 to vector<8x1xf32>
    %97 = arith.addf %93, %96 : vector<8x1xf32>
    %98 = math.rsqrt %97 : vector<8x1xf32>
    %99 = vector.broadcast %98 : vector<8x1xf32> to vector<8x32xf32>
    %100 = arith.mulf %95, %99 : vector<8x32xf32>
    %101 = vector.broadcast %81 : vector<1x32xf32> to vector<8x32xf32>
    %102 = arith.mulf %100, %101 : vector<8x32xf32>
    %103 = vector.broadcast %82 : vector<1x32xf32> to vector<8x32xf32>
    %104 = arith.addf %102, %103 : vector<8x32xf32>
    %c0_38 = arith.constant 0 : index
    %c0_39 = arith.constant 0 : index
    %105 = vector.load %arg11[%c0_38, %c0_39] : memref<32x128xf32, #tpu.memory_space<vmem>>, vector<32x128xf32>
    %cst_40 = arith.constant dense<0.000000e+00> : vector<8x128xf32>
    %106 = tpu.matmul %104, %105, %cst_40 {dimension_numbers = #tpu.dot_dimension_numbers<[1], [0], [0], [1], [0, 0, 1, 1], [], []>} : vector<8x32xf32>, vector<32x128xf32>, vector<8x128xf32> -> vector<8x128xf32>
    %c0_41 = arith.constant 0 : index
    %c0_42 = arith.constant 0 : index
    %107 = vector.load %arg12[%c0_41, %c0_42] : memref<1x128xf32, #tpu.memory_space<vmem>>, vector<1x128xf32>
    %108 = vector.broadcast %107 : vector<1x128xf32> to vector<8x128xf32>
    %109 = arith.addf %106, %108 : vector<8x128xf32>
    %cst_43 = arith.constant 0.000000e+00 : f32
    %110 = vector.broadcast %cst_43 : f32 to vector<8x128xf32>
    %111 = arith.maximumf %109, %110 : vector<8x128xf32>
    %c0_44 = arith.constant 0 : index
    %c0_45 = arith.constant 0 : index
    %112 = vector.load %arg13[%c0_44, %c0_45] : memref<128x32xf32, #tpu.memory_space<vmem>>, vector<128x32xf32>
    %cst_46 = arith.constant dense<0.000000e+00> : vector<8x32xf32>
    %113 = tpu.matmul %111, %112, %cst_46 {dimension_numbers = #tpu.dot_dimension_numbers<[1], [0], [0], [1], [0, 0, 1, 1], [], []>} : vector<8x128xf32>, vector<128x32xf32>, vector<8x32xf32> -> vector<8x32xf32>
    %c0_47 = arith.constant 0 : index
    %c0_48 = arith.constant 0 : index
    %114 = vector.load %arg14[%c0_47, %c0_48] : memref<1x32xf32, #tpu.memory_space<vmem>>, vector<1x32xf32>
    %115 = vector.broadcast %114 : vector<1x32xf32> to vector<8x32xf32>
    %116 = arith.addf %113, %115 : vector<8x32xf32>
    %117 = arith.addf %104, %116 : vector<8x32xf32>
    %c0_49 = arith.constant 0 : index
    %c0_50 = arith.constant 0 : index
    %118 = vector.load %arg15[%c0_49, %c0_50] : memref<1x32xf32, #tpu.memory_space<vmem>>, vector<1x32xf32>
    %c0_51 = arith.constant 0 : index
    %c0_52 = arith.constant 0 : index
    %119 = vector.load %arg16[%c0_51, %c0_52] : memref<1x32xf32, #tpu.memory_space<vmem>>, vector<1x32xf32>
    %cst_53 = arith.constant dense<0.000000e+00> : vector<8xf32>
    %120 = vector.multi_reduction <add>, %117, %cst_53 [1] : vector<8x32xf32> to vector<8xf32>
    %121 = vector.shape_cast %120 : vector<8xf32> to vector<8x1xf32>
    %cst_54 = arith.constant 3.200000e+01 : f32
    %122 = vector.broadcast %cst_54 : f32 to vector<8x1xf32>
    %123 = arith.divf %121, %122 : vector<8x1xf32>
    %124 = vector.broadcast %123 : vector<8x1xf32> to vector<8x32xf32>
    %125 = arith.subf %117, %124 : vector<8x32xf32>
    %126 = arith.mulf %125, %125 : vector<8x32xf32>
    %cst_55 = arith.constant dense<0.000000e+00> : vector<8xf32>
    %127 = vector.multi_reduction <add>, %126, %cst_55 [1] : vector<8x32xf32> to vector<8xf32>
    %128 = vector.shape_cast %127 : vector<8xf32> to vector<8x1xf32>
    %cst_56 = arith.constant 3.200000e+01 : f32
    %129 = vector.broadcast %cst_56 : f32 to vector<8x1xf32>
    %130 = arith.divf %128, %129 : vector<8x1xf32>
    %131 = vector.broadcast %123 : vector<8x1xf32> to vector<8x32xf32>
    %132 = arith.subf %117, %131 : vector<8x32xf32>
    %cst_57 = arith.constant 9.99999974E-6 : f32
    %133 = vector.broadcast %cst_57 : f32 to vector<8x1xf32>
    %134 = arith.addf %130, %133 : vector<8x1xf32>
    %135 = math.rsqrt %134 : vector<8x1xf32>
    %136 = vector.broadcast %135 : vector<8x1xf32> to vector<8x32xf32>
    %137 = arith.mulf %132, %136 : vector<8x32xf32>
    %138 = vector.broadcast %118 : vector<1x32xf32> to vector<8x32xf32>
    %139 = arith.mulf %137, %138 : vector<8x32xf32>
    %140 = vector.broadcast %119 : vector<1x32xf32> to vector<8x32xf32>
    %141 = arith.addf %139, %140 : vector<8x32xf32>
    %c0_58 = arith.constant 0 : index
    %c0_59 = arith.constant 0 : index
    %c0_60 = arith.constant 0 : index
    %142 = vector.load %arg17[%c0_58, %c0_59, %c0_60] : memref<1x8x32xf32, #tpu.memory_space<vmem>>, vector<1x8x32xf32>
    %143 = vector.shape_cast %142 : vector<1x8x32xf32> to vector<8x32xf32>
    %144 = vector.shape_cast %141 : vector<8x32xf32> to vector<1x8x32xf32>
    tpu.vector_store %arg17[%c0_58, %c0_59, %c0_60], %144 {strides = array<i32>} : memref<1x8x32xf32, #tpu.memory_space<vmem>>, vector<1x8x32xf32>,
    return
  }
  func.func @transform_0(%arg0: i32, %arg1: i32) -> (i32, i32, i32) {
    %c0_i32 = arith.constant 0 : i32
    %c0_i32_0 = arith.constant 0 : i32
    %c0_i32_1 = arith.constant 0 : i32
    return %arg0, %c0_i32, %c0_i32_0 : i32, i32, i32
  }
  func.func @transform_1(%arg0: i32, %arg1: i32) -> (i32, i32) {
    %c0_i32 = arith.constant 0 : i32
    %c0_i32_0 = arith.constant 0 : i32
    %c0_i32_1 = arith.constant 0 : i32
    return %c0_i32, %c0_i32_0 : i32, i32
  }
  func.func @transform_2(%arg0: i32, %arg1: i32) -> (i32, i32) {
    %c0_i32 = arith.constant 0 : i32
    %c0_i32_0 = arith.constant 0 : i32
    %c0_i32_1 = arith.constant 0 : i32
    return %c0_i32, %c0_i32_0 : i32, i32
  }
  func.func @transform_3(%arg0: i32, %arg1: i32) -> (i32, i32) {
    %c0_i32 = arith.constant 0 : i32
    %c0_i32_0 = arith.constant 0 : i32
    %c0_i32_1 = arith.constant 0 : i32
    return %c0_i32, %c0_i32_0 : i32, i32
  }
  func.func @transform_4(%arg0: i32, %arg1: i32) -> (i32, i32) {
    %c0_i32 = arith.constant 0 : i32
    %c0_i32_0 = arith.constant 0 : i32
    %c0_i32_1 = arith.constant 0 : i32
    return %c0_i32, %c0_i32_0 : i32, i32
  }
  func.func @transform_5(%arg0: i32, %arg1: i32) -> (i32, i32) {
    %c0_i32 = arith.constant 0 : i32
    %c0_i32_0 = arith.constant 0 : i32
    %c0_i32_1 = arith.constant 0 : i32
    return %c0_i32, %c0_i32_0 : i32, i32
  }
  func.func @transform_6(%arg0: i32, %arg1: i32) -> (i32, i32) {
    %c0_i32 = arith.constant 0 : i32
    %c0_i32_0 = arith.constant 0 : i32
    %c0_i32_1 = arith.constant 0 : i32
    return %c0_i32, %c0_i32_0 : i32, i32
  }
  func.func @transform_7(%arg0: i32, %arg1: i32) -> (i32, i32) {
    %c0_i32 = arith.constant 0 : i32
    %c0_i32_0 = arith.constant 0 : i32
    %c0_i32_1 = arith.constant 0 : i32
    return %c0_i32, %c0_i32_0 : i32, i32
  }
  func.func @transform_8(%arg0: i32, %arg1: i32) -> (i32, i32) {
    %c0_i32 = arith.constant 0 : i32
    %c0_i32_0 = arith.constant 0 : i32
    %c0_i32_1 = arith.constant 0 : i32
    return %c0_i32, %c0_i32_0 : i32, i32
  }
  func.func @transform_9(%arg0: i32, %arg1: i32) -> (i32, i32) {
    %c0_i32 = arith.constant 0 : i32
    %c0_i32_0 = arith.constant 0 : i32
    %c0_i32_1 = arith.constant 0 : i32
    return %c0_i32, %c0_i32_0 : i32, i32
  }
  func.func @transform_10(%arg0: i32, %arg1: i32) -> (i32, i32) {
    %c0_i32 = arith.constant 0 : i32
    %c0_i32_0 = arith.constant 0 : i32
    %c0_i32_1 = arith.constant 0 : i32
    return %c0_i32, %c0_i32_0 : i32, i32
  }
  func.func @transform_11(%arg0: i32, %arg1: i32) -> (i32, i32) {
    %c0_i32 = arith.constant 0 : i32
    %c0_i32_0 = arith.constant 0 : i32
    %c0_i32_1 = arith.constant 0 : i32
    return %c0_i32, %c0_i32_0 : i32, i32
  }
  func.func @transform_12(%arg0: i32, %arg1: i32) -> (i32, i32) {
    %c0_i32 = arith.constant 0 : i32
    %c0_i32_0 = arith.constant 0 : i32
    %c0_i32_1 = arith.constant 0 : i32
    return %c0_i32, %c0_i32_0 : i32, i32
  }
  func.func @transform_13(%arg0: i32, %arg1: i32) -> (i32, i32) {
    %c0_i32 = arith.constant 0 : i32
    %c0_i32_0 = arith.constant 0 : i32
    %c0_i32_1 = arith.constant 0 : i32
    return %c0_i32, %c0_i32_0 : i32, i32
  }
  func.func @transform_14(%arg0: i32, %arg1: i32) -> (i32, i32) {
    %c0_i32 = arith.constant 0 : i32
    %c0_i32_0 = arith.constant 0 : i32
    %c0_i32_1 = arith.constant 0 : i32
    return %c0_i32, %c0_i32_0 : i32, i32
  }
  func.func @transform_15(%arg0: i32, %arg1: i32) -> (i32, i32, i32) {
    %c0_i32 = arith.constant 0 : i32
    %c0_i32_0 = arith.constant 0 : i32
    return %arg0, %arg1, %c0_i32 : i32, i32, i32
  }
}

module attributes {stable_mosaic.version = 11 : i64} {
  func.func @encoder_block_kernel(%arg0: i32, %arg1: i32, %arg2: memref<1x16x32xf32, #tpu.memory_space<vmem>>, %arg3: memref<32x32xf32, #tpu.memory_space<vmem>>, %arg4: memref<1x32xf32, #tpu.memory_space<vmem>>, %arg5: memref<32x64xf32, #tpu.memory_space<vmem>>, %arg6: memref<1x64xf32, #tpu.memory_space<vmem>>, %arg7: memref<32x32xf32, #tpu.memory_space<vmem>>, %arg8: memref<1x32xf32, #tpu.memory_space<vmem>>, %arg9: memref<1x32xf32, #tpu.memory_space<vmem>>, %arg10: memref<1x32xf32, #tpu.memory_space<vmem>>, %arg11: memref<32x128xf32, #tpu.memory_space<vmem>>, %arg12: memref<1x128xf32, #tpu.memory_space<vmem>>, %arg13: memref<128x32xf32, #tpu.memory_space<vmem>>, %arg14: memref<1x32xf32, #tpu.memory_space<vmem>>, %arg15: memref<1x32xf32, #tpu.memory_space<vmem>>, %arg16: memref<1x32xf32, #tpu.memory_space<vmem>>, %arg17: memref<1x8x32xf32, #tpu.memory_space<vmem>>, %arg18: memref<16x64xf32, #tpu.memory_space<vmem>>) attributes {dimension_semantics = [#tpu.dimension_semantics<parallel>, #tpu.dimension_semantics<arbitrary>], iteration_bounds = array<i64: 2, 2>, scalar_prefetch = 0 : i64, scratch_operands = 1 : i64, tpu.core_type = #tpu.core_type<tc>, window_params = [{transform_indices = @transform_0, window_bounds = array<i64: 1, 16, 32>}, {pipeline_mode = #tpu.pipeline_mode<synchronous>, transform_indices = @transform_1, window_bounds = array<i64: 32, 32>}, {pipeline_mode = #tpu.pipeline_mode<synchronous>, transform_indices = @transform_2, window_bounds = array<i64: 1, 32>}, {pipeline_mode = #tpu.pipeline_mode<synchronous>, transform_indices = @transform_3, window_bounds = array<i64: 32, 64>}, {pipeline_mode = #tpu.pipeline_mode<synchronous>, transform_indices = @transform_4, window_bounds = array<i64: 1, 64>}, {pipeline_mode = #tpu.pipeline_mode<synchronous>, transform_indices = @transform_5, window_bounds = array<i64: 32, 32>}, {pipeline_mode = #tpu.pipeline_mode<synchronous>, transform_indices = @transform_6, window_bounds = array<i64: 1, 32>}, {pipeline_mode = #tpu.pipeline_mode<synchronous>, transform_indices = @transform_7, window_bounds = array<i64: 1, 32>}, {pipeline_mode = #tpu.pipeline_mode<synchronous>, transform_indices = @transform_8, window_bounds = array<i64: 1, 32>}, {pipeline_mode = #tpu.pipeline_mode<synchronous>, transform_indices = @transform_9, window_bounds = array<i64: 32, 128>}, {pipeline_mode = #tpu.pipeline_mode<synchronous>, transform_indices = @transform_10, window_bounds = array<i64: 1, 128>}, {pipeline_mode = #tpu.pipeline_mode<synchronous>, transform_indices = @transform_11, window_bounds = array<i64: 128, 32>}, {pipeline_mode = #tpu.pipeline_mode<synchronous>, transform_indices = @transform_12, window_bounds = array<i64: 1, 32>}, {pipeline_mode = #tpu.pipeline_mode<synchronous>, transform_indices = @transform_13, window_bounds = array<i64: 1, 32>}, {pipeline_mode = #tpu.pipeline_mode<synchronous>, transform_indices = @transform_14, window_bounds = array<i64: 1, 32>}, {transform_indices = @transform_15, window_bounds = array<i64: 1, 8, 32>}]} {
    %c0_i32 = arith.constant 0 : i32
    %0 = arith.cmpi eq, %arg1, %c0_i32 : i32
    %1 = arith.extui %0 : i1 to i32
    %c0_i32_0 = arith.constant 0 : i32
    %2 = arith.cmpi ne, %1, %c0_i32_0 : i32
    scf.if %2 {
      %c0_61 = arith.constant 0 : index
      %c0_62 = arith.constant 0 : index
      %c0_63 = arith.constant 0 : index
      %145 = vector.load %arg2[%c0_61, %c0_62, %c0_63] : memref<1x16x32xf32, #tpu.memory_space<vmem>>, vector<1x16x32xf32>
      %146 = vector.shape_cast %145 : vector<1x16x32xf32> to vector<16x32xf32>
      %c0_64 = arith.constant 0 : index
      %c0_65 = arith.constant 0 : index
      %147 = vector.load %arg5[%c0_64, %c0_65] : memref<32x64xf32, #tpu.memory_space<vmem>>, vector<32x64xf32>
      %cst_66 = arith.constant dense<0.000000e+00> : vector<16x64xf32>
      %148 = tpu.matmul %146, %147, %cst_66 {dimension_numbers = #tpu.dot_dimension_numbers<[1], [0], [0], [1], [0, 0, 1, 1], [], []>} : vector<16x32xf32>, vector<32x64xf32>, vector<16x64xf32> -> vector<16x64xf32>
      %c0_67 = arith.constant 0 : index
      %c0_68 = arith.constant 0 : index
      %149 = vector.load %arg6[%c0_67, %c0_68] : memref<1x64xf32, #tpu.memory_space<vmem>>, vector<1x64xf32>
      %150 = vector.broadcast %149 : vector<1x64xf32> to vector<16x64xf32>
      %151 = arith.addf %148, %150 : vector<16x64xf32>
      %c0_69 = arith.constant 0 : index
      %c0_70 = arith.constant 0 : index
      %152 = vector.load %arg18[%c0_69, %c0_70] : memref<16x64xf32, #tpu.memory_space<vmem>>, vector<16x64xf32>
      tpu.vector_store %arg18[%c0_69, %c0_70], %151 {strides = array<i32>} : memref<16x64xf32, #tpu.memory_space<vmem>>, vector<16x64xf32>,
    } else {
    }
    %c8_i32 = arith.constant 8 : i32
    %3 = arith.muli %arg1, %c8_i32 : i32
    %4 = tpu.assume_multiple %3, 8 : i32
    %c0 = arith.constant 0 : index
    %5 = arith.index_cast %4 : i32 to index
    %c0_1 = arith.constant 0 : index
    %6 = vector.load %arg2[%c0, %5, %c0_1] : memref<1x16x32xf32, #tpu.memory_space<vmem>>, vector<1x8x32xf32>
    %7 = vector.shape_cast %6 : vector<1x8x32xf32> to vector<8x32xf32>
    %c0_2 = arith.constant 0 : index
    %c0_3 = arith.constant 0 : index
    %8 = vector.load %arg3[%c0_2, %c0_3] : memref<32x32xf32, #tpu.memory_space<vmem>>, vector<32x32xf32>
    %cst = arith.constant dense<0.000000e+00> : vector<8x32xf32>
    %9 = tpu.matmul %7, %8, %cst {dimension_numbers = #tpu.dot_dimension_numbers<[1], [0], [0], [1], [0, 0, 1, 1], [], []>} : vector<8x32xf32>, vector<32x32xf32>, vector<8x32xf32> -> vector<8x32xf32>
    %c0_4 = arith.constant 0 : index
    %c0_5 = arith.constant 0 : index
    %10 = vector.load %arg4[%c0_4, %c0_5] : memref<1x32xf32, #tpu.memory_space<vmem>>, vector<1x32xf32>
    %11 = vector.broadcast %10 : vector<1x32xf32> to vector<8x32xf32>
    %12 = arith.addf %9, %11 : vector<8x32xf32>
    %c0_6 = arith.constant 0 : index
    %c0_7 = arith.constant 0 : index
    %13 = vector.load %arg18[%c0_6, %c0_7] : memref<16x64xf32, #tpu.memory_space<vmem>>, vector<16x64xf32>
    %14 = vector.extract_strided_slice %12 {offsets = [0, 0], sizes = [8, 8], strides = [1, 1]} : vector<8x32xf32> to vector<8x8xf32>
    %15 = vector.extract_strided_slice %13 {offsets = [0, 0], sizes = [16, 8], strides = [1, 1]} : vector<16x64xf32> to vector<16x8xf32>
    %16 = vector.extract_strided_slice %13 {offsets = [0, 32], sizes = [16, 8], strides = [1, 1]} : vector<16x64xf32> to vector<16x8xf32>
    "tpu.trace_start"() <{level = 10 : i32, message = "qd,kd->qk"}> : () -> ()
    %cst_8 = arith.constant dense<0.000000e+00> : vector<8x16xf32>
    %17 = tpu.matmul %14, %15, %cst_8 {dimension_numbers = #tpu.dot_dimension_numbers<[1], [1], [0], [0], [0, 0, 1, 0], [], []>} : vector<8x8xf32>, vector<16x8xf32>, vector<8x16xf32> -> vector<8x16xf32>
    "tpu.trace_stop"() : () -> ()
    %cst_9 = arith.constant dense<0xFF800000> : vector<8xf32>
    %18 = vector.multi_reduction <maximumf>, %17, %cst_9 [1] : vector<8x16xf32> to vector<8xf32>
    %19 = vector.shape_cast %18 : vector<8xf32> to vector<8x1xf32>
    %20 = vector.broadcast %19 : vector<8x1xf32> to vector<8x16xf32>
    %21 = arith.subf %17, %20 : vector<8x16xf32>
    %22 = math.exp %21 : vector<8x16xf32>
    %cst_10 = arith.constant dense<0.000000e+00> : vector<8xf32>
    %23 = vector.multi_reduction <add>, %22, %cst_10 [1] : vector<8x16xf32> to vector<8xf32>
    %24 = vector.shape_cast %23 : vector<8xf32> to vector<8x1xf32>
    %25 = tpu.reciprocal %24 {approx = true} : vector<8x1xf32> -> vector<8x1xf32>
    %26 = vector.broadcast %25 : vector<8x1xf32> to vector<8x16xf32>
    %27 = arith.mulf %22, %26 : vector<8x16xf32>
    %cst_11 = arith.constant dense<0.000000e+00> : vector<8x8xf32>
    %28 = tpu.matmul %27, %16, %cst_11 {dimension_numbers = #tpu.dot_dimension_numbers<[1], [0], [0], [1], [0, 0, 1, 1], [], []>} : vector<8x16xf32>, vector<16x8xf32>, vector<8x8xf32> -> vector<8x8xf32>
    %29 = vector.extract_strided_slice %12 {offsets = [0, 8], sizes = [8, 8], strides = [1, 1]} : vector<8x32xf32> to vector<8x8xf32>
    %30 = vector.extract_strided_slice %13 {offsets = [0, 8], sizes = [16, 8], strides = [1, 1]} : vector<16x64xf32> to vector<16x8xf32>
    %31 = vector.extract_strided_slice %13 {offsets = [0, 40], sizes = [16, 8], strides = [1, 1]} : vector<16x64xf32> to vector<16x8xf32>
    "tpu.trace_start"() <{level = 10 : i32, message = "qd,kd->qk"}> : () -> ()
    %cst_12 = arith.constant dense<0.000000e+00> : vector<8x16xf32>
    %32 = tpu.matmul %29, %30, %cst_12 {dimension_numbers = #tpu.dot_dimension_numbers<[1], [1], [0], [0], [0, 0, 1, 0], [], []>} : vector<8x8xf32>, vector<16x8xf32>, vector<8x16xf32> -> vector<8x16xf32>
    "tpu.trace_stop"() : () -> ()
    %cst_13 = arith.constant dense<0xFF800000> : vector<8xf32>
    %33 = vector.multi_reduction <maximumf>, %32, %cst_13 [1] : vector<8x16xf32> to vector<8xf32>
    %34 = vector.shape_cast %33 : vector<8xf32> to vector<8x1xf32>
    %35 = vector.broadcast %34 : vector<8x1xf32> to vector<8x16xf32>
    %36 = arith.subf %32, %35 : vector<8x16xf32>
    %37 = math.exp %36 : vector<8x16xf32>
    %cst_14 = arith.constant dense<0.000000e+00> : vector<8xf32>
    %38 = vector.multi_reduction <add>, %37, %cst_14 [1] : vector<8x16xf32> to vector<8xf32>
    %39 = vector.shape_cast %38 : vector<8xf32> to vector<8x1xf32>
    %40 = tpu.reciprocal %39 {approx = true} : vector<8x1xf32> -> vector<8x1xf32>
    %41 = vector.broadcast %40 : vector<8x1xf32> to vector<8x16xf32>
    %42 = arith.mulf %37, %41 : vector<8x16xf32>
    %cst_15 = arith.constant dense<0.000000e+00> : vector<8x8xf32>
    %43 = tpu.matmul %42, %31, %cst_15 {dimension_numbers = #tpu.dot_dimension_numbers<[1], [0], [0], [1], [0, 0, 1, 1], [], []>} : vector<8x16xf32>, vector<16x8xf32>, vector<8x8xf32> -> vector<8x8xf32>
    %44 = vector.extract_strided_slice %12 {offsets = [0, 16], sizes = [8, 8], strides = [1, 1]} : vector<8x32xf32> to vector<8x8xf32>
    %45 = vector.extract_strided_slice %13 {offsets = [0, 16], sizes = [16, 8], strides = [1, 1]} : vector<16x64xf32> to vector<16x8xf32>
    %46 = vector.extract_strided_slice %13 {offsets = [0, 48], sizes = [16, 8], strides = [1, 1]} : vector<16x64xf32> to vector<16x8xf32>
    "tpu.trace_start"() <{level = 10 : i32, message = "qd,kd->qk"}> : () -> ()
    %cst_16 = arith.constant dense<0.000000e+00> : vector<8x16xf32>
    %47 = tpu.matmul %44, %45, %cst_16 {dimension_numbers = #tpu.dot_dimension_numbers<[1], [1], [0], [0], [0, 0, 1, 0], [], []>} : vector<8x8xf32>, vector<16x8xf32>, vector<8x16xf32> -> vector<8x16xf32>
    "tpu.trace_stop"() : () -> ()
    %cst_17 = arith.constant dense<0xFF800000> : vector<8xf32>
    %48 = vector.multi_reduction <maximumf>, %47, %cst_17 [1] : vector<8x16xf32> to vector<8xf32>
    %49 = vector.shape_cast %48 : vector<8xf32> to vector<8x1xf32>
    %50 = vector.broadcast %49 : vector<8x1xf32> to vector<8x16xf32>
    %51 = arith.subf %47, %50 : vector<8x16xf32>
    %52 = math.exp %51 : vector<8x16xf32>
    %cst_18 = arith.constant dense<0.000000e+00> : vector<8xf32>
    %53 = vector.multi_reduction <add>, %52, %cst_18 [1] : vector<8x16xf32> to vector<8xf32>
    %54 = vector.shape_cast %53 : vector<8xf32> to vector<8x1xf32>
    %55 = tpu.reciprocal %54 {approx = true} : vector<8x1xf32> -> vector<8x1xf32>
    %56 = vector.broadcast %55 : vector<8x1xf32> to vector<8x16xf32>
    %57 = arith.mulf %52, %56 : vector<8x16xf32>
    %cst_19 = arith.constant dense<0.000000e+00> : vector<8x8xf32>
    %58 = tpu.matmul %57, %46, %cst_19 {dimension_numbers = #tpu.dot_dimension_numbers<[1], [0], [0], [1], [0, 0, 1, 1], [], []>} : vector<8x16xf32>, vector<16x8xf32>, vector<8x8xf32> -> vector<8x8xf32>
    %59 = vector.extract_strided_slice %12 {offsets = [0, 24], sizes = [8, 8], strides = [1, 1]} : vector<8x32xf32> to vector<8x8xf32>
    %60 = vector.extract_strided_slice %13 {offsets = [0, 24], sizes = [16, 8], strides = [1, 1]} : vector<16x64xf32> to vector<16x8xf32>
    %61 = vector.extract_strided_slice %13 {offsets = [0, 56], sizes = [16, 8], strides = [1, 1]} : vector<16x64xf32> to vector<16x8xf32>
    "tpu.trace_start"() <{level = 10 : i32, message = "qd,kd->qk"}> : () -> ()
    %cst_20 = arith.constant dense<0.000000e+00> : vector<8x16xf32>
    %62 = tpu.matmul %59, %60, %cst_20 {dimension_numbers = #tpu.dot_dimension_numbers<[1], [1], [0], [0], [0, 0, 1, 0], [], []>} : vector<8x8xf32>, vector<16x8xf32>, vector<8x16xf32> -> vector<8x16xf32>
    "tpu.trace_stop"() : () -> ()
    %cst_21 = arith.constant dense<0xFF800000> : vector<8xf32>
    %63 = vector.multi_reduction <maximumf>, %62, %cst_21 [1] : vector<8x16xf32> to vector<8xf32>
    %64 = vector.shape_cast %63 : vector<8xf32> to vector<8x1xf32>
    %65 = vector.broadcast %64 : vector<8x1xf32> to vector<8x16xf32>
    %66 = arith.subf %62, %65 : vector<8x16xf32>
    %67 = math.exp %66 : vector<8x16xf32>
    %cst_22 = arith.constant dense<0.000000e+00> : vector<8xf32>
    %68 = vector.multi_reduction <add>, %67, %cst_22 [1] : vector<8x16xf32> to vector<8xf32>
    %69 = vector.shape_cast %68 : vector<8xf32> to vector<8x1xf32>
    %70 = tpu.reciprocal %69 {approx = true} : vector<8x1xf32> -> vector<8x1xf32>
    %71 = vector.broadcast %70 : vector<8x1xf32> to vector<8x16xf32>
    %72 = arith.mulf %67, %71 : vector<8x16xf32>
    %cst_23 = arith.constant dense<0.000000e+00> : vector<8x8xf32>
    %73 = tpu.matmul %72, %61, %cst_23 {dimension_numbers = #tpu.dot_dimension_numbers<[1], [0], [0], [1], [0, 0, 1, 1], [], []>} : vector<8x16xf32>, vector<16x8xf32>, vector<8x8xf32> -> vector<8x8xf32>
    %74 = tpu.concatenate %28, %43, %58, %73 in 1 : vector<8x8xf32>, vector<8x8xf32>, vector<8x8xf32>, vector<8x8xf32> -> vector<8x32xf32>
    %c0_24 = arith.constant 0 : index
    %c0_25 = arith.constant 0 : index
    %75 = vector.load %arg7[%c0_24, %c0_25] : memref<32x32xf32, #tpu.memory_space<vmem>>, vector<32x32xf32>
    %cst_26 = arith.constant dense<0.000000e+00> : vector<8x32xf32>
    %76 = tpu.matmul %74, %75, %cst_26 {dimension_numbers = #tpu.dot_dimension_numbers<[1], [0], [0], [1], [0, 0, 1, 1], [], []>} : vector<8x32xf32>, vector<32x32xf32>, vector<8x32xf32> -> vector<8x32xf32>
    %c0_27 = arith.constant 0 : index
    %c0_28 = arith.constant 0 : index
    %77 = vector.load %arg8[%c0_27, %c0_28] : memref<1x32xf32, #tpu.memory_space<vmem>>, vector<1x32xf32>
    %78 = vector.broadcast %77 : vector<1x32xf32> to vector<8x32xf32>
    %79 = arith.addf %76, %78 : vector<8x32xf32>
    %80 = arith.addf %7, %79 : vector<8x32xf32>
    %c0_29 = arith.constant 0 : index
    %c0_30 = arith.constant 0 : index
    %81 = vector.load %arg9[%c0_29, %c0_30] : memref<1x32xf32, #tpu.memory_space<vmem>>, vector<1x32xf32>
    %c0_31 = arith.constant 0 : index
    %c0_32 = arith.constant 0 : index
    %82 = vector.load %arg10[%c0_31, %c0_32] : memref<1x32xf32, #tpu.memory_space<vmem>>, vector<1x32xf32>
    %cst_33 = arith.constant dense<0.000000e+00> : vector<8xf32>
    %83 = vector.multi_reduction <add>, %80, %cst_33 [1] : vector<8x32xf32> to vector<8xf32>
    %84 = vector.shape_cast %83 : vector<8xf32> to vector<8x1xf32>
    %cst_34 = arith.constant 3.200000e+01 : f32
    %85 = vector.broadcast %cst_34 : f32 to vector<8x1xf32>
    %86 = arith.divf %84, %85 : vector<8x1xf32>
    %87 = vector.broadcast %86 : vector<8x1xf32> to vector<8x32xf32>
    %88 = arith.subf %80, %87 : vector<8x32xf32>
    %89 = arith.mulf %88, %88 : vector<8x32xf32>
    %cst_35 = arith.constant dense<0.000000e+00> : vector<8xf32>
    %90 = vector.multi_reduction <add>, %89, %cst_35 [1] : vector<8x32xf32> to vector<8xf32>
    %91 = vector.shape_cast %90 : vector<8xf32> to vector<8x1xf32>
    %cst_36 = arith.constant 3.200000e+01 : f32
    %92 = vector.broadcast %cst_36 : f32 to vector<8x1xf32>
    %93 = arith.divf %91, %92 : vector<8x1xf32>
    %94 = vector.broadcast %86 : vector<8x1xf32> to vector<8x32xf32>
    %95 = arith.subf %80, %94 : vector<8x32xf32>
    %cst_37 = arith.constant 9.99999974E-6 : f32
    %96 = vector.broadcast %cst_37 : f32 to vector<8x1xf32>
    %97 = arith.addf %93, %96 : vector<8x1xf32>
    %98 = math.rsqrt %97 : vector<8x1xf32>
    %99 = vector.broadcast %98 : vector<8x1xf32> to vector<8x32xf32>
    %100 = arith.mulf %95, %99 : vector<8x32xf32>
    %101 = vector.broadcast %81 : vector<1x32xf32> to vector<8x32xf32>
    %102 = arith.mulf %100, %101 : vector<8x32xf32>
    %103 = vector.broadcast %82 : vector<1x32xf32> to vector<8x32xf32>
    %104 = arith.addf %102, %103 : vector<8x32xf32>
    %c0_38 = arith.constant 0 : index
    %c0_39 = arith.constant 0 : index
    %105 = vector.load %arg11[%c0_38, %c0_39] : memref<32x128xf32, #tpu.memory_space<vmem>>, vector<32x128xf32>
    %cst_40 = arith.constant dense<0.000000e+00> : vector<8x128xf32>
    %106 = tpu.matmul %104, %105, %cst_40 {dimension_numbers = #tpu.dot_dimension_numbers<[1], [0], [0], [1], [0, 0, 1, 1], [], []>} : vector<8x32xf32>, vector<32x128xf32>, vector<8x128xf32> -> vector<8x128xf32>
    %c0_41 = arith.constant 0 : index
    %c0_42 = arith.constant 0 : index
    %107 = vector.load %arg12[%c0_41, %c0_42] : memref<1x128xf32, #tpu.memory_space<vmem>>, vector<1x128xf32>
    %108 = vector.broadcast %107 : vector<1x128xf32> to vector<8x128xf32>
    %109 = arith.addf %106, %108 : vector<8x128xf32>
    %cst_43 = arith.constant 0.000000e+00 : f32
    %110 = vector.broadcast %cst_43 : f32 to vector<8x128xf32>
    %111 = arith.maximumf %109, %110 : vector<8x128xf32>
    %c0_44 = arith.constant 0 : index
    %c0_45 = arith.constant 0 : index
    %112 = vector.load %arg13[%c0_44, %c0_45] : memref<128x32xf32, #tpu.memory_space<vmem>>, vector<128x32xf32>
    %cst_46 = arith.constant dense<0.000000e+00> : vector<8x32xf32>
    %113 = tpu.matmul %111, %112, %cst_46 {dimension_numbers = #tpu.dot_dimension_numbers<[1], [0], [0], [1], [0, 0, 1, 1], [], []>} : vector<8x128xf32>, vector<128x32xf32>, vector<8x32xf32> -> vector<8x32xf32>
    %c0_47 = arith.constant 0 : index
    %c0_48 = arith.constant 0 : index
    %114 = vector.load %arg14[%c0_47, %c0_48] : memref<1x32xf32, #tpu.memory_space<vmem>>, vector<1x32xf32>
    %115 = vector.broadcast %114 : vector<1x32xf32> to vector<8x32xf32>
    %116 = arith.addf %113, %115 : vector<8x32xf32>
    %117 = arith.addf %104, %116 : vector<8x32xf32>
    %c0_49 = arith.constant 0 : index
    %c0_50 = arith.constant 0 : index
    %118 = vector.load %arg15[%c0_49, %c0_50] : memref<1x32xf32, #tpu.memory_space<vmem>>, vector<1x32xf32>
    %c0_51 = arith.constant 0 : index
    %c0_52 = arith.constant 0 : index
    %119 = vector.load %arg16[%c0_51, %c0_52] : memref<1x32xf32, #tpu.memory_space<vmem>>, vector<1x32xf32>
    %cst_53 = arith.constant dense<0.000000e+00> : vector<8xf32>
    %120 = vector.multi_reduction <add>, %117, %cst_53 [1] : vector<8x32xf32> to vector<8xf32>
    %121 = vector.shape_cast %120 : vector<8xf32> to vector<8x1xf32>
    %cst_54 = arith.constant 3.200000e+01 : f32
    %122 = vector.broadcast %cst_54 : f32 to vector<8x1xf32>
    %123 = arith.divf %121, %122 : vector<8x1xf32>
    %124 = vector.broadcast %123 : vector<8x1xf32> to vector<8x32xf32>
    %125 = arith.subf %117, %124 : vector<8x32xf32>
    %126 = arith.mulf %125, %125 : vector<8x32xf32>
    %cst_55 = arith.constant dense<0.000000e+00> : vector<8xf32>
    %127 = vector.multi_reduction <add>, %126, %cst_55 [1] : vector<8x32xf32> to vector<8xf32>
    %128 = vector.shape_cast %127 : vector<8xf32> to vector<8x1xf32>
    %cst_56 = arith.constant 3.200000e+01 : f32
    %129 = vector.broadcast %cst_56 : f32 to vector<8x1xf32>
    %130 = arith.divf %128, %129 : vector<8x1xf32>
    %131 = vector.broadcast %123 : vector<8x1xf32> to vector<8x32xf32>
    %132 = arith.subf %117, %131 : vector<8x32xf32>
    %cst_57 = arith.constant 9.99999974E-6 : f32
    %133 = vector.broadcast %cst_57 : f32 to vector<8x1xf32>
    %134 = arith.addf %130, %133 : vector<8x1xf32>
    %135 = math.rsqrt %134 : vector<8x1xf32>
    %136 = vector.broadcast %135 : vector<8x1xf32> to vector<8x32xf32>
    %137 = arith.mulf %132, %136 : vector<8x32xf32>
    %138 = vector.broadcast %118 : vector<1x32xf32> to vector<8x32xf32>
    %139 = arith.mulf %137, %138 : vector<8x32xf32>
    %140 = vector.broadcast %119 : vector<1x32xf32> to vector<8x32xf32>
    %141 = arith.addf %139, %140 : vector<8x32xf32>
    %c0_58 = arith.constant 0 : index
    %c0_59 = arith.constant 0 : index
    %c0_60 = arith.constant 0 : index
    %142 = vector.load %arg17[%c0_58, %c0_59, %c0_60] : memref<1x8x32xf32, #tpu.memory_space<vmem>>, vector<1x8x32xf32>
    %143 = vector.shape_cast %142 : vector<1x8x32xf32> to vector<8x32xf32>
    %144 = vector.shape_cast %141 : vector<8x32xf32> to vector<1x8x32xf32>
    tpu.vector_store %arg17[%c0_58, %c0_59, %c0_60], %144 {strides = array<i32>} : memref<1x8x32xf32, #tpu.memory_space<vmem>>, vector<1x8x32xf32>,
    return
  }
  func.func @transform_0(%arg0: i32, %arg1: i32) -> (i32, i32, i32) {
    %c0_i32 = arith.constant 0 : i32
    %c0_i32_0 = arith.constant 0 : i32
    %c0_i32_1 = arith.constant 0 : i32
    return %arg0, %c0_i32, %c0_i32_0 : i32, i32, i32
  }
  func.func @transform_1(%arg0: i32, %arg1: i32) -> (i32, i32) {
    %c0_i32 = arith.constant 0 : i32
    %c0_i32_0 = arith.constant 0 : i32
    %c0_i32_1 = arith.constant 0 : i32
    return %c0_i32, %c0_i32_0 : i32, i32
  }
  func.func @transform_2(%arg0: i32, %arg1: i32) -> (i32, i32) {
    %c0_i32 = arith.constant 0 : i32
    %c0_i32_0 = arith.constant 0 : i32
    %c0_i32_1 = arith.constant 0 : i32
    return %c0_i32, %c0_i32_0 : i32, i32
  }
  func.func @transform_3(%arg0: i32, %arg1: i32) -> (i32, i32) {
    %c0_i32 = arith.constant 0 : i32
    %c0_i32_0 = arith.constant 0 : i32
    %c0_i32_1 = arith.constant 0 : i32
    return %c0_i32, %c0_i32_0 : i32, i32
  }
  func.func @transform_4(%arg0: i32, %arg1: i32) -> (i32, i32) {
    %c0_i32 = arith.constant 0 : i32
    %c0_i32_0 = arith.constant 0 : i32
    %c0_i32_1 = arith.constant 0 : i32
    return %c0_i32, %c0_i32_0 : i32, i32
  }
  func.func @transform_5(%arg0: i32, %arg1: i32) -> (i32, i32) {
    %c0_i32 = arith.constant 0 : i32
    %c0_i32_0 = arith.constant 0 : i32
    %c0_i32_1 = arith.constant 0 : i32
    return %c0_i32, %c0_i32_0 : i32, i32
  }
  func.func @transform_6(%arg0: i32, %arg1: i32) -> (i32, i32) {
    %c0_i32 = arith.constant 0 : i32
    %c0_i32_0 = arith.constant 0 : i32
    %c0_i32_1 = arith.constant 0 : i32
    return %c0_i32, %c0_i32_0 : i32, i32
  }
  func.func @transform_7(%arg0: i32, %arg1: i32) -> (i32, i32) {
    %c0_i32 = arith.constant 0 : i32
    %c0_i32_0 = arith.constant 0 : i32
    %c0_i32_1 = arith.constant 0 : i32
    return %c0_i32, %c0_i32_0 : i32, i32
  }
  func.func @transform_8(%arg0: i32, %arg1: i32) -> (i32, i32) {
    %c0_i32 = arith.constant 0 : i32
    %c0_i32_0 = arith.constant 0 : i32
    %c0_i32_1 = arith.constant 0 : i32
    return %c0_i32, %c0_i32_0 : i32, i32
  }
  func.func @transform_9(%arg0: i32, %arg1: i32) -> (i32, i32) {
    %c0_i32 = arith.constant 0 : i32
    %c0_i32_0 = arith.constant 0 : i32
    %c0_i32_1 = arith.constant 0 : i32
    return %c0_i32, %c0_i32_0 : i32, i32
  }
  func.func @transform_10(%arg0: i32, %arg1: i32) -> (i32, i32) {
    %c0_i32 = arith.constant 0 : i32
    %c0_i32_0 = arith.constant 0 : i32
    %c0_i32_1 = arith.constant 0 : i32
    return %c0_i32, %c0_i32_0 : i32, i32
  }
  func.func @transform_11(%arg0: i32, %arg1: i32) -> (i32, i32) {
    %c0_i32 = arith.constant 0 : i32
    %c0_i32_0 = arith.constant 0 : i32
    %c0_i32_1 = arith.constant 0 : i32
    return %c0_i32, %c0_i32_0 : i32, i32
  }
  func.func @transform_12(%arg0: i32, %arg1: i32) -> (i32, i32) {
    %c0_i32 = arith.constant 0 : i32
    %c0_i32_0 = arith.constant 0 : i32
    %c0_i32_1 = arith.constant 0 : i32
    return %c0_i32, %c0_i32_0 : i32, i32
  }
  func.func @transform_13(%arg0: i32, %arg1: i32) -> (i32, i32) {
    %c0_i32 = arith.constant 0 : i32
    %c0_i32_0 = arith.constant 0 : i32
    %c0_i32_1 = arith.constant 0 : i32
    return %c0_i32, %c0_i32_0 : i32, i32
  }
  func.func @transform_14(%arg0: i32, %arg1: i32) -> (i32, i32) {
    %c0_i32 = arith.constant 0 : i32
    %c0_i32_0 = arith.constant 0 : i32
    %c0_i32_1 = arith.constant 0 : i32
    return %c0_i32, %c0_i32_0 : i32, i32
  }
  func.func @transform_15(%arg0: i32, %arg1: i32) -> (i32, i32, i32) {
    %c0_i32 = arith.constant 0 : i32
    %c0_i32_0 = arith.constant 0 : i32
    return %arg0, %arg1, %c0_i32 : i32, i32, i32
  }
}

</mosaic_0001>

<llo_original>
// kernel: tpu_custom_call.1
$region0: #{tpu_custom_call.1}
  #allocation0 [shape = 'u32[]', space=smem, size = 0x4, offset = 0x4, fixed_abs, tag = 'smem constant byte address 0x4 - core index']
  #allocation1 [shape = 'u32[144,128]{1,0:T(1,128)}', space=vmem, size = 0x12000, scoped, tag = 'internal scratch']
  #allocation2 [shape = 'f32[16,64]{1,0:T(8,128)}', space=vmem, size = 0x2000, scoped, tag = 'scratch operand']
  %s0 = inlined_call_operand.hbm [shape: f32[2,16,32], index: 0, kind: input, shape index: {}]
  %s1 = inlined_call_operand.hbm [shape: f32[32,32], index: 1, kind: input, shape index: {}]
  %s2 = inlined_call_operand.hbm [shape: f32[1,32], index: 2, kind: input, shape index: {}]
  %s3 = inlined_call_operand.hbm [shape: f32[32,64], index: 3, kind: input, shape index: {}]
  %s4 = inlined_call_operand.hbm [shape: f32[1,64], index: 4, kind: input, shape index: {}]
  %s5 = inlined_call_operand.hbm [shape: f32[32,32], index: 5, kind: input, shape index: {}]
  %s6 = inlined_call_operand.hbm [shape: f32[1,32], index: 6, kind: input, shape index: {}]
  %s7 = inlined_call_operand.hbm [shape: f32[1,32], index: 7, kind: input, shape index: {}]
  %s8 = inlined_call_operand.hbm [shape: f32[1,32], index: 8, kind: input, shape index: {}]
  %s9 = inlined_call_operand.hbm [shape: f32[32,128], index: 9, kind: input, shape index: {}]
  %s10 = inlined_call_operand.hbm [shape: f32[1,128], index: 10, kind: input, shape index: {}]
  %s11 = inlined_call_operand.hbm [shape: f32[128,32], index: 11, kind: input, shape index: {}]
  %s12 = inlined_call_operand.hbm [shape: f32[1,32], index: 12, kind: input, shape index: {}]
  %s13 = inlined_call_operand.hbm [shape: f32[1,32], index: 13, kind: input, shape index: {}]
  %s14 = inlined_call_operand.hbm [shape: f32[1,32], index: 14, kind: input, shape index: {}]
  %s15 = inlined_call_operand.hbm [shape: f32[2,16,32], index: 15, kind: output, shape index: {}]
  %s16 = sld [smem:[#allocation0]]
  $region157: #{tpu_custom_call.1} parent=0
    _
  %s18 = ssub.s32 1, %s16
  %s19 = scalar_select 0, %s18, %s16
  $region1: #{tpu_custom_call.1} parent=0
    #allocation3 [shape = 'u8[16384]{0}', space=vmem, size = 0x4000, scoped, tag = 'input window, operand 0']
    #allocation4 [shape = 's32[2]{0}', space=sflag, size = 0x8, scoped, tag = 'scoped memory for tpu_custom_call.1']
    #allocation5 [shape = 's32[2]{0}', space=sflag, size = 0x8, scoped, tag = 'scoped memory for tpu_custom_call.1']
    #allocation6 [shape = 'u8[16384]{0}', space=vmem, size = 0x4000, scoped, tag = 'input window, operand 1, single buffered']
    #allocation7 [shape = 's32[1]{0}', space=sflag, size = 0x4, scoped, tag = 'scoped memory for tpu_custom_call.1']
    #allocation8 [shape = 'u8[512]{0}', space=vmem, size = 0x400, scoped, tag = 'input window, operand 2, single buffered']
    #allocation9 [shape = 'u8[16384]{0}', space=vmem, size = 0x4000, scoped, tag = 'input window, operand 3, single buffered']
    #allocation10 [shape = 's32[1]{0}', space=sflag, size = 0x4, scoped, tag = 'scoped memory for tpu_custom_call.1']
    #allocation11 [shape = 'u8[512]{0}', space=vmem, size = 0x400, scoped, tag = 'input window, operand 4, single buffered']
    #allocation12 [shape = 'u8[16384]{0}', space=vmem, size = 0x4000, scoped, tag = 'input window, operand 5, single buffered']
    #allocation13 [shape = 's32[1]{0}', space=sflag, size = 0x4, scoped, tag = 'scoped memory for tpu_custom_call.1']
    #allocation14 [shape = 'u8[512]{0}', space=vmem, size = 0x400, scoped, tag = 'input window, operand 6, single buffered']
    #allocation15 [shape = 'u8[512]{0}', space=vmem, size = 0x400, scoped, tag = 'input window, operand 7, single buffered']
    #allocation16 [shape = 's32[1]{0}', space=sflag, size = 0x4, scoped, tag = 'scoped memory for tpu_custom_call.1']
    #allocation17 [shape = 'u8[512]{0}', space=vmem, size = 0x400, scoped, tag = 'input window, operand 8, single buffered']
    #allocation18 [shape = 'u8[16384]{0}', space=vmem, size = 0x4000, scoped, tag = 'input window, operand 9, single buffered']
    #allocation19 [shape = 's32[1]{0}', space=sflag, size = 0x4, scoped, tag = 'scoped memory for tpu_custom_call.1']
    #allocation20 [shape = 'u8[512]{0}', space=vmem, size = 0x400, scoped, tag = 'input window, operand 10, single buffered']
    #allocation21 [shape = 'u8[65536]{0}', space=vmem, size = 0x10000, scoped, tag = 'input window, operand 11, single buffered']
    #allocation22 [shape = 's32[1]{0}', space=sflag, size = 0x4, scoped, tag = 'scoped memory for tpu_custom_call.1']
    #allocation23 [shape = 'u8[512]{0}', space=vmem, size = 0x400, scoped, tag = 'input window, operand 12, single buffered']
    #allocation24 [shape = 'u8[512]{0}', space=vmem, size = 0x400, scoped, tag = 'input window, operand 13, single buffered']
    #allocation25 [shape = 's32[1]{0}', space=sflag, size = 0x4, scoped, tag = 'scoped memory for tpu_custom_call.1']
    #allocation26 [shape = 'u8[512]{0}', space=vmem, size = 0x400, scoped, tag = 'input window, operand 14, single buffered']
    #allocation27 [shape = 'u8[8192]{0}', space=vmem, size = 0x2000, scoped, tag = 'output window, operand 0']
    %20 = vsyncpa [#allocation4], 0
    %s21 = scalar_lea.sflag [#allocation4], 1
    %22 = vsyncpa %s21, 0
    %23 = vsyncpa [#allocation7], 0
    %24 = vsyncpa [#allocation10], 0
    %25 = vsyncpa [#allocation13], 0
    %26 = vsyncpa [#allocation16], 0
    %27 = vsyncpa [#allocation19], 0
    %28 = vsyncpa [#allocation22], 0
    %29 = vsyncpa [#allocation25], 0
    %30 = vsyncpa [#allocation5], 0
    %s31 = scalar_lea.sflag [#allocation5], 1
    %32 = vsyncpa %s31, 0
    loop: start=0, step=1, limit=6
    $region2: #{tpu_custom_call.1} parent=1 // loop_pre_header
      _
    $region3: #{tpu_custom_call.1} parent=1 // loop_header
      %s34 = sphi 0, %s38
      %p35 = scmp.ge.s32.totalorder %s34, 6
      %s41 = sphi 0, %s53
      %s42 = sphi 0, %s49
      %s43 = sphi 0, %s41
      %s44 = sphi 0, %s42
      %s45 = sphi 0, %s43
      %s46 = sphi 0, %s44
      %s56 = sphi 0, %s58
      %s59 = sphi 0, %s56
      %s60 = sphi 0, %s59
      %s76 = sphi 0, %s60
      %s80 = sphi 0, %s80
      %s82 = sphi 0, %s80
      %s83 = sphi 0, %s82
      %s97 = sphi 0, %s83
      %s101 = sphi 0, %s101
      %s103 = sphi 0, %s101
      %s104 = sphi 0, %s103
      %s118 = sphi 0, %s104
      %s122 = sphi 0, %s122
      %s124 = sphi 0, %s122
      %s125 = sphi 0, %s124
      %s139 = sphi 0, %s125
      %s143 = sphi 0, %s143
      %s145 = sphi 0, %s143
      %s146 = sphi 0, %s145
      %s160 = sphi 0, %s146
      %s164 = sphi 0, %s164
      %s166 = sphi 0, %s164
      %s167 = sphi 0, %s166
      %s181 = sphi 0, %s167
      %s185 = sphi 0, %s185
      %s187 = sphi 0, %s185
      %s188 = sphi 0, %s187
      %s202 = sphi 0, %s188
      %s206 = sphi 0, %s206
      %s208 = sphi 0, %s206
      %s209 = sphi 0, %s208
      %s223 = sphi 0, %s209
      %s227 = sphi 0, %s227
      %s229 = sphi 0, %s227
      %s230 = sphi 0, %s229
      %s244 = sphi 0, %s230
      %s248 = sphi 0, %s248
      %s250 = sphi 0, %s248
      %s251 = sphi 0, %s250
      %s265 = sphi 0, %s251
      %s269 = sphi 0, %s269
      %s271 = sphi 0, %s269
      %s272 = sphi 0, %s271
      %s286 = sphi 0, %s272
      %s290 = sphi 0, %s290
      %s292 = sphi 0, %s290
      %s293 = sphi 0, %s292
      %s307 = sphi 0, %s293
      %s311 = sphi 0, %s311
      %s313 = sphi 0, %s311
      %s314 = sphi 0, %s313
      %s328 = sphi 0, %s314
      %s332 = sphi 0, %s332
      %s334 = sphi 0, %s332
      %s335 = sphi 0, %s334
      %s349 = sphi 0, %s335
      %s353 = sphi 0, %s353
      %s355 = sphi 0, %s353
      %s356 = sphi 0, %s355
      %s370 = sphi 0, %s356
      %s378 = sphi 0, %s380
      %s381 = sphi 0, %s378
      %s382 = sphi 0, %s381
      %s398 = sphi 0, %s382
    $region4: #{tpu_custom_call.1} parent=1 // loop_header_branch
      %37 = sbr.rel (%p35) target = $region8
    $region5: #{tpu_custom_call.1} parent=1 // loop_body
      %s39 = ssub.s32 %s34, 1
      %s40 = ssub.s32 %s34, 2
      %s47 = sadd.s32 1, %s42
      %p48 = scmp.ge.s32.totalorder %s47, 2
      %s49 = scalar_select %p48, 0, %s47
      %s50 = sadd.s32 1, %s41
      %s51 = scalar_select %p48, %s50, %s41
      %p52 = scmp.ge.s32.totalorder %s51, 2
      %s53 = scalar_select %p52, 0, %s51
      %s54 = ssub.s32 %s41, %s53
      %p55 = scmp.eq.s32.totalorder %s54, 0
      %s57 = sadd.s32 %s56, 1
      %s58 = scalar_select %p55, %s56, %s57
      %p61 = pneg %p55
      %p62 = scmp.eq.s32.totalorder %s34, 3
      %p63 = por %p61, %p62
      %p64 = scmp.ne.s32.totalorder %s56, %s59
      %p65 = scmp.eq.s32.totalorder %s34, 0
      %p66 = por %p64, %p65
      %p67 = scmp.ne.s32.totalorder %s56, %s59
      %p68 = scmp.eq.s32.totalorder %s39, 3
      %p69 = por %p67, %p68
      %p70 = scmp.ne.s32.totalorder %s59, %s60
      %p71 = scmp.eq.s32.totalorder %s39, 0
      %p72 = por %p70, %p71
      %p73 = scmp.ne.s32.totalorder %s59, %s60
      %p74 = scmp.eq.s32.totalorder %s40, 3
      %p75 = por %p73, %p74
      %p77 = scmp.ne.s32.totalorder %s60, %s76
      %p78 = scmp.eq.s32.totalorder %s40, 0
      %p79 = por %p77, %p78
      %s81 = sadd.s32 %s80, 1
      %p84 = scmp.eq.s32.totalorder %s34, 3
      %p85 = scmp.ne.s32.totalorder %s80, %s82
      %p86 = scmp.eq.s32.totalorder %s34, 0
      %p87 = por %p85, %p86
      %p88 = scmp.ne.s32.totalorder %s80, %s82
      %p89 = scmp.eq.s32.totalorder %s39, 3
      %p90 = por %p88, %p89
      %p91 = scmp.ne.s32.totalorder %s82, %s83
      %p92 = scmp.eq.s32.totalorder %s39, 0
      %p93 = por %p91, %p92
      %p94 = scmp.ne.s32.totalorder %s82, %s83
      %p95 = scmp.eq.s32.totalorder %s40, 3
      %p96 = por %p94, %p95
      %p98 = scmp.ne.s32.totalorder %s83, %s97
      %p99 = scmp.eq.s32.totalorder %s40, 0
      %p100 = por %p98, %p99
      %s102 = sadd.s32 %s101, 1
      %p105 = scmp.eq.s32.totalorder %s34, 3
      %p106 = scmp.ne.s32.totalorder %s101, %s103
      %p107 = scmp.eq.s32.totalorder %s34, 0
      %p108 = por %p106, %p107
      %p109 = scmp.ne.s32.totalorder %s101, %s103
      %p110 = scmp.eq.s32.totalorder %s39, 3
      %p111 = por %p109, %p110
      %p112 = scmp.ne.s32.totalorder %s103, %s104
      %p113 = scmp.eq.s32.totalorder %s39, 0
      %p114 = por %p112, %p113
      %p115 = scmp.ne.s32.totalorder %s103, %s104
      %p116 = scmp.eq.s32.totalorder %s40, 3
      %p117 = por %p115, %p116
      %p119 = scmp.ne.s32.totalorder %s104, %s118
      %p120 = scmp.eq.s32.totalorder %s40, 0
      %p121 = por %p119, %p120
      %s123 = sadd.s32 %s122, 1
      %p126 = scmp.eq.s32.totalorder %s34, 3
      %p127 = scmp.ne.s32.totalorder %s122, %s124
      %p128 = scmp.eq.s32.totalorder %s34, 0
      %p129 = por %p127, %p128
      %p130 = scmp.ne.s32.totalorder %s122, %s124
      %p131 = scmp.eq.s32.totalorder %s39, 3
      %p132 = por %p130, %p131
      %p133 = scmp.ne.s32.totalorder %s124, %s125
      %p134 = scmp.eq.s32.totalorder %s39, 0
      %p135 = por %p133, %p134
      %p136 = scmp.ne.s32.totalorder %s124, %s125
      %p137 = scmp.eq.s32.totalorder %s40, 3
      %p138 = por %p136, %p137
      %p140 = scmp.ne.s32.totalorder %s125, %s139
      %p141 = scmp.eq.s32.totalorder %s40, 0
      %p142 = por %p140, %p141
      %s144 = sadd.s32 %s143, 1
      %p147 = scmp.eq.s32.totalorder %s34, 3
      %p148 = scmp.ne.s32.totalorder %s143, %s145
      %p149 = scmp.eq.s32.totalorder %s34, 0
      %p150 = por %p148, %p149
      %p151 = scmp.ne.s32.totalorder %s143, %s145
      %p152 = scmp.eq.s32.totalorder %s39, 3
      %p153 = por %p151, %p152
      %p154 = scmp.ne.s32.totalorder %s145, %s146
      %p155 = scmp.eq.s32.totalorder %s39, 0
      %p156 = por %p154, %p155
      %p157 = scmp.ne.s32.totalorder %s145, %s146
      %p158 = scmp.eq.s32.totalorder %s40, 3
      %p159 = por %p157, %p158
      %p161 = scmp.ne.s32.totalorder %s146, %s160
      %p162 = scmp.eq.s32.totalorder %s40, 0
      %p163 = por %p161, %p162
      %s165 = sadd.s32 %s164, 1
      %p168 = scmp.eq.s32.totalorder %s34, 3
      %p169 = scmp.ne.s32.totalorder %s164, %s166
      %p170 = scmp.eq.s32.totalorder %s34, 0
      %p171 = por %p169, %p170
      %p172 = scmp.ne.s32.totalorder %s164, %s166
      %p173 = scmp.eq.s32.totalorder %s39, 3
      %p174 = por %p172, %p173
      %p175 = scmp.ne.s32.totalorder %s166, %s167
      %p176 = scmp.eq.s32.totalorder %s39, 0
      %p177 = por %p175, %p176
      %p178 = scmp.ne.s32.totalorder %s166, %s167
      %p179 = scmp.eq.s32.totalorder %s40, 3
      %p180 = por %p178, %p179
      %p182 = scmp.ne.s32.totalorder %s167, %s181
      %p183 = scmp.eq.s32.totalorder %s40, 0
      %p184 = por %p182, %p183
      %s186 = sadd.s32 %s185, 1
      %p189 = scmp.eq.s32.totalorder %s34, 3
      %p190 = scmp.ne.s32.totalorder %s185, %s187
      %p191 = scmp.eq.s32.totalorder %s34, 0
      %p192 = por %p190, %p191
      %p193 = scmp.ne.s32.totalorder %s185, %s187
      %p194 = scmp.eq.s32.totalorder %s39, 3
      %p195 = por %p193, %p194
      %p196 = scmp.ne.s32.totalorder %s187, %s188
      %p197 = scmp.eq.s32.totalorder %s39, 0
      %p198 = por %p196, %p197
      %p199 = scmp.ne.s32.totalorder %s187, %s188
      %p200 = scmp.eq.s32.totalorder %s40, 3
      %p201 = por %p199, %p200
      %p203 = scmp.ne.s32.totalorder %s188, %s202
      %p204 = scmp.eq.s32.totalorder %s40, 0
      %p205 = por %p203, %p204
      %s207 = sadd.s32 %s206, 1
      %p210 = scmp.eq.s32.totalorder %s34, 3
      %p211 = scmp.ne.s32.totalorder %s206, %s208
      %p212 = scmp.eq.s32.totalorder %s34, 0
      %p213 = por %p211, %p212
      %p214 = scmp.ne.s32.totalorder %s206, %s208
      %p215 = scmp.eq.s32.totalorder %s39, 3
      %p216 = por %p214, %p215
      %p217 = scmp.ne.s32.totalorder %s208, %s209
      %p218 = scmp.eq.s32.totalorder %s39, 0
      %p219 = por %p217, %p218
      %p220 = scmp.ne.s32.totalorder %s208, %s209
      %p221 = scmp.eq.s32.totalorder %s40, 3
      %p222 = por %p220, %p221
      %p224 = scmp.ne.s32.totalorder %s209, %s223
      %p225 = scmp.eq.s32.totalorder %s40, 0
      %p226 = por %p224, %p225
      %s228 = sadd.s32 %s227, 1
      %p231 = scmp.eq.s32.totalorder %s34, 3
      %p232 = scmp.ne.s32.totalorder %s227, %s229
      %p233 = scmp.eq.s32.totalorder %s34, 0
      %p234 = por %p232, %p233
      %p235 = scmp.ne.s32.totalorder %s227, %s229
      %p236 = scmp.eq.s32.totalorder %s39, 3
      %p237 = por %p235, %p236
      %p238 = scmp.ne.s32.totalorder %s229, %s230
      %p239 = scmp.eq.s32.totalorder %s39, 0
      %p240 = por %p238, %p239
      %p241 = scmp.ne.s32.totalorder %s229, %s230
      %p242 = scmp.eq.s32.totalorder %s40, 3
      %p243 = por %p241, %p242
      %p245 = scmp.ne.s32.totalorder %s230, %s244
      %p246 = scmp.eq.s32.totalorder %s40, 0
      %p247 = por %p245, %p246
      %s249 = sadd.s32 %s248, 1
      %p252 = scmp.eq.s32.totalorder %s34, 3
      %p253 = scmp.ne.s32.totalorder %s248, %s250
      %p254 = scmp.eq.s32.totalorder %s34, 0
      %p255 = por %p253, %p254
      %p256 = scmp.ne.s32.totalorder %s248, %s250
      %p257 = scmp.eq.s32.totalorder %s39, 3
      %p258 = por %p256, %p257
      %p259 = scmp.ne.s32.totalorder %s250, %s251
      %p260 = scmp.eq.s32.totalorder %s39, 0
      %p261 = por %p259, %p260
      %p262 = scmp.ne.s32.totalorder %s250, %s251
      %p263 = scmp.eq.s32.totalorder %s40, 3
      %p264 = por %p262, %p263
      %p266 = scmp.ne.s32.totalorder %s251, %s265
      %p267 = scmp.eq.s32.totalorder %s40, 0
      %p268 = por %p266, %p267
      %s270 = sadd.s32 %s269, 1
      %p273 = scmp.eq.s32.totalorder %s34, 3
      %p274 = scmp.ne.s32.totalorder %s269, %s271
      %p275 = scmp.eq.s32.totalorder %s34, 0
      %p276 = por %p274, %p275
      %p277 = scmp.ne.s32.totalorder %s269, %s271
      %p278 = scmp.eq.s32.totalorder %s39, 3
      %p279 = por %p277, %p278
      %p280 = scmp.ne.s32.totalorder %s271, %s272
      %p281 = scmp.eq.s32.totalorder %s39, 0
      %p282 = por %p280, %p281
      %p283 = scmp.ne.s32.totalorder %s271, %s272
      %p284 = scmp.eq.s32.totalorder %s40, 3
      %p285 = por %p283, %p284
      %p287 = scmp.ne.s32.totalorder %s272, %s286
      %p288 = scmp.eq.s32.totalorder %s40, 0
      %p289 = por %p287, %p288
      %s291 = sadd.s32 %s290, 1
      %p294 = scmp.eq.s32.totalorder %s34, 3
      %p295 = scmp.ne.s32.totalorder %s290, %s292
      %p296 = scmp.eq.s32.totalorder %s34, 0
      %p297 = por %p295, %p296
      %p298 = scmp.ne.s32.totalorder %s290, %s292
      %p299 = scmp.eq.s32.totalorder %s39, 3
      %p300 = por %p298, %p299
      %p301 = scmp.ne.s32.totalorder %s292, %s293
      %p302 = scmp.eq.s32.totalorder %s39, 0
      %p303 = por %p301, %p302
      %p304 = scmp.ne.s32.totalorder %s292, %s293
      %p305 = scmp.eq.s32.totalorder %s40, 3
      %p306 = por %p304, %p305
      %p308 = scmp.ne.s32.totalorder %s293, %s307
      %p309 = scmp.eq.s32.totalorder %s40, 0
      %p310 = por %p308, %p309
      %s312 = sadd.s32 %s311, 1
      %p315 = scmp.eq.s32.totalorder %s34, 3
      %p316 = scmp.ne.s32.totalorder %s311, %s313
      %p317 = scmp.eq.s32.totalorder %s34, 0
      %p318 = por %p316, %p317
      %p319 = scmp.ne.s32.totalorder %s311, %s313
      %p320 = scmp.eq.s32.totalorder %s39, 3
      %p321 = por %p319, %p320
      %p322 = scmp.ne.s32.totalorder %s313, %s314
      %p323 = scmp.eq.s32.totalorder %s39, 0
      %p324 = por %p322, %p323
      %p325 = scmp.ne.s32.totalorder %s313, %s314
      %p326 = scmp.eq.s32.totalorder %s40, 3
      %p327 = por %p325, %p326
      %p329 = scmp.ne.s32.totalorder %s314, %s328
      %p330 = scmp.eq.s32.totalorder %s40, 0
      %p331 = por %p329, %p330
      %s333 = sadd.s32 %s332, 1
      %p336 = scmp.eq.s32.totalorder %s34, 3
      %p337 = scmp.ne.s32.totalorder %s332, %s334
      %p338 = scmp.eq.s32.totalorder %s34, 0
      %p339 = por %p337, %p338
      %p340 = scmp.ne.s32.totalorder %s332, %s334
      %p341 = scmp.eq.s32.totalorder %s39, 3
      %p342 = por %p340, %p341
      %p343 = scmp.ne.s32.totalorder %s334, %s335
      %p344 = scmp.eq.s32.totalorder %s39, 0
      %p345 = por %p343, %p344
      %p346 = scmp.ne.s32.totalorder %s334, %s335
      %p347 = scmp.eq.s32.totalorder %s40, 3
      %p348 = por %p346, %p347
      %p350 = scmp.ne.s32.totalorder %s335, %s349
      %p351 = scmp.eq.s32.totalorder %s40, 0
      %p352 = por %p350, %p351
      %s354 = sadd.s32 %s353, 1
      %p357 = scmp.eq.s32.totalorder %s34, 3
      %p358 = scmp.ne.s32.totalorder %s353, %s355
      %p359 = scmp.eq.s32.totalorder %s34, 0
      %p360 = por %p358, %p359
      %p361 = scmp.ne.s32.totalorder %s353, %s355
      %p362 = scmp.eq.s32.totalorder %s39, 3
      %p363 = por %p361, %p362
      %p364 = scmp.ne.s32.totalorder %s355, %s356
      %p365 = scmp.eq.s32.totalorder %s39, 0
      %p366 = por %p364, %p365
      %p367 = scmp.ne.s32.totalorder %s355, %s356
      %p368 = scmp.eq.s32.totalorder %s40, 3
      %p369 = por %p367, %p368
      %p371 = scmp.ne.s32.totalorder %s356, %s370
      %p372 = scmp.eq.s32.totalorder %s40, 0
      %p373 = por %p371, %p372
      %s374 = ssub.s32 %s41, %s53
      %s375 = ssub.s32 %s42, %s49
      %s376 = sor.u32 %s374, %s375
      %p377 = scmp.eq.s32.totalorder %s376, 0
      %s379 = sadd.s32 %s378, 1
      %s380 = scalar_select %p377, %s378, %s379
      %p383 = pneg %p377
      %p384 = scmp.eq.s32.totalorder %s34, 3
      %p385 = por %p383, %p384
      %p386 = scmp.ne.s32.totalorder %s378, %s381
      %p387 = scmp.eq.s32.totalorder %s34, 0
      %p388 = por %p386, %p387
      %p389 = scmp.ne.s32.totalorder %s378, %s381
      %p390 = scmp.eq.s32.totalorder %s39, 3
      %p391 = por %p389, %p390
      %p392 = scmp.ne.s32.totalorder %s381, %s382
      %p393 = scmp.eq.s32.totalorder %s39, 0
      %p394 = por %p392, %p393
      %p395 = scmp.ne.s32.totalorder %s381, %s382
      %p396 = scmp.eq.s32.totalorder %s40, 3
      %p397 = por %p395, %p396
      %p399 = scmp.ne.s32.totalorder %s382, %s398
      %p400 = scmp.eq.s32.totalorder %s40, 0
      %p401 = por %p399, %p400
      %p402 = scmp.le.s32.totalorder 1, %s34
      %p403 = scmp.lt.s32.totalorder %s34, 5
      %p404 = pnand %p402, %p403
      %p405 = pneg %p404
      // Predicated region
      $region9: #{tpu_custom_call.1} parent=5 // pred_check
        _
      $region10: #{tpu_custom_call.1} parent=5 // pred_check_branch
        %407 = sbr.rel (%p404) target = $region12
      $region11: #{tpu_custom_call.1} parent=5 // pred_region
        %s408 = ssub.s32 %s34, 1
        // Predicated region
        $region13: #{tpu_custom_call.1} parent=11 // pred_check
          %p409 = pneg %p93
        $region14: #{tpu_custom_call.1} parent=11 // pred_check_branch
          %411 = sbr.rel (%p409) target = $region16
        $region15: #{tpu_custom_call.1} parent=11 // pred_region
          %s413 = ssub.s32 512, 512
          %414 = vsyncadd [#allocation7], %s413
          %s415 = sshll.u32 [#allocation6], 4
          %s416 = int_to_ptr.vmem [resolvable:$true] %s415
          %421 = dma.hbm_to_vmem [thread:$0]  %s1, 512, %s416, [#allocation7], 128, 128, 8
        $region16: #{tpu_custom_call.1} parent=11 // pred_fallthru
          _
        // Predicated region
        $region17: #{tpu_custom_call.1} parent=11 // pred_check
          %p422 = pneg %p114
        $region18: #{tpu_custom_call.1} parent=11 // pred_check_branch
          %424 = sbr.rel (%p422) target = $region20
        $region19: #{tpu_custom_call.1} parent=11 // pred_region
          %s426 = ssub.s32 16, 16
          %427 = vsyncadd [#allocation7], %s426
          %s429 = sshll.u32 [#allocation8], 4
          %s430 = int_to_ptr.vmem [resolvable:$true] %s429
          %432 = dma.hbm_to_vmem [thread:$0]  %s2, 16, %s430, [#allocation7]
        $region20: #{tpu_custom_call.1} parent=11 // pred_fallthru
          _
        // Predicated region
        $region21: #{tpu_custom_call.1} parent=11 // pred_check
          %p433 = pneg %p135
        $region22: #{tpu_custom_call.1} parent=11 // pred_check_branch
          %435 = sbr.rel (%p433) target = $region24
        $region23: #{tpu_custom_call.1} parent=11 // pred_region
          %s437 = ssub.s32 512, 512
          %438 = vsyncadd [#allocation10], %s437
          %s439 = sshll.u32 [#allocation9], 4
          %s440 = int_to_ptr.vmem [resolvable:$true] %s439
          %445 = dma.hbm_to_vmem [thread:$0]  %s3, 512, %s440, [#allocation10], 128, 128, 8
        $region24: #{tpu_custom_call.1} parent=11 // pred_fallthru
          _
        // Predicated region
        $region25: #{tpu_custom_call.1} parent=11 // pred_check
          %p446 = pneg %p156
        $region26: #{tpu_custom_call.1} parent=11 // pred_check_branch
          %448 = sbr.rel (%p446) target = $region28
        $region27: #{tpu_custom_call.1} parent=11 // pred_region
          %s450 = ssub.s32 16, 16
          %451 = vsyncadd [#allocation10], %s450
          %s453 = sshll.u32 [#allocation11], 4
          %s454 = int_to_ptr.vmem [resolvable:$true] %s453
          %456 = dma.hbm_to_vmem [thread:$0]  %s4, 16, %s454, [#allocation10]
        $region28: #{tpu_custom_call.1} parent=11 // pred_fallthru
          _
        // Predicated region
        $region29: #{tpu_custom_call.1} parent=11 // pred_check
          %p457 = pneg %p177
        $region30: #{tpu_custom_call.1} parent=11 // pred_check_branch
          %459 = sbr.rel (%p457) target = $region32
        $region31: #{tpu_custom_call.1} parent=11 // pred_region
          %s461 = ssub.s32 512, 512
          %462 = vsyncadd [#allocation13], %s461
          %s463 = sshll.u32 [#allocation12], 4
          %s464 = int_to_ptr.vmem [resolvable:$true] %s463
          %469 = dma.hbm_to_vmem [thread:$0]  %s5, 512, %s464, [#allocation13], 128, 128, 8
        $region32: #{tpu_custom_call.1} parent=11 // pred_fallthru
          _
        // Predicated region
        $region33: #{tpu_custom_call.1} parent=11 // pred_check
          %p470 = pneg %p198
        $region34: #{tpu_custom_call.1} parent=11 // pred_check_branch
          %472 = sbr.rel (%p470) target = $region36
        $region35: #{tpu_custom_call.1} parent=11 // pred_region
          %s474 = ssub.s32 16, 16
          %475 = vsyncadd [#allocation13], %s474
          %s477 = sshll.u32 [#allocation14], 4
          %s478 = int_to_ptr.vmem [resolvable:$true] %s477
          %480 = dma.hbm_to_vmem [thread:$0]  %s6, 16, %s478, [#allocation13]
        $region36: #{tpu_custom_call.1} parent=11 // pred_fallthru
          _
        // Predicated region
        $region37: #{tpu_custom_call.1} parent=11 // pred_check
          %p481 = pneg %p219
        $region38: #{tpu_custom_call.1} parent=11 // pred_check_branch
          %483 = sbr.rel (%p481) target = $region40
        $region39: #{tpu_custom_call.1} parent=11 // pred_region
          %s485 = ssub.s32 16, 16
          %486 = vsyncadd [#allocation16], %s485
          %s488 = sshll.u32 [#allocation15], 4
          %s489 = int_to_ptr.vmem [resolvable:$true] %s488
          %491 = dma.hbm_to_vmem [thread:$0]  %s7, 16, %s489, [#allocation16]
        $region40: #{tpu_custom_call.1} parent=11 // pred_fallthru
          _
        // Predicated region
        $region41: #{tpu_custom_call.1} parent=11 // pred_check
          %p492 = pneg %p240
        $region42: #{tpu_custom_call.1} parent=11 // pred_check_branch
          %494 = sbr.rel (%p492) target = $region44
        $region43: #{tpu_custom_call.1} parent=11 // pred_region
          %s496 = ssub.s32 16, 16
          %497 = vsyncadd [#allocation16], %s496
          %s499 = sshll.u32 [#allocation17], 4
          %s500 = int_to_ptr.vmem [resolvable:$true] %s499
          %502 = dma.hbm_to_vmem [thread:$0]  %s8, 16, %s500, [#allocation16]
        $region44: #{tpu_custom_call.1} parent=11 // pred_fallthru
          _
        // Predicated region
        $region45: #{tpu_custom_call.1} parent=11 // pred_check
          %p503 = pneg %p261
        $region46: #{tpu_custom_call.1} parent=11 // pred_check_branch
          %505 = sbr.rel (%p503) target = $region48
        $region47: #{tpu_custom_call.1} parent=11 // pred_region
          %s507 = ssub.s32 512, 512
          %508 = vsyncadd [#allocation19], %s507
          %s509 = sshll.u32 [#allocation18], 4
          %s510 = int_to_ptr.vmem [resolvable:$true] %s509
          %515 = dma.hbm_to_vmem [thread:$0]  %s9, 512, %s510, [#allocation19], 128, 128, 8
        $region48: #{tpu_custom_call.1} parent=11 // pred_fallthru
          _
        // Predicated region
        $region49: #{tpu_custom_call.1} parent=11 // pred_check
          %p516 = pneg %p282
        $region50: #{tpu_custom_call.1} parent=11 // pred_check_branch
          %518 = sbr.rel (%p516) target = $region52
        $region51: #{tpu_custom_call.1} parent=11 // pred_region
          %s520 = ssub.s32 16, 16
          %521 = vsyncadd [#allocation19], %s520
          %s523 = sshll.u32 [#allocation20], 4
          %s524 = int_to_ptr.vmem [resolvable:$true] %s523
          %526 = dma.hbm_to_vmem [thread:$0]  %s10, 16, %s524, [#allocation19]
        $region52: #{tpu_custom_call.1} parent=11 // pred_fallthru
          _
        // Predicated region
        $region53: #{tpu_custom_call.1} parent=11 // pred_check
          %p527 = pneg %p303
        $region54: #{tpu_custom_call.1} parent=11 // pred_check_branch
          %529 = sbr.rel (%p527) target = $region56
        $region55: #{tpu_custom_call.1} parent=11 // pred_region
          %s531 = ssub.s32 2048, 2048
          %532 = vsyncadd [#allocation22], %s531
          %s533 = sshll.u32 [#allocation21], 4
          %s534 = int_to_ptr.vmem [resolvable:$true] %s533
          %539 = dma.hbm_to_vmem [thread:$0]  %s11, 2048, %s534, [#allocation22], 128, 128, 8
        $region56: #{tpu_custom_call.1} parent=11 // pred_fallthru
          _
        // Predicated region
        $region57: #{tpu_custom_call.1} parent=11 // pred_check
          %p540 = pneg %p324
        $region58: #{tpu_custom_call.1} parent=11 // pred_check_branch
          %542 = sbr.rel (%p540) target = $region60
        $region59: #{tpu_custom_call.1} parent=11 // pred_region
          %s544 = ssub.s32 16, 16
          %545 = vsyncadd [#allocation22], %s544
          %s547 = sshll.u32 [#allocation23], 4
          %s548 = int_to_ptr.vmem [resolvable:$true] %s547
          %550 = dma.hbm_to_vmem [thread:$0]  %s12, 16, %s548, [#allocation22]
        $region60: #{tpu_custom_call.1} parent=11 // pred_fallthru
          _
        // Predicated region
        $region61: #{tpu_custom_call.1} parent=11 // pred_check
          %p551 = pneg %p345
        $region62: #{tpu_custom_call.1} parent=11 // pred_check_branch
          %553 = sbr.rel (%p551) target = $region64
        $region63: #{tpu_custom_call.1} parent=11 // pred_region
          %s555 = ssub.s32 16, 16
          %556 = vsyncadd [#allocation25], %s555
          %s558 = sshll.u32 [#allocation24], 4
          %s559 = int_to_ptr.vmem [resolvable:$true] %s558
          %561 = dma.hbm_to_vmem [thread:$0]  %s13, 16, %s559, [#allocation25]
        $region64: #{tpu_custom_call.1} parent=11 // pred_fallthru
          _
        // Predicated region
        $region65: #{tpu_custom_call.1} parent=11 // pred_check
          %p562 = pneg %p366
        $region66: #{tpu_custom_call.1} parent=11 // pred_check_branch
          %564 = sbr.rel (%p562) target = $region68
        $region67: #{tpu_custom_call.1} parent=11 // pred_region
          %s566 = ssub.s32 16, 16
          %567 = vsyncadd [#allocation25], %s566
          %s569 = sshll.u32 [#allocation26], 4
          %s570 = int_to_ptr.vmem [resolvable:$true] %s569
          %572 = dma.hbm_to_vmem [thread:$0]  %s14, 16, %s570, [#allocation25]
        $region68: #{tpu_custom_call.1} parent=11 // pred_fallthru
          _
      $region12: #{tpu_custom_call.1} parent=5 // pred_fallthru
        _
      %p573 = scmp.lt.s32.totalorder %s34, 4
      // Predicated region
      $region69: #{tpu_custom_call.1} parent=5 // pred_check
        %p574 = pneg %p573
      $region70: #{tpu_custom_call.1} parent=5 // pred_check_branch
        %576 = sbr.rel (%p574) target = $region72
      $region71: #{tpu_custom_call.1} parent=5 // pred_region
        // Predicated region
        $region73: #{tpu_custom_call.1} parent=71 // pred_check
          %p577 = pneg %p66
        $region74: #{tpu_custom_call.1} parent=71 // pred_check_branch
          %579 = sbr.rel (%p577) target = $region76
        $region75: #{tpu_custom_call.1} parent=71 // pred_region
          %s580 = sand.u32 %s56, 1
          %s581 = scalar_lea.sflag [#allocation4], %s580
          %s582 = sand.u32 %s56, 1
          %s583 = smul.addr %s582, 16
          %s584 = scalar_lea.vmem [#allocation3], %s583
          %s586 = ssub.s32 256, 256
          %587 = vsyncadd %s581, %s586
          %s588 = smul.addr %s41, 2
          %s589 = smul.addr %s588, 128
          %s590 = scalar_lea.hbm %s0, %s589
          %s591 = sshll.u32 %s584, 4
          %s592 = int_to_ptr.vmem [resolvable:$true] %s591
          %597 = dma.hbm_to_vmem [thread:$0]  %s590, 256, %s592, %s581, 128, 128, 8
        $region76: #{tpu_custom_call.1} parent=71 // pred_fallthru
          _
      $region72: #{tpu_custom_call.1} parent=5 // pred_fallthru
        _
      %p598 = scmp.le.s32.totalorder 1, %s34
      %p599 = scmp.lt.s32.totalorder %s34, 5
      %p600 = pnand %p598, %p599
      %p601 = pneg %p600
      // Predicated region
      $region77: #{tpu_custom_call.1} parent=5 // pred_check
        _
      $region78: #{tpu_custom_call.1} parent=5 // pred_check_branch
        %603 = sbr.rel (%p600) target = $region80
      $region79: #{tpu_custom_call.1} parent=5 // pred_region
        %s604 = ssub.s32 %s34, 1
        %s605 = sand.u32 %s59, 1
        %s606 = scalar_lea.sflag [#allocation4], %s605
        %s607 = sand.u32 %s59, 1
        %s608 = smul.addr %s607, 16
        %s609 = scalar_lea.vmem [#allocation3], %s608
        // Predicated region
        $region81: #{tpu_custom_call.1} parent=79 // pred_check
          %p610 = pneg %p72
        $region82: #{tpu_custom_call.1} parent=79 // pred_check_branch
          %612 = sbr.rel (%p610) target = $region84
        $region83: #{tpu_custom_call.1} parent=79 // pred_region
          %613 = dma.done %s606, 256
        $region84: #{tpu_custom_call.1} parent=79 // pred_fallthru
          _
        // Predicated region
        $region85: #{tpu_custom_call.1} parent=79 // pred_check
          %p614 = pneg %p93
        $region86: #{tpu_custom_call.1} parent=79 // pred_check_branch
          %616 = sbr.rel (%p614) target = $region88
        $region87: #{tpu_custom_call.1} parent=79 // pred_region
          %617 = dma.done [#allocation7], 512
        $region88: #{tpu_custom_call.1} parent=79 // pred_fallthru
          _
        // Predicated region
        $region89: #{tpu_custom_call.1} parent=79 // pred_check
          %p618 = pneg %p114
        $region90: #{tpu_custom_call.1} parent=79 // pred_check_branch
          %620 = sbr.rel (%p618) target = $region92
        $region91: #{tpu_custom_call.1} parent=79 // pred_region
          %621 = dma.done [#allocation7], 16
        $region92: #{tpu_custom_call.1} parent=79 // pred_fallthru
          _
        // Predicated region
        $region93: #{tpu_custom_call.1} parent=79 // pred_check
          %p622 = pneg %p135
        $region94: #{tpu_custom_call.1} parent=79 // pred_check_branch
          %624 = sbr.rel (%p622) target = $region96
        $region95: #{tpu_custom_call.1} parent=79 // pred_region
          %625 = dma.done [#allocation10], 512
        $region96: #{tpu_custom_call.1} parent=79 // pred_fallthru
          _
        // Predicated region
        $region97: #{tpu_custom_call.1} parent=79 // pred_check
          %p626 = pneg %p156
        $region98: #{tpu_custom_call.1} parent=79 // pred_check_branch
          %628 = sbr.rel (%p626) target = $region100
        $region99: #{tpu_custom_call.1} parent=79 // pred_region
          %629 = dma.done [#allocation10], 16
        $region100: #{tpu_custom_call.1} parent=79 // pred_fallthru
          _
        // Predicated region
        $region101: #{tpu_custom_call.1} parent=79 // pred_check
          %p630 = pneg %p177
        $region102: #{tpu_custom_call.1} parent=79 // pred_check_branch
          %632 = sbr.rel (%p630) target = $region104
        $region103: #{tpu_custom_call.1} parent=79 // pred_region
          %633 = dma.done [#allocation13], 512
        $region104: #{tpu_custom_call.1} parent=79 // pred_fallthru
          _
        // Predicated region
        $region105: #{tpu_custom_call.1} parent=79 // pred_check
          %p634 = pneg %p198
        $region106: #{tpu_custom_call.1} parent=79 // pred_check_branch
          %636 = sbr.rel (%p634) target = $region108
        $region107: #{tpu_custom_call.1} parent=79 // pred_region
          %637 = dma.done [#allocation13], 16
        $region108: #{tpu_custom_call.1} parent=79 // pred_fallthru
          _
        // Predicated region
        $region109: #{tpu_custom_call.1} parent=79 // pred_check
          %p638 = pneg %p219
        $region110: #{tpu_custom_call.1} parent=79 // pred_check_branch
          %640 = sbr.rel (%p638) target = $region112
        $region111: #{tpu_custom_call.1} parent=79 // pred_region
          %641 = dma.done [#allocation16], 16
        $region112: #{tpu_custom_call.1} parent=79 // pred_fallthru
          _
        // Predicated region
        $region113: #{tpu_custom_call.1} parent=79 // pred_check
          %p642 = pneg %p240
        $region114: #{tpu_custom_call.1} parent=79 // pred_check_branch
          %644 = sbr.rel (%p642) target = $region116
        $region115: #{tpu_custom_call.1} parent=79 // pred_region
          %645 = dma.done [#allocation16], 16
        $region116: #{tpu_custom_call.1} parent=79 // pred_fallthru
          _
        // Predicated region
        $region117: #{tpu_custom_call.1} parent=79 // pred_check
          %p646 = pneg %p261
        $region118: #{tpu_custom_call.1} parent=79 // pred_check_branch
          %648 = sbr.rel (%p646) target = $region120
        $region119: #{tpu_custom_call.1} parent=79 // pred_region
          %649 = dma.done [#allocation19], 512
        $region120: #{tpu_custom_call.1} parent=79 // pred_fallthru
          _
        // Predicated region
        $region121: #{tpu_custom_call.1} parent=79 // pred_check
          %p650 = pneg %p282
        $region122: #{tpu_custom_call.1} parent=79 // pred_check_branch
          %652 = sbr.rel (%p650) target = $region124
        $region123: #{tpu_custom_call.1} parent=79 // pred_region
          %653 = dma.done [#allocation19], 16
        $region124: #{tpu_custom_call.1} parent=79 // pred_fallthru
          _
        // Predicated region
        $region125: #{tpu_custom_call.1} parent=79 // pred_check
          %p654 = pneg %p303
        $region126: #{tpu_custom_call.1} parent=79 // pred_check_branch
          %656 = sbr.rel (%p654) target = $region128
        $region127: #{tpu_custom_call.1} parent=79 // pred_region
          %657 = dma.done [#allocation22], 2048
        $region128: #{tpu_custom_call.1} parent=79 // pred_fallthru
          _
        // Predicated region
        $region129: #{tpu_custom_call.1} parent=79 // pred_check
          %p658 = pneg %p324
        $region130: #{tpu_custom_call.1} parent=79 // pred_check_branch
          %660 = sbr.rel (%p658) target = $region132
        $region131: #{tpu_custom_call.1} parent=79 // pred_region
          %661 = dma.done [#allocation22], 16
        $region132: #{tpu_custom_call.1} parent=79 // pred_fallthru
          _
        // Predicated region
        $region133: #{tpu_custom_call.1} parent=79 // pred_check
          %p662 = pneg %p345
        $region134: #{tpu_custom_call.1} parent=79 // pred_check_branch
          %664 = sbr.rel (%p662) target = $region136
        $region135: #{tpu_custom_call.1} parent=79 // pred_region
          %665 = dma.done [#allocation25], 16
        $region136: #{tpu_custom_call.1} parent=79 // pred_fallthru
          _
        // Predicated region
        $region137: #{tpu_custom_call.1} parent=79 // pred_check
          %p666 = pneg %p366
        $region138: #{tpu_custom_call.1} parent=79 // pred_check_branch
          %668 = sbr.rel (%p666) target = $region140
        $region139: #{tpu_custom_call.1} parent=79 // pred_region
          %669 = dma.done [#allocation25], 16
        $region140: #{tpu_custom_call.1} parent=79 // pred_fallthru
          _
        %s670 = sand.u32 %s59, 1
        %s671 = scalar_lea.sflag [#allocation4], %s670
        %s672 = sand.u32 %s59, 1
        %s673 = smul.addr %s672, 16
        %s674 = scalar_lea.vmem [#allocation3], %s673
        %p675 = pneg %p72
        %p676 = pneg %p69
        %p677 = pneg %p93
        %p678 = pneg %p90
        %p679 = pneg %p114
        %p680 = pneg %p111
        %p681 = pneg %p135
        %p682 = pneg %p132
        %p683 = pneg %p156
        %p684 = pneg %p153
        %p685 = pneg %p177
        %p686 = pneg %p174
        %p687 = pneg %p198
        %p688 = pneg %p195
        %p689 = pneg %p219
        %p690 = pneg %p216
        %p691 = pneg %p240
        %p692 = pneg %p237
        %p693 = pneg %p261
        %p694 = pneg %p258
        %p695 = pneg %p282
        %p696 = pneg %p279
        %p697 = pneg %p303
        %p698 = pneg %p300
        %p699 = pneg %p324
        %p700 = pneg %p321
        %p701 = pneg %p345
        %p702 = pneg %p342
        %p703 = pneg %p366
        %p704 = pneg %p363
        %p705 = pneg %p394
        %p706 = pneg %p391
        %s707 = sand.u32 %s381, 1
        %s708 = scalar_lea.sflag [#allocation5], %s707
        %s709 = sand.u32 %s381, 1
        %s710 = smul.addr %s709, 8
        %s711 = scalar_lea.vmem [#allocation27], %s710
        %p712 = scmp.eq.s32.totalorder %s44, 0
        // Predicated region
        $region141: #{tpu_custom_call.1} parent=79 // pred_check
          %p713 = pneg %p712
        $region142: #{tpu_custom_call.1} parent=79 // pred_check_branch
          %715 = sbr.rel (%p713) target = $region144
        $region143: #{tpu_custom_call.1} parent=79 // pred_region
          %v716 = vld [vmem:[%s609] sm:$0xff]
          %v717 = vld [vmem:[%s609 + $0x8] sm:$0xff]
          %v718 = vld [vmem:[#allocation9] sm:$0xff]
          %v719 = vld [vmem:[#allocation9 + $0x8] sm:$0xff]
          %v720 = vld [vmem:[#allocation9 + $0x10] sm:$0xff]
          %v721 = vld [vmem:[#allocation9 + $0x18] sm:$0xff]
          %v722 = vld [vmem:[#allocation11] sm:$0x1]
          %v724 = vlaneseq
          %v725 = vshrl.u32 %v724, 7
          %v726 = vsub.s32 0, %v725
          %v727 = vrot.slane %v722, %v726
          %vm729 = vcmask 261120
          %v731 = vsel %vm729, %v716, 0
          %v734 = vsel %vm729, %v717, 0
          %736 = vmatprep.subr.mxu0 0.0
          %737 = vmatpush1.msra.mxu0 %v718
          %738 = vmatprep.subr.mxu0 0.0
          %739 = vmatpush1.msra.mxu0 %v719
          %740 = vmatprep.subr.mxu0 0.0
          %741 = vmatpush1.msra.mxu0 %v720
          %742 = vmatprep.subr.mxu0 0.0
          %743 = vmatpush1.msra.mxu0 %v721
          %744 = vmatprep.subr.mxu0 0.0
          %745 = vmatpush1.msra.mxu0 0.0
          %746 = vmatprep.subr.mxu0 0.0
          %747 = vmatpush1.msra.mxu0 0.0
          %748 = vmatprep.subr.mxu0 0.0
          %749 = vmatpush1.msra.mxu0 0.0
          %750 = vmatprep.subr.mxu0 0.0
          %751 = vmatpush1.msra.mxu0 0.0
          %752 = vmatprep.subr.mxu0 0.0
          %753 = vmatpush1.msra.mxu0 0.0
          %754 = vmatprep.subr.mxu0 0.0
          %755 = vmatpush1.msra.mxu0 0.0
          %756 = vmatprep.subr.mxu0 0.0
          %757 = vmatpush1.msra.mxu0 0.0
          %758 = vmatprep.subr.mxu0 0.0
          %759 = vmatpush1.msra.mxu0 0.0
          %760 = vmatprep.subr.mxu0 0.0
          %761 = vmatpush1.msra.mxu0 0.0
          %762 = vmatprep.subr.mxu0 0.0
          %763 = vmatpush1.msra.mxu0 0.0
          %764 = vmatprep.subr.mxu0 0.0
          %765 = vmatpush1.msra.mxu0 0.0
          %766 = vmatprep.subr.mxu0 0.0
          %767 = vmatpush1.msra.mxu0 0.0
          %768 = vmatprep.subr.mxu0 0.0
          %769 = vmatpush1.msra.mxu0 0.0
          %770 = vmatprep.subr.mxu0 0.0
          %771 = vmatpush1.msra.mxu0 0.0
          %772 = vmatprep.subr.mxu0 0.0
          %773 = vmatpush1.msra.mxu0 0.0
          %774 = vmatprep.subr.mxu0 0.0
          %775 = vmatpush1.msra.mxu0 0.0
          %776 = vmatprep.subr.mxu0 0.0
          %777 = vmatpush1.msra.mxu0 0.0
          %778 = vmatprep.subr.mxu0 0.0
          %779 = vmatpush1.msra.mxu0 0.0
          %780 = vmatprep.subr.mxu0 0.0
          %781 = vmatpush1.msra.mxu0 0.0
          %782 = vmatprep.subr.mxu0 0.0
          %783 = vmatpush1.msra.mxu0 0.0
          %784 = vmatprep.subr.mxu0 0.0
          %785 = vmatpush1.msra.mxu0 0.0
          %786 = vmatprep.subr.mxu0 0.0
          %787 = vmatpush1.msra.mxu0 0.0
          %788 = vmatprep.subr.mxu0 0.0
          %789 = vmatpush1.msra.mxu0 0.0
          %790 = vmatprep.subr.mxu0 0.0
          %791 = vmatpush1.msra.mxu0 0.0
          %792 = vmatprep.subr.mxu0 0.0
          %793 = vmatpush1.msra.mxu0 0.0
          %794 = vmatprep.subr.mxu0 0.0
          %795 = vmatpush1.msra.mxu0 0.0
          %796 = vmatprep.subr.mxu0 0.0
          %797 = vmatpush1.msra.mxu0 0.0
          %798 = vmatprep.subr.mxu0 0.0
          %799 = vmatpush1.msra.mxu0 0.0
          %800 = vmatprep.mubr.f32.mxu0 0.0
          %801 = vmatmul.mubr.f32.gmra.mrb[0].mxu0 %v731
          %v802 = vpop.f32.mrb[0].mxu0
          %v803 = vadd.f32 %v727, %v802
          %v804 = vpop.f32.mrb[0].mxu0
          %805 = vmatprep.mubr.f32.mxu0 0.0
          %806 = vmatmul.mubr.f32.gmra.mrb[0].mxu0 %v734
          %v807 = vpop.f32.mrb[0].mxu0
          %v808 = vadd.f32 %v727, %v807
          %v809 = vpop.f32.mrb[0].mxu0
          %810 = vdwg.mxu0
          %vm811 = vcmask 523264
          %812 = vst.msk [vmem:[#allocation2] sm:$0xff] %vm811, %v803
          %813 = vst.msk [vmem:[#allocation2 + $0x8] sm:$0xff] %vm811, %v808
        $region144: #{tpu_custom_call.1} parent=79 // pred_fallthru
          _
        %s814 = smul.u32 %s44, 8
        %s815 = scalar_lea.vmem %s609, %s814 [#allocation3]
        %v816 = vld [vmem:[%s815] sm:$0xff]
        %v817 = vld [vmem:[#allocation6] sm:$0xff]
        %v818 = vld [vmem:[#allocation6 + $0x8] sm:$0xff]
        %v819 = vld [vmem:[#allocation6 + $0x10] sm:$0xff]
        %v820 = vld [vmem:[#allocation6 + $0x18] sm:$0xff]
        %v821 = vld [vmem:[#allocation8] sm:$0x1]
        %v823 = vlaneseq
        %v824 = vshrl.u32 %v823, 7
        %v825 = vsub.s32 0, %v824
        %v826 = vrot.slane %v821, %v825
        %vm828 = vcmask 261120
        %v830 = vsel %vm828, %v816, 0
        %832 = vmatprep.subr.mxu0 0.0
        %833 = vmatpush1.msra.mxu0 %v817
        %834 = vmatprep.subr.mxu0 0.0
        %835 = vmatpush1.msra.mxu0 %v818
        %836 = vmatprep.subr.mxu0 0.0
        %837 = vmatpush1.msra.mxu0 %v819
        %838 = vmatprep.subr.mxu0 0.0
        %839 = vmatpush1.msra.mxu0 %v820
        %840 = vmatprep.subr.mxu0 0.0
        %841 = vmatpush1.msra.mxu0 0.0
        %842 = vmatprep.subr.mxu0 0.0
        %843 = vmatpush1.msra.mxu0 0.0
        %844 = vmatprep.subr.mxu0 0.0
        %845 = vmatpush1.msra.mxu0 0.0
        %846 = vmatprep.subr.mxu0 0.0
        %847 = vmatpush1.msra.mxu0 0.0
        %848 = vmatprep.subr.mxu0 0.0
        %849 = vmatpush1.msra.mxu0 0.0
        %850 = vmatprep.subr.mxu0 0.0
        %851 = vmatpush1.msra.mxu0 0.0
        %852 = vmatprep.subr.mxu0 0.0
        %853 = vmatpush1.msra.mxu0 0.0
        %854 = vmatprep.subr.mxu0 0.0
        %855 = vmatpush1.msra.mxu0 0.0
        %856 = vmatprep.subr.mxu0 0.0
        %857 = vmatpush1.msra.mxu0 0.0
        %858 = vmatprep.subr.mxu0 0.0
        %859 = vmatpush1.msra.mxu0 0.0
        %860 = vmatprep.subr.mxu0 0.0
        %861 = vmatpush1.msra.mxu0 0.0
        %862 = vmatprep.subr.mxu0 0.0
        %863 = vmatpush1.msra.mxu0 0.0
        %864 = vmatprep.subr.mxu0 0.0
        %865 = vmatpush1.msra.mxu0 0.0
        %866 = vmatprep.subr.mxu0 0.0
        %867 = vmatpush1.msra.mxu0 0.0
        %868 = vmatprep.subr.mxu0 0.0
        %869 = vmatpush1.msra.mxu0 0.0
        %870 = vmatprep.subr.mxu0 0.0
        %871 = vmatpush1.msra.mxu0 0.0
        %872 = vmatprep.subr.mxu0 0.0
        %873 = vmatpush1.msra.mxu0 0.0
        %874 = vmatprep.subr.mxu0 0.0
        %875 = vmatpush1.msra.mxu0 0.0
        %876 = vmatprep.subr.mxu0 0.0
        %877 = vmatpush1.msra.mxu0 0.0
        %878 = vmatprep.subr.mxu0 0.0
        %879 = vmatpush1.msra.mxu0 0.0
        %880 = vmatprep.subr.mxu0 0.0
        %881 = vmatpush1.msra.mxu0 0.0
        %882 = vmatprep.subr.mxu0 0.0
        %883 = vmatpush1.msra.mxu0 0.0
        %884 = vmatprep.subr.mxu0 0.0
        %885 = vmatpush1.msra.mxu0 0.0
        %886 = vmatprep.subr.mxu0 0.0
        %887 = vmatpush1.msra.mxu0 0.0
        %888 = vmatprep.subr.mxu0 0.0
        %889 = vmatpush1.msra.mxu0 0.0
        %890 = vmatprep.subr.mxu0 0.0
        %891 = vmatpush1.msra.mxu0 0.0
        %892 = vmatprep.subr.mxu0 0.0
        %893 = vmatpush1.msra.mxu0 0.0
        %894 = vmatprep.subr.mxu0 0.0
        %895 = vmatpush1.msra.mxu0 0.0
        %896 = vmatprep.mubr.f32.mxu0 0.0
        %897 = vmatmul.mubr.f32.gmra.mrb[0].mxu0 %v830
        %v898 = vpop.f32.mrb[0].mxu0
        %v899 = vadd.f32 %v826, %v898
        %v900 = vpop.f32.mrb[0].mxu0
        %901 = vdwg.mxu0
        %v902 = vld [vmem:[#allocation2] sm:$0xff]
        %v903 = vld [vmem:[#allocation2 + $0x8] sm:$0xff]
        %vm904 = vcmask 64512
        %v906 = vsel %vm904, %v899, 0
        %v909 = vsel %vm904, %v902, 0
        %v912 = vsel %vm904, %v903, 0
        %914 = vmatprep.subr.mxu0 0.0
        %915 = vmatpush1.xpose.msra.mxu0 %v909
        %916 = vmatprep.subr.mxu0 0.0
        %917 = vmatpush1.xpose.msra.mxu0 %v912
        %918 = vmatprep.subr.mxu0 0.0
        %919 = vmatpush1.xpose.msra.mxu0 0.0
        %920 = vmatprep.subr.mxu0 0.0
        %921 = vmatpush1.xpose.msra.mxu0 0.0
        %922 = vmatprep.subr.mxu0 0.0
        %923 = vmatpush1.xpose.msra.mxu0 0.0
        %924 = vmatprep.subr.mxu0 0.0
        %925 = vmatpush1.xpose.msra.mxu0 0.0
        %926 = vmatprep.subr.mxu0 0.0
        %927 = vmatpush1.xpose.msra.mxu0 0.0
        %928 = vmatprep.subr.mxu0 0.0
        %929 = vmatpush1.xpose.msra.mxu0 0.0
        %930 = vmatprep.subr.mxu0 0.0
        %931 = vmatpush1.xpose.msra.mxu0 0.0
        %932 = vmatprep.subr.mxu0 0.0
        %933 = vmatpush1.xpose.msra.mxu0 0.0
        %934 = vmatprep.subr.mxu0 0.0
        %935 = vmatpush1.xpose.msra.mxu0 0.0
        %936 = vmatprep.subr.mxu0 0.0
        %937 = vmatpush1.xpose.msra.mxu0 0.0
        %938 = vmatprep.subr.mxu0 0.0
        %939 = vmatpush1.xpose.msra.mxu0 0.0
        %940 = vmatprep.subr.mxu0 0.0
        %941 = vmatpush1.xpose.msra.mxu0 0.0
        %942 = vmatprep.subr.mxu0 0.0
        %943 = vmatpush1.xpose.msra.mxu0 0.0
        %944 = vmatprep.subr.mxu0 0.0
        %945 = vmatpush1.xpose.msra.mxu0 0.0
        %946 = vmatprep.subr.mxu0 0.0
        %947 = vmatpush1.xpose.msra.mxu0 0.0
        %948 = vmatprep.subr.mxu0 0.0
        %949 = vmatpush1.xpose.msra.mxu0 0.0
        %950 = vmatprep.subr.mxu0 0.0
        %951 = vmatpush1.xpose.msra.mxu0 0.0
        %952 = vmatprep.subr.mxu0 0.0
        %953 = vmatpush1.xpose.msra.mxu0 0.0
        %954 = vmatprep.subr.mxu0 0.0
        %955 = vmatpush1.xpose.msra.mxu0 0.0
        %956 = vmatprep.subr.mxu0 0.0
        %957 = vmatpush1.xpose.msra.mxu0 0.0
        %958 = vmatprep.subr.mxu0 0.0
        %959 = vmatpush1.xpose.msra.mxu0 0.0
        %960 = vmatprep.subr.mxu0 0.0
        %961 = vmatpush1.xpose.msra.mxu0 0.0
        %962 = vmatprep.subr.mxu0 0.0
        %963 = vmatpush1.xpose.msra.mxu0 0.0
        %964 = vmatprep.subr.mxu0 0.0
        %965 = vmatpush1.xpose.msra.mxu0 0.0
        %966 = vmatprep.subr.mxu0 0.0
        %967 = vmatpush1.xpose.msra.mxu0 0.0
        %968 = vmatprep.subr.mxu0 0.0
        %969 = vmatpush1.xpose.msra.mxu0 0.0
        %970 = vmatprep.subr.mxu0 0.0
        %971 = vmatpush1.xpose.msra.mxu0 0.0
        %972 = vmatprep.subr.mxu0 0.0
        %973 = vmatpush1.xpose.msra.mxu0 0.0
        %974 = vmatprep.subr.mxu0 0.0
        %975 = vmatpush1.xpose.msra.mxu0 0.0
        %976 = vmatprep.subr.mxu0 0.0
        %977 = vmatpush1.xpose.msra.mxu0 0.0
        %978 = vmatprep.mubr.f32.mxu0 0.0
        %979 = vmatmul.mubr.f32.gmra.mrb[0].mxu0 %v906
        %v980 = vpop.f32.mrb[0].mxu0
        %v981 = vadd.f32 0.0, %v980
        %v982 = vpop.f32.mrb[0].mxu0
        %983 = vdwg.mxu0
        %vm984 = vcmask 130048
        %v985 = vsel %vm984, %v981, -inf
        %986 = vmax.xlane.f32.xlu0 %v985
        %v987 = vpop.xlane.xlu0 %986
        %v988 = vsub.f32 %v981, %v987
        %v989 = vmul.f32 %v988, 1.442695
        %v990 = vpow.pop %v989
        %v991 = vsel %vm984, %v990, 0.0
        %992 = vadd.xlane.f32.xlu0 %v991
        %v993 = vpop.xlane.xlu0 %992
        %v994 = vrcp.pop %v993
        %v995 = vmul.f32 %v990, %v994
        %996 = vrot.lane.b32.xlu0 %v902, 96
        %v997 = vpop.permute.xlu0 %996
        %998 = vrot.lane.b32.xlu0 %v903, 96
        %v999 = vpop.permute.xlu0 %998
        %v1003 = vsel %vm984, %v995, 0
        %1005 = vmatprep.subr.mxu0 0.0
        %1006 = vmatpush1.msra.mxu0 %v997
        %1007 = vmatprep.subr.mxu0 0.0
        %1008 = vmatpush1.msra.mxu0 %v999
        %1009 = vmatprep.subr.mxu0 0.0
        %1010 = vmatpush1.msra.mxu0 0.0
        %1011 = vmatprep.subr.mxu0 0.0
        %1012 = vmatpush1.msra.mxu0 0.0
        %1013 = vmatprep.subr.mxu0 0.0
        %1014 = vmatpush1.msra.mxu0 0.0
        %1015 = vmatprep.subr.mxu0 0.0
        %1016 = vmatpush1.msra.mxu0 0.0
        %1017 = vmatprep.subr.mxu0 0.0
        %1018 = vmatpush1.msra.mxu0 0.0
        %1019 = vmatprep.subr.mxu0 0.0
        %1020 = vmatpush1.msra.mxu0 0.0
        %1021 = vmatprep.subr.mxu0 0.0
        %1022 = vmatpush1.msra.mxu0 0.0
        %1023 = vmatprep.subr.mxu0 0.0
        %1024 = vmatpush1.msra.mxu0 0.0
        %1025 = vmatprep.subr.mxu0 0.0
        %1026 = vmatpush1.msra.mxu0 0.0
        %1027 = vmatprep.subr.mxu0 0.0
        %1028 = vmatpush1.msra.mxu0 0.0
        %1029 = vmatprep.subr.mxu0 0.0
        %1030 = vmatpush1.msra.mxu0 0.0
        %1031 = vmatprep.subr.mxu0 0.0
        %1032 = vmatpush1.msra.mxu0 0.0
        %1033 = vmatprep.subr.mxu0 0.0
        %1034 = vmatpush1.msra.mxu0 0.0
        %1035 = vmatprep.subr.mxu0 0.0
        %1036 = vmatpush1.msra.mxu0 0.0
        %1037 = vmatprep.subr.mxu0 0.0
        %1038 = vmatpush1.msra.mxu0 0.0
        %1039 = vmatprep.subr.mxu0 0.0
        %1040 = vmatpush1.msra.mxu0 0.0
        %1041 = vmatprep.subr.mxu0 0.0
        %1042 = vmatpush1.msra.mxu0 0.0
        %1043 = vmatprep.subr.mxu0 0.0
        %1044 = vmatpush1.msra.mxu0 0.0
        %1045 = vmatprep.subr.mxu0 0.0
        %1046 = vmatpush1.msra.mxu0 0.0
        %1047 = vmatprep.subr.mxu0 0.0
        %1048 = vmatpush1.msra.mxu0 0.0
        %1049 = vmatprep.subr.mxu0 0.0
        %1050 = vmatpush1.msra.mxu0 0.0
        %1051 = vmatprep.subr.mxu0 0.0
        %1052 = vmatpush1.msra.mxu0 0.0
        %1053 = vmatprep.subr.mxu0 0.0
        %1054 = vmatpush1.msra.mxu0 0.0
        %1055 = vmatprep.subr.mxu0 0.0
        %1056 = vmatpush1.msra.mxu0 0.0
        %1057 = vmatprep.subr.mxu0 0.0
        %1058 = vmatpush1.msra.mxu0 0.0
        %1059 = vmatprep.subr.mxu0 0.0
        %1060 = vmatpush1.msra.mxu0 0.0
        %1061 = vmatprep.subr.mxu0 0.0
        %1062 = vmatpush1.msra.mxu0 0.0
        %1063 = vmatprep.subr.mxu0 0.0
        %1064 = vmatpush1.msra.mxu0 0.0
        %1065 = vmatprep.subr.mxu0 0.0
        %1066 = vmatpush1.msra.mxu0 0.0
        %1067 = vmatprep.subr.mxu0 0.0
        %1068 = vmatpush1.msra.mxu0 0.0
        %1069 = vmatprep.mubr.f32.mxu0 0.0
        %1070 = vmatmul.mubr.f32.gmra.mrb[0].mxu0 %v1003
        %v1071 = vpop.f32.mrb[0].mxu0
        %v1072 = vadd.f32 0.0, %v1071
        %v1073 = vpop.f32.mrb[0].mxu0
        %1074 = vdwg.mxu0
        %1075 = vrot.lane.b32.xlu0 %v899, 120
        %v1076 = vpop.permute.xlu0 %1075
        %1077 = vrot.lane.b32.xlu0 %v902, 120
        %v1078 = vpop.permute.xlu0 %1077
        %1079 = vrot.lane.b32.xlu0 %v903, 120
        %v1080 = vpop.permute.xlu0 %1079
        %v1081 = vsel %vm904, %v1076, 0
        %v1083 = vsel %vm904, %v1078, 0
        %v1085 = vsel %vm904, %v1080, 0
        %1087 = vmatprep.subr.mxu0 0.0
        %1088 = vmatpush1.xpose.msra.mxu0 %v1083
        %1089 = vmatprep.subr.mxu0 0.0
        %1090 = vmatpush1.xpose.msra.mxu0 %v1085
        %1091 = vmatprep.subr.mxu0 0.0
        %1092 = vmatpush1.xpose.msra.mxu0 0.0
        %1093 = vmatprep.subr.mxu0 0.0
        %1094 = vmatpush1.xpose.msra.mxu0 0.0
        %1095 = vmatprep.subr.mxu0 0.0
        %1096 = vmatpush1.xpose.msra.mxu0 0.0
        %1097 = vmatprep.subr.mxu0 0.0
        %1098 = vmatpush1.xpose.msra.mxu0 0.0
        %1099 = vmatprep.subr.mxu0 0.0
        %1100 = vmatpush1.xpose.msra.mxu0 0.0
        %1101 = vmatprep.subr.mxu0 0.0
        %1102 = vmatpush1.xpose.msra.mxu0 0.0
        %1103 = vmatprep.subr.mxu0 0.0
        %1104 = vmatpush1.xpose.msra.mxu0 0.0
        %1105 = vmatprep.subr.mxu0 0.0
        %1106 = vmatpush1.xpose.msra.mxu0 0.0
        %1107 = vmatprep.subr.mxu0 0.0
        %1108 = vmatpush1.xpose.msra.mxu0 0.0
        %1109 = vmatprep.subr.mxu0 0.0
        %1110 = vmatpush1.xpose.msra.mxu0 0.0
        %1111 = vmatprep.subr.mxu0 0.0
        %1112 = vmatpush1.xpose.msra.mxu0 0.0
        %1113 = vmatprep.subr.mxu0 0.0
        %1114 = vmatpush1.xpose.msra.mxu0 0.0
        %1115 = vmatprep.subr.mxu0 0.0
        %1116 = vmatpush1.xpose.msra.mxu0 0.0
        %1117 = vmatprep.subr.mxu0 0.0
        %1118 = vmatpush1.xpose.msra.mxu0 0.0
        %1119 = vmatprep.subr.mxu0 0.0
        %1120 = vmatpush1.xpose.msra.mxu0 0.0
        %1121 = vmatprep.subr.mxu0 0.0
        %1122 = vmatpush1.xpose.msra.mxu0 0.0
        %1123 = vmatprep.subr.mxu0 0.0
        %1124 = vmatpush1.xpose.msra.mxu0 0.0
        %1125 = vmatprep.subr.mxu0 0.0
        %1126 = vmatpush1.xpose.msra.mxu0 0.0
        %1127 = vmatprep.subr.mxu0 0.0
        %1128 = vmatpush1.xpose.msra.mxu0 0.0
        %1129 = vmatprep.subr.mxu0 0.0
        %1130 = vmatpush1.xpose.msra.mxu0 0.0
        %1131 = vmatprep.subr.mxu0 0.0
        %1132 = vmatpush1.xpose.msra.mxu0 0.0
        %1133 = vmatprep.subr.mxu0 0.0
        %1134 = vmatpush1.xpose.msra.mxu0 0.0
        %1135 = vmatprep.subr.mxu0 0.0
        %1136 = vmatpush1.xpose.msra.mxu0 0.0
        %1137 = vmatprep.subr.mxu0 0.0
        %1138 = vmatpush1.xpose.msra.mxu0 0.0
        %1139 = vmatprep.subr.mxu0 0.0
        %1140 = vmatpush1.xpose.msra.mxu0 0.0
        %1141 = vmatprep.subr.mxu0 0.0
        %1142 = vmatpush1.xpose.msra.mxu0 0.0
        %1143 = vmatprep.subr.mxu0 0.0
        %1144 = vmatpush1.xpose.msra.mxu0 0.0
        %1145 = vmatprep.subr.mxu0 0.0
        %1146 = vmatpush1.xpose.msra.mxu0 0.0
        %1147 = vmatprep.subr.mxu0 0.0
        %1148 = vmatpush1.xpose.msra.mxu0 0.0
        %1149 = vmatprep.subr.mxu0 0.0
        %1150 = vmatpush1.xpose.msra.mxu0 0.0
        %1151 = vmatprep.mubr.f32.mxu0 0.0
        %1152 = vmatmul.mubr.f32.gmra.mrb[0].mxu0 %v1081
        %v1153 = vpop.f32.mrb[0].mxu0
        %v1154 = vadd.f32 0.0, %v1153
        %v1155 = vpop.f32.mrb[0].mxu0
        %1156 = vdwg.mxu0
        %v1157 = vsel %vm984, %v1154, -inf
        %1158 = vmax.xlane.f32.xlu0 %v1157
        %v1159 = vpop.xlane.xlu0 %1158
        %v1160 = vsub.f32 %v1154, %v1159
        %v1161 = vmul.f32 %v1160, 1.442695
        %v1162 = vpow.pop %v1161
        %v1163 = vsel %vm984, %v1162, 0.0
        %1164 = vadd.xlane.f32.xlu0 %v1163
        %v1165 = vpop.xlane.xlu0 %1164
        %v1166 = vrcp.pop %v1165
        %v1167 = vmul.f32 %v1162, %v1166
        %1168 = vrot.lane.b32.xlu0 %v902, 88
        %v1169 = vpop.permute.xlu0 %1168
        %1170 = vrot.lane.b32.xlu0 %v903, 88
        %v1171 = vpop.permute.xlu0 %1170
        %v1175 = vsel %vm984, %v1167, 0
        %1177 = vmatprep.subr.mxu0 0.0
        %1178 = vmatpush1.msra.mxu0 %v1169
        %1179 = vmatprep.subr.mxu0 0.0
        %1180 = vmatpush1.msra.mxu0 %v1171
        %1181 = vmatprep.subr.mxu0 0.0
        %1182 = vmatpush1.msra.mxu0 0.0
        %1183 = vmatprep.subr.mxu0 0.0
        %1184 = vmatpush1.msra.mxu0 0.0
        %1185 = vmatprep.subr.mxu0 0.0
        %1186 = vmatpush1.msra.mxu0 0.0
        %1187 = vmatprep.subr.mxu0 0.0
        %1188 = vmatpush1.msra.mxu0 0.0
        %1189 = vmatprep.subr.mxu0 0.0
        %1190 = vmatpush1.msra.mxu0 0.0
        %1191 = vmatprep.subr.mxu0 0.0
        %1192 = vmatpush1.msra.mxu0 0.0
        %1193 = vmatprep.subr.mxu0 0.0
        %1194 = vmatpush1.msra.mxu0 0.0
        %1195 = vmatprep.subr.mxu0 0.0
        %1196 = vmatpush1.msra.mxu0 0.0
        %1197 = vmatprep.subr.mxu0 0.0
        %1198 = vmatpush1.msra.mxu0 0.0
        %1199 = vmatprep.subr.mxu0 0.0
        %1200 = vmatpush1.msra.mxu0 0.0
        %1201 = vmatprep.subr.mxu0 0.0
        %1202 = vmatpush1.msra.mxu0 0.0
        %1203 = vmatprep.subr.mxu0 0.0
        %1204 = vmatpush1.msra.mxu0 0.0
        %1205 = vmatprep.subr.mxu0 0.0
        %1206 = vmatpush1.msra.mxu0 0.0
        %1207 = vmatprep.subr.mxu0 0.0
        %1208 = vmatpush1.msra.mxu0 0.0
        %1209 = vmatprep.subr.mxu0 0.0
        %1210 = vmatpush1.msra.mxu0 0.0
        %1211 = vmatprep.subr.mxu0 0.0
        %1212 = vmatpush1.msra.mxu0 0.0
        %1213 = vmatprep.subr.mxu0 0.0
        %1214 = vmatpush1.msra.mxu0 0.0
        %1215 = vmatprep.subr.mxu0 0.0
        %1216 = vmatpush1.msra.mxu0 0.0
        %1217 = vmatprep.subr.mxu0 0.0
        %1218 = vmatpush1.msra.mxu0 0.0
        %1219 = vmatprep.subr.mxu0 0.0
        %1220 = vmatpush1.msra.mxu0 0.0
        %1221 = vmatprep.subr.mxu0 0.0
        %1222 = vmatpush1.msra.mxu0 0.0
        %1223 = vmatprep.subr.mxu0 0.0
        %1224 = vmatpush1.msra.mxu0 0.0
        %1225 = vmatprep.subr.mxu0 0.0
        %1226 = vmatpush1.msra.mxu0 0.0
        %1227 = vmatprep.subr.mxu0 0.0
        %1228 = vmatpush1.msra.mxu0 0.0
        %1229 = vmatprep.subr.mxu0 0.0
        %1230 = vmatpush1.msra.mxu0 0.0
        %1231 = vmatprep.subr.mxu0 0.0
        %1232 = vmatpush1.msra.mxu0 0.0
        %1233 = vmatprep.subr.mxu0 0.0
        %1234 = vmatpush1.msra.mxu0 0.0
        %1235 = vmatprep.subr.mxu0 0.0
        %1236 = vmatpush1.msra.mxu0 0.0
        %1237 = vmatprep.subr.mxu0 0.0
        %1238 = vmatpush1.msra.mxu0 0.0
        %1239 = vmatprep.subr.mxu0 0.0
        %1240 = vmatpush1.msra.mxu0 0.0
        %1241 = vmatprep.mubr.f32.mxu0 0.0
        %1242 = vmatmul.mubr.f32.gmra.mrb[0].mxu0 %v1175
        %v1243 = vpop.f32.mrb[0].mxu0
        %v1244 = vadd.f32 0.0, %v1243
        %v1245 = vpop.f32.mrb[0].mxu0
        %1246 = vdwg.mxu0
        %1247 = vrot.lane.b32.xlu0 %v899, 112
        %v1248 = vpop.permute.xlu0 %1247
        %1249 = vrot.lane.b32.xlu0 %v902, 112
        %v1250 = vpop.permute.xlu0 %1249
        %1251 = vrot.lane.b32.xlu0 %v903, 112
        %v1252 = vpop.permute.xlu0 %1251
        %v1253 = vsel %vm904, %v1248, 0
        %v1255 = vsel %vm904, %v1250, 0
        %v1257 = vsel %vm904, %v1252, 0
        %1259 = vmatprep.subr.mxu0 0.0
        %1260 = vmatpush1.xpose.msra.mxu0 %v1255
        %1261 = vmatprep.subr.mxu0 0.0
        %1262 = vmatpush1.xpose.msra.mxu0 %v1257
        %1263 = vmatprep.subr.mxu0 0.0
        %1264 = vmatpush1.xpose.msra.mxu0 0.0
        %1265 = vmatprep.subr.mxu0 0.0
        %1266 = vmatpush1.xpose.msra.mxu0 0.0
        %1267 = vmatprep.subr.mxu0 0.0
        %1268 = vmatpush1.xpose.msra.mxu0 0.0
        %1269 = vmatprep.subr.mxu0 0.0
        %1270 = vmatpush1.xpose.msra.mxu0 0.0
        %1271 = vmatprep.subr.mxu0 0.0
        %1272 = vmatpush1.xpose.msra.mxu0 0.0
        %1273 = vmatprep.subr.mxu0 0.0
        %1274 = vmatpush1.xpose.msra.mxu0 0.0
        %1275 = vmatprep.subr.mxu0 0.0
        %1276 = vmatpush1.xpose.msra.mxu0 0.0
        %1277 = vmatprep.subr.mxu0 0.0
        %1278 = vmatpush1.xpose.msra.mxu0 0.0
        %1279 = vmatprep.subr.mxu0 0.0
        %1280 = vmatpush1.xpose.msra.mxu0 0.0
        %1281 = vmatprep.subr.mxu0 0.0
        %1282 = vmatpush1.xpose.msra.mxu0 0.0
        %1283 = vmatprep.subr.mxu0 0.0
        %1284 = vmatpush1.xpose.msra.mxu0 0.0
        %1285 = vmatprep.subr.mxu0 0.0
        %1286 = vmatpush1.xpose.msra.mxu0 0.0
        %1287 = vmatprep.subr.mxu0 0.0
        %1288 = vmatpush1.xpose.msra.mxu0 0.0
        %1289 = vmatprep.subr.mxu0 0.0
        %1290 = vmatpush1.xpose.msra.mxu0 0.0
        %1291 = vmatprep.subr.mxu0 0.0
        %1292 = vmatpush1.xpose.msra.mxu0 0.0
        %1293 = vmatprep.subr.mxu0 0.0
        %1294 = vmatpush1.xpose.msra.mxu0 0.0
        %1295 = vmatprep.subr.mxu0 0.0
        %1296 = vmatpush1.xpose.msra.mxu0 0.0
        %1297 = vmatprep.subr.mxu0 0.0
        %1298 = vmatpush1.xpose.msra.mxu0 0.0
        %1299 = vmatprep.subr.mxu0 0.0
        %1300 = vmatpush1.xpose.msra.mxu0 0.0
        %1301 = vmatprep.subr.mxu0 0.0
        %1302 = vmatpush1.xpose.msra.mxu0 0.0
        %1303 = vmatprep.subr.mxu0 0.0
        %1304 = vmatpush1.xpose.msra.mxu0 0.0
        %1305 = vmatprep.subr.mxu0 0.0
        %1306 = vmatpush1.xpose.msra.mxu0 0.0
        %1307 = vmatprep.subr.mxu0 0.0
        %1308 = vmatpush1.xpose.msra.mxu0 0.0
        %1309 = vmatprep.subr.mxu0 0.0
        %1310 = vmatpush1.xpose.msra.mxu0 0.0
        %1311 = vmatprep.subr.mxu0 0.0
        %1312 = vmatpush1.xpose.msra.mxu0 0.0
        %1313 = vmatprep.subr.mxu0 0.0
        %1314 = vmatpush1.xpose.msra.mxu0 0.0
        %1315 = vmatprep.subr.mxu0 0.0
        %1316 = vmatpush1.xpose.msra.mxu0 0.0
        %1317 = vmatprep.subr.mxu0 0.0
        %1318 = vmatpush1.xpose.msra.mxu0 0.0
        %1319 = vmatprep.subr.mxu0 0.0
        %1320 = vmatpush1.xpose.msra.mxu0 0.0
        %1321 = vmatprep.subr.mxu0 0.0
        %1322 = vmatpush1.xpose.msra.mxu0 0.0
        %1323 = vmatprep.mubr.f32.mxu0 0.0
        %1324 = vmatmul.mubr.f32.gmra.mrb[0].mxu0 %v1253
        %v1325 = vpop.f32.mrb[0].mxu0
        %v1326 = vadd.f32 0.0, %v1325
        %v1327 = vpop.f32.mrb[0].mxu0
        %1328 = vdwg.mxu0
        %v1329 = vsel %vm984, %v1326, -inf
        %1330 = vmax.xlane.f32.xlu0 %v1329
        %v1331 = vpop.xlane.xlu0 %1330
        %v1332 = vsub.f32 %v1326, %v1331
        %v1333 = vmul.f32 %v1332, 1.442695
        %v1334 = vpow.pop %v1333
        %v1335 = vsel %vm984, %v1334, 0.0
        %1336 = vadd.xlane.f32.xlu0 %v1335
        %v1337 = vpop.xlane.xlu0 %1336
        %v1338 = vrcp.pop %v1337
        %v1339 = vmul.f32 %v1334, %v1338
        %1340 = vrot.lane.b32.xlu0 %v902, 80
        %v1341 = vpop.permute.xlu0 %1340
        %1342 = vrot.lane.b32.xlu0 %v903, 80
        %v1343 = vpop.permute.xlu0 %1342
        %v1347 = vsel %vm984, %v1339, 0
        %1349 = vmatprep.subr.mxu0 0.0
        %1350 = vmatpush1.msra.mxu0 %v1341
        %1351 = vmatprep.subr.mxu0 0.0
        %1352 = vmatpush1.msra.mxu0 %v1343
        %1353 = vmatprep.subr.mxu0 0.0
        %1354 = vmatpush1.msra.mxu0 0.0
        %1355 = vmatprep.subr.mxu0 0.0
        %1356 = vmatpush1.msra.mxu0 0.0
        %1357 = vmatprep.subr.mxu0 0.0
        %1358 = vmatpush1.msra.mxu0 0.0
        %1359 = vmatprep.subr.mxu0 0.0
        %1360 = vmatpush1.msra.mxu0 0.0
        %1361 = vmatprep.subr.mxu0 0.0
        %1362 = vmatpush1.msra.mxu0 0.0
        %1363 = vmatprep.subr.mxu0 0.0
        %1364 = vmatpush1.msra.mxu0 0.0
        %1365 = vmatprep.subr.mxu0 0.0
        %1366 = vmatpush1.msra.mxu0 0.0
        %1367 = vmatprep.subr.mxu0 0.0
        %1368 = vmatpush1.msra.mxu0 0.0
        %1369 = vmatprep.subr.mxu0 0.0
        %1370 = vmatpush1.msra.mxu0 0.0
        %1371 = vmatprep.subr.mxu0 0.0
        %1372 = vmatpush1.msra.mxu0 0.0
        %1373 = vmatprep.subr.mxu0 0.0
        %1374 = vmatpush1.msra.mxu0 0.0
        %1375 = vmatprep.subr.mxu0 0.0
        %1376 = vmatpush1.msra.mxu0 0.0
        %1377 = vmatprep.subr.mxu0 0.0
        %1378 = vmatpush1.msra.mxu0 0.0
        %1379 = vmatprep.subr.mxu0 0.0
        %1380 = vmatpush1.msra.mxu0 0.0
        %1381 = vmatprep.subr.mxu0 0.0
        %1382 = vmatpush1.msra.mxu0 0.0
        %1383 = vmatprep.subr.mxu0 0.0
        %1384 = vmatpush1.msra.mxu0 0.0
        %1385 = vmatprep.subr.mxu0 0.0
        %1386 = vmatpush1.msra.mxu0 0.0
        %1387 = vmatprep.subr.mxu0 0.0
        %1388 = vmatpush1.msra.mxu0 0.0
        %1389 = vmatprep.subr.mxu0 0.0
        %1390 = vmatpush1.msra.mxu0 0.0
        %1391 = vmatprep.subr.mxu0 0.0
        %1392 = vmatpush1.msra.mxu0 0.0
        %1393 = vmatprep.subr.mxu0 0.0
        %1394 = vmatpush1.msra.mxu0 0.0
        %1395 = vmatprep.subr.mxu0 0.0
        %1396 = vmatpush1.msra.mxu0 0.0
        %1397 = vmatprep.subr.mxu0 0.0
        %1398 = vmatpush1.msra.mxu0 0.0
        %1399 = vmatprep.subr.mxu0 0.0
        %1400 = vmatpush1.msra.mxu0 0.0
        %1401 = vmatprep.subr.mxu0 0.0
        %1402 = vmatpush1.msra.mxu0 0.0
        %1403 = vmatprep.subr.mxu0 0.0
        %1404 = vmatpush1.msra.mxu0 0.0
        %1405 = vmatprep.subr.mxu0 0.0
        %1406 = vmatpush1.msra.mxu0 0.0
        %1407 = vmatprep.subr.mxu0 0.0
        %1408 = vmatpush1.msra.mxu0 0.0
        %1409 = vmatprep.subr.mxu0 0.0
        %1410 = vmatpush1.msra.mxu0 0.0
        %1411 = vmatprep.subr.mxu0 0.0
        %1412 = vmatpush1.msra.mxu0 0.0
        %1413 = vmatprep.mubr.f32.mxu0 0.0
        %1414 = vmatmul.mubr.f32.gmra.mrb[0].mxu0 %v1347
        %v1415 = vpop.f32.mrb[0].mxu0
        %v1416 = vadd.f32 0.0, %v1415
        %v1417 = vpop.f32.mrb[0].mxu0
        %1418 = vdwg.mxu0
        %1419 = vrot.lane.b32.xlu0 %v899, 104
        %v1420 = vpop.permute.xlu0 %1419
        %1421 = vrot.lane.b32.xlu0 %v902, 104
        %v1422 = vpop.permute.xlu0 %1421
        %1423 = vrot.lane.b32.xlu0 %v903, 104
        %v1424 = vpop.permute.xlu0 %1423
        %v1425 = vsel %vm904, %v1420, 0
        %v1427 = vsel %vm904, %v1422, 0
        %v1429 = vsel %vm904, %v1424, 0
        %1431 = vmatprep.subr.mxu0 0.0
        %1432 = vmatpush1.xpose.msra.mxu0 %v1427
        %1433 = vmatprep.subr.mxu0 0.0
        %1434 = vmatpush1.xpose.msra.mxu0 %v1429
        %1435 = vmatprep.subr.mxu0 0.0
        %1436 = vmatpush1.xpose.msra.mxu0 0.0
        %1437 = vmatprep.subr.mxu0 0.0
        %1438 = vmatpush1.xpose.msra.mxu0 0.0
        %1439 = vmatprep.subr.mxu0 0.0
        %1440 = vmatpush1.xpose.msra.mxu0 0.0
        %1441 = vmatprep.subr.mxu0 0.0
        %1442 = vmatpush1.xpose.msra.mxu0 0.0
        %1443 = vmatprep.subr.mxu0 0.0
        %1444 = vmatpush1.xpose.msra.mxu0 0.0
        %1445 = vmatprep.subr.mxu0 0.0
        %1446 = vmatpush1.xpose.msra.mxu0 0.0
        %1447 = vmatprep.subr.mxu0 0.0
        %1448 = vmatpush1.xpose.msra.mxu0 0.0
        %1449 = vmatprep.subr.mxu0 0.0
        %1450 = vmatpush1.xpose.msra.mxu0 0.0
        %1451 = vmatprep.subr.mxu0 0.0
        %1452 = vmatpush1.xpose.msra.mxu0 0.0
        %1453 = vmatprep.subr.mxu0 0.0
        %1454 = vmatpush1.xpose.msra.mxu0 0.0
        %1455 = vmatprep.subr.mxu0 0.0
        %1456 = vmatpush1.xpose.msra.mxu0 0.0
        %1457 = vmatprep.subr.mxu0 0.0
        %1458 = vmatpush1.xpose.msra.mxu0 0.0
        %1459 = vmatprep.subr.mxu0 0.0
        %1460 = vmatpush1.xpose.msra.mxu0 0.0
        %1461 = vmatprep.subr.mxu0 0.0
        %1462 = vmatpush1.xpose.msra.mxu0 0.0
        %1463 = vmatprep.subr.mxu0 0.0
        %1464 = vmatpush1.xpose.msra.mxu0 0.0
        %1465 = vmatprep.subr.mxu0 0.0
        %1466 = vmatpush1.xpose.msra.mxu0 0.0
        %1467 = vmatprep.subr.mxu0 0.0
        %1468 = vmatpush1.xpose.msra.mxu0 0.0
        %1469 = vmatprep.subr.mxu0 0.0
        %1470 = vmatpush1.xpose.msra.mxu0 0.0
        %1471 = vmatprep.subr.mxu0 0.0
        %1472 = vmatpush1.xpose.msra.mxu0 0.0
        %1473 = vmatprep.subr.mxu0 0.0
        %1474 = vmatpush1.xpose.msra.mxu0 0.0
        %1475 = vmatprep.subr.mxu0 0.0
        %1476 = vmatpush1.xpose.msra.mxu0 0.0
        %1477 = vmatprep.subr.mxu0 0.0
        %1478 = vmatpush1.xpose.msra.mxu0 0.0
        %1479 = vmatprep.subr.mxu0 0.0
        %1480 = vmatpush1.xpose.msra.mxu0 0.0
        %1481 = vmatprep.subr.mxu0 0.0
        %1482 = vmatpush1.xpose.msra.mxu0 0.0
        %1483 = vmatprep.subr.mxu0 0.0
        %1484 = vmatpush1.xpose.msra.mxu0 0.0
        %1485 = vmatprep.subr.mxu0 0.0
        %1486 = vmatpush1.xpose.msra.mxu0 0.0
        %1487 = vmatprep.subr.mxu0 0.0
        %1488 = vmatpush1.xpose.msra.mxu0 0.0
        %1489 = vmatprep.subr.mxu0 0.0
        %1490 = vmatpush1.xpose.msra.mxu0 0.0
        %1491 = vmatprep.subr.mxu0 0.0
        %1492 = vmatpush1.xpose.msra.mxu0 0.0
        %1493 = vmatprep.subr.mxu0 0.0
        %1494 = vmatpush1.xpose.msra.mxu0 0.0
        %1495 = vmatprep.mubr.f32.mxu0 0.0
        %1496 = vmatmul.mubr.f32.gmra.mrb[0].mxu0 %v1425
        %v1497 = vpop.f32.mrb[0].mxu0
        %v1498 = vadd.f32 0.0, %v1497
        %v1499 = vpop.f32.mrb[0].mxu0
        %1500 = vdwg.mxu0
        %v1501 = vsel %vm984, %v1498, -inf
        %1502 = vmax.xlane.f32.xlu0 %v1501
        %v1503 = vpop.xlane.xlu0 %1502
        %v1504 = vsub.f32 %v1498, %v1503
        %v1505 = vmul.f32 %v1504, 1.442695
        %v1506 = vpow.pop %v1505
        %v1507 = vsel %vm984, %v1506, 0.0
        %1508 = vadd.xlane.f32.xlu0 %v1507
        %v1509 = vpop.xlane.xlu0 %1508
        %v1510 = vrcp.pop %v1509
        %v1511 = vmul.f32 %v1506, %v1510
        %1512 = vrot.lane.b32.xlu0 %v902, 72
        %v1513 = vpop.permute.xlu0 %1512
        %1514 = vrot.lane.b32.xlu0 %v903, 72
        %v1515 = vpop.permute.xlu0 %1514
        %v1519 = vsel %vm984, %v1511, 0
        %1521 = vmatprep.subr.mxu0 0.0
        %1522 = vmatpush1.msra.mxu0 %v1513
        %1523 = vmatprep.subr.mxu0 0.0
        %1524 = vmatpush1.msra.mxu0 %v1515
        %1525 = vmatprep.subr.mxu0 0.0
        %1526 = vmatpush1.msra.mxu0 0.0
        %1527 = vmatprep.subr.mxu0 0.0
        %1528 = vmatpush1.msra.mxu0 0.0
        %1529 = vmatprep.subr.mxu0 0.0
        %1530 = vmatpush1.msra.mxu0 0.0
        %1531 = vmatprep.subr.mxu0 0.0
        %1532 = vmatpush1.msra.mxu0 0.0
        %1533 = vmatprep.subr.mxu0 0.0
        %1534 = vmatpush1.msra.mxu0 0.0
        %1535 = vmatprep.subr.mxu0 0.0
        %1536 = vmatpush1.msra.mxu0 0.0
        %1537 = vmatprep.subr.mxu0 0.0
        %1538 = vmatpush1.msra.mxu0 0.0
        %1539 = vmatprep.subr.mxu0 0.0
        %1540 = vmatpush1.msra.mxu0 0.0
        %1541 = vmatprep.subr.mxu0 0.0
        %1542 = vmatpush1.msra.mxu0 0.0
        %1543 = vmatprep.subr.mxu0 0.0
        %1544 = vmatpush1.msra.mxu0 0.0
        %1545 = vmatprep.subr.mxu0 0.0
        %1546 = vmatpush1.msra.mxu0 0.0
        %1547 = vmatprep.subr.mxu0 0.0
        %1548 = vmatpush1.msra.mxu0 0.0
        %1549 = vmatprep.subr.mxu0 0.0
        %1550 = vmatpush1.msra.mxu0 0.0
        %1551 = vmatprep.subr.mxu0 0.0
        %1552 = vmatpush1.msra.mxu0 0.0
        %1553 = vmatprep.subr.mxu0 0.0
        %1554 = vmatpush1.msra.mxu0 0.0
        %1555 = vmatprep.subr.mxu0 0.0
        %1556 = vmatpush1.msra.mxu0 0.0
        %1557 = vmatprep.subr.mxu0 0.0
        %1558 = vmatpush1.msra.mxu0 0.0
        %1559 = vmatprep.subr.mxu0 0.0
        %1560 = vmatpush1.msra.mxu0 0.0
        %1561 = vmatprep.subr.mxu0 0.0
        %1562 = vmatpush1.msra.mxu0 0.0
        %1563 = vmatprep.subr.mxu0 0.0
        %1564 = vmatpush1.msra.mxu0 0.0
        %1565 = vmatprep.subr.mxu0 0.0
        %1566 = vmatpush1.msra.mxu0 0.0
        %1567 = vmatprep.subr.mxu0 0.0
        %1568 = vmatpush1.msra.mxu0 0.0
        %1569 = vmatprep.subr.mxu0 0.0
        %1570 = vmatpush1.msra.mxu0 0.0
        %1571 = vmatprep.subr.mxu0 0.0
        %1572 = vmatpush1.msra.mxu0 0.0
        %1573 = vmatprep.subr.mxu0 0.0
        %1574 = vmatpush1.msra.mxu0 0.0
        %1575 = vmatprep.subr.mxu0 0.0
        %1576 = vmatpush1.msra.mxu0 0.0
        %1577 = vmatprep.subr.mxu0 0.0
        %1578 = vmatpush1.msra.mxu0 0.0
        %1579 = vmatprep.subr.mxu0 0.0
        %1580 = vmatpush1.msra.mxu0 0.0
        %1581 = vmatprep.subr.mxu0 0.0
        %1582 = vmatpush1.msra.mxu0 0.0
        %1583 = vmatprep.subr.mxu0 0.0
        %1584 = vmatpush1.msra.mxu0 0.0
        %1585 = vmatprep.mubr.f32.mxu0 0.0
        %1586 = vmatmul.mubr.f32.gmra.mrb[0].mxu0 %v1519
        %v1587 = vpop.f32.mrb[0].mxu0
        %v1588 = vadd.f32 0.0, %v1587
        %v1589 = vpop.f32.mrb[0].mxu0
        %1590 = vdwg.mxu0
        %1592 = vrot.lane.b32.xlu0 %v1244, 8
        %v1593 = vpop.permute.xlu0 %1592
        %1596 = vrot.lane.b32.xlu0 %v1416, 16
        %v1597 = vpop.permute.xlu0 %1596
        %1600 = vrot.lane.b32.xlu0 %v1588, 24
        %v1601 = vpop.permute.xlu0 %1600
        %v1603 = vsel %vm904, %v1072, %v1593
        %v1604 = vsel %vm984, %v1603, %v1597
        %vm1605 = vcmask 195584
        %v1606 = vsel %vm1605, %v1604, %v1601
        %v1607 = vld [vmem:[#allocation12] sm:$0xff]
        %v1608 = vld [vmem:[#allocation12 + $0x8] sm:$0xff]
        %v1609 = vld [vmem:[#allocation12 + $0x10] sm:$0xff]
        %v1610 = vld [vmem:[#allocation12 + $0x18] sm:$0xff]
        %v1611 = vld [vmem:[#allocation14] sm:$0x1]
        %v1613 = vlaneseq
        %v1614 = vshrl.u32 %v1613, 7
        %v1615 = vsub.s32 0, %v1614
        %v1616 = vrot.slane %v1611, %v1615
        %v1619 = vsel %vm828, %v1606, 0
        %1621 = vmatprep.subr.mxu0 0.0
        %1622 = vmatpush1.msra.mxu0 %v1607
        %1623 = vmatprep.subr.mxu0 0.0
        %1624 = vmatpush1.msra.mxu0 %v1608
        %1625 = vmatprep.subr.mxu0 0.0
        %1626 = vmatpush1.msra.mxu0 %v1609
        %1627 = vmatprep.subr.mxu0 0.0
        %1628 = vmatpush1.msra.mxu0 %v1610
        %1629 = vmatprep.subr.mxu0 0.0
        %1630 = vmatpush1.msra.mxu0 0.0
        %1631 = vmatprep.subr.mxu0 0.0
        %1632 = vmatpush1.msra.mxu0 0.0
        %1633 = vmatprep.subr.mxu0 0.0
        %1634 = vmatpush1.msra.mxu0 0.0
        %1635 = vmatprep.subr.mxu0 0.0
        %1636 = vmatpush1.msra.mxu0 0.0
        %1637 = vmatprep.subr.mxu0 0.0
        %1638 = vmatpush1.msra.mxu0 0.0
        %1639 = vmatprep.subr.mxu0 0.0
        %1640 = vmatpush1.msra.mxu0 0.0
        %1641 = vmatprep.subr.mxu0 0.0
        %1642 = vmatpush1.msra.mxu0 0.0
        %1643 = vmatprep.subr.mxu0 0.0
        %1644 = vmatpush1.msra.mxu0 0.0
        %1645 = vmatprep.subr.mxu0 0.0
        %1646 = vmatpush1.msra.mxu0 0.0
        %1647 = vmatprep.subr.mxu0 0.0
        %1648 = vmatpush1.msra.mxu0 0.0
        %1649 = vmatprep.subr.mxu0 0.0
        %1650 = vmatpush1.msra.mxu0 0.0
        %1651 = vmatprep.subr.mxu0 0.0
        %1652 = vmatpush1.msra.mxu0 0.0
        %1653 = vmatprep.subr.mxu0 0.0
        %1654 = vmatpush1.msra.mxu0 0.0
        %1655 = vmatprep.subr.mxu0 0.0
        %1656 = vmatpush1.msra.mxu0 0.0
        %1657 = vmatprep.subr.mxu0 0.0
        %1658 = vmatpush1.msra.mxu0 0.0
        %1659 = vmatprep.subr.mxu0 0.0
        %1660 = vmatpush1.msra.mxu0 0.0
        %1661 = vmatprep.subr.mxu0 0.0
        %1662 = vmatpush1.msra.mxu0 0.0
        %1663 = vmatprep.subr.mxu0 0.0
        %1664 = vmatpush1.msra.mxu0 0.0
        %1665 = vmatprep.subr.mxu0 0.0
        %1666 = vmatpush1.msra.mxu0 0.0
        %1667 = vmatprep.subr.mxu0 0.0
        %1668 = vmatpush1.msra.mxu0 0.0
        %1669 = vmatprep.subr.mxu0 0.0
        %1670 = vmatpush1.msra.mxu0 0.0
        %1671 = vmatprep.subr.mxu0 0.0
        %1672 = vmatpush1.msra.mxu0 0.0
        %1673 = vmatprep.subr.mxu0 0.0
        %1674 = vmatpush1.msra.mxu0 0.0
        %1675 = vmatprep.subr.mxu0 0.0
        %1676 = vmatpush1.msra.mxu0 0.0
        %1677 = vmatprep.subr.mxu0 0.0
        %1678 = vmatpush1.msra.mxu0 0.0
        %1679 = vmatprep.subr.mxu0 0.0
        %1680 = vmatpush1.msra.mxu0 0.0
        %1681 = vmatprep.subr.mxu0 0.0
        %1682 = vmatpush1.msra.mxu0 0.0
        %1683 = vmatprep.subr.mxu0 0.0
        %1684 = vmatpush1.msra.mxu0 0.0
        %1685 = vmatprep.mubr.f32.mxu0 0.0
        %1686 = vmatmul.mubr.f32.gmra.mrb[0].mxu0 %v1619
        %v1687 = vpop.f32.mrb[0].mxu0
        %v1688 = vadd.f32 %v1616, %v1687
        %v1689 = vpop.f32.mrb[0].mxu0
        %1690 = vdwg.mxu0
        %v1691 = vadd.f32 %v816, %v1688
        %v1692 = vld [vmem:[#allocation15] sm:$0x1]
        %v1693 = vld [vmem:[#allocation17] sm:$0x1]
        %v1694 = vsel %vm828, %v1691, 0.0
        %1695 = vadd.xlane.f32.xlu0 %v1694
        %v1696 = vpop.xlane.xlu0 %1695
        %v1697 = vrcp.pop 32.0
        %v1698 = vmul.f32 %v1696, %v1697
        %v1699 = vsub.f32 %v1691, %v1698
        %v1700 = vmul.f32 %v1699, %v1699
        %v1701 = vsel %vm828, %v1700, 0.0
        %1702 = vadd.xlane.f32.xlu0 %v1701
        %v1703 = vpop.xlane.xlu0 %1702
        %v1704 = vmul.f32 %v1703, %v1697
        %v1705 = vadd.f32 %v1704, 1e-05
        %v1706 = vrsqrt.pop %v1705
        %v1707 = vmul.f32 %v1699, %v1706
        %v1709 = vlaneseq
        %v1710 = vshrl.u32 %v1709, 7
        %v1711 = vsub.s32 0, %v1710
        %v1712 = vrot.slane %v1692, %v1711
        %v1714 = vmul.f32 %v1707, %v1712
        %v1716 = vlaneseq
        %v1717 = vshrl.u32 %v1716, 7
        %v1718 = vsub.s32 0, %v1717
        %v1719 = vrot.slane %v1693, %v1718
        %v1721 = vadd.f32 %v1714, %v1719
        %v1722 = vld [vmem:[#allocation18] sm:$0xff]
        %v1723 = vld [vmem:[#allocation18 + $0x8] sm:$0xff]
        %v1724 = vld [vmem:[#allocation18 + $0x10] sm:$0xff]
        %v1725 = vld [vmem:[#allocation18 + $0x18] sm:$0xff]
        %v1726 = vld [vmem:[#allocation20] sm:$0x1]
        %v1728 = vlaneseq
        %v1729 = vshrl.u32 %v1728, 7
        %v1730 = vsub.s32 0, %v1729
        %v1731 = vrot.slane %v1726, %v1730
        %v1734 = vsel %vm828, %v1721, 0
        %1736 = vmatprep.subr.mxu0 0.0
        %1737 = vmatpush1.msra.mxu0 %v1722
        %1738 = vmatprep.subr.mxu0 0.0
        %1739 = vmatpush1.msra.mxu0 %v1723
        %1740 = vmatprep.subr.mxu0 0.0
        %1741 = vmatpush1.msra.mxu0 %v1724
        %1742 = vmatprep.subr.mxu0 0.0
        %1743 = vmatpush1.msra.mxu0 %v1725
        %1744 = vmatprep.subr.mxu0 0.0
        %1745 = vmatpush1.msra.mxu0 0.0
        %1746 = vmatprep.subr.mxu0 0.0
        %1747 = vmatpush1.msra.mxu0 0.0
        %1748 = vmatprep.subr.mxu0 0.0
        %1749 = vmatpush1.msra.mxu0 0.0
        %1750 = vmatprep.subr.mxu0 0.0
        %1751 = vmatpush1.msra.mxu0 0.0
        %1752 = vmatprep.subr.mxu0 0.0
        %1753 = vmatpush1.msra.mxu0 0.0
        %1754 = vmatprep.subr.mxu0 0.0
        %1755 = vmatpush1.msra.mxu0 0.0
        %1756 = vmatprep.subr.mxu0 0.0
        %1757 = vmatpush1.msra.mxu0 0.0
        %1758 = vmatprep.subr.mxu0 0.0
        %1759 = vmatpush1.msra.mxu0 0.0
        %1760 = vmatprep.subr.mxu0 0.0
        %1761 = vmatpush1.msra.mxu0 0.0
        %1762 = vmatprep.subr.mxu0 0.0
        %1763 = vmatpush1.msra.mxu0 0.0
        %1764 = vmatprep.subr.mxu0 0.0
        %1765 = vmatpush1.msra.mxu0 0.0
        %1766 = vmatprep.subr.mxu0 0.0
        %1767 = vmatpush1.msra.mxu0 0.0
        %1768 = vmatprep.subr.mxu0 0.0
        %1769 = vmatpush1.msra.mxu0 0.0
        %1770 = vmatprep.subr.mxu0 0.0
        %1771 = vmatpush1.msra.mxu0 0.0
        %1772 = vmatprep.subr.mxu0 0.0
        %1773 = vmatpush1.msra.mxu0 0.0
        %1774 = vmatprep.subr.mxu0 0.0
        %1775 = vmatpush1.msra.mxu0 0.0
        %1776 = vmatprep.subr.mxu0 0.0
        %1777 = vmatpush1.msra.mxu0 0.0
        %1778 = vmatprep.subr.mxu0 0.0
        %1779 = vmatpush1.msra.mxu0 0.0
        %1780 = vmatprep.subr.mxu0 0.0
        %1781 = vmatpush1.msra.mxu0 0.0
        %1782 = vmatprep.subr.mxu0 0.0
        %1783 = vmatpush1.msra.mxu0 0.0
        %1784 = vmatprep.subr.mxu0 0.0
        %1785 = vmatpush1.msra.mxu0 0.0
        %1786 = vmatprep.subr.mxu0 0.0
        %1787 = vmatpush1.msra.mxu0 0.0
        %1788 = vmatprep.subr.mxu0 0.0
        %1789 = vmatpush1.msra.mxu0 0.0
        %1790 = vmatprep.subr.mxu0 0.0
        %1791 = vmatpush1.msra.mxu0 0.0
        %1792 = vmatprep.subr.mxu0 0.0
        %1793 = vmatpush1.msra.mxu0 0.0
        %1794 = vmatprep.subr.mxu0 0.0
        %1795 = vmatpush1.msra.mxu0 0.0
        %1796 = vmatprep.subr.mxu0 0.0
        %1797 = vmatpush1.msra.mxu0 0.0
        %1798 = vmatprep.subr.mxu0 0.0
        %1799 = vmatpush1.msra.mxu0 0.0
        %1800 = vmatprep.mubr.f32.mxu0 0.0
        %1801 = vmatmul.mubr.f32.gmra.mrb[0].mxu0 %v1734
        %v1802 = vpop.f32.mrb[0].mxu0
        %v1803 = vadd.f32 %v1731, %v1802
        %v1804 = vpop.f32.mrb[0].mxu0
        %1805 = vdwg.mxu0
        %v1806 = vmax.f32 %v1803, 0.0
        %v1807 = vld [vmem:[#allocation21] sm:$0xff]
        %v1808 = vld [vmem:[#allocation21 + $0x8] sm:$0xff]
        %v1809 = vld [vmem:[#allocation21 + $0x10] sm:$0xff]
        %v1810 = vld [vmem:[#allocation21 + $0x18] sm:$0xff]
        %v1811 = vld [vmem:[#allocation21 + $0x20] sm:$0xff]
        %v1812 = vld [vmem:[#allocation21 + $0x28] sm:$0xff]
        %v1813 = vld [vmem:[#allocation21 + $0x30] sm:$0xff]
        %v1814 = vld [vmem:[#allocation21 + $0x38] sm:$0xff]
        %v1815 = vld [vmem:[#allocation21 + $0x40] sm:$0xff]
        %v1816 = vld [vmem:[#allocation21 + $0x48] sm:$0xff]
        %v1817 = vld [vmem:[#allocation21 + $0x50] sm:$0xff]
        %v1818 = vld [vmem:[#allocation21 + $0x58] sm:$0xff]
        %v1819 = vld [vmem:[#allocation21 + $0x60] sm:$0xff]
        %v1820 = vld [vmem:[#allocation21 + $0x68] sm:$0xff]
        %v1821 = vld [vmem:[#allocation21 + $0x70] sm:$0xff]
        %v1822 = vld [vmem:[#allocation21 + $0x78] sm:$0xff]
        %v1823 = vld [vmem:[#allocation23] sm:$0x1]
        %v1825 = vlaneseq
        %v1826 = vshrl.u32 %v1825, 7
        %v1827 = vsub.s32 0, %v1826
        %v1828 = vrot.slane %v1823, %v1827
        %1830 = vmatprep.subr.mxu0 0.0
        %1831 = vmatpush1.msra.mxu0 %v1807
        %1832 = vmatprep.subr.mxu0 0.0
        %1833 = vmatpush1.msra.mxu0 %v1808
        %1834 = vmatprep.subr.mxu0 0.0
        %1835 = vmatpush1.msra.mxu0 %v1809
        %1836 = vmatprep.subr.mxu0 0.0
        %1837 = vmatpush1.msra.mxu0 %v1810
        %1838 = vmatprep.subr.mxu0 0.0
        %1839 = vmatpush1.msra.mxu0 %v1811
        %1840 = vmatprep.subr.mxu0 0.0
        %1841 = vmatpush1.msra.mxu0 %v1812
        %1842 = vmatprep.subr.mxu0 0.0
        %1843 = vmatpush1.msra.mxu0 %v1813
        %1844 = vmatprep.subr.mxu0 0.0
        %1845 = vmatpush1.msra.mxu0 %v1814
        %1846 = vmatprep.subr.mxu0 0.0
        %1847 = vmatpush1.msra.mxu0 %v1815
        %1848 = vmatprep.subr.mxu0 0.0
        %1849 = vmatpush1.msra.mxu0 %v1816
        %1850 = vmatprep.subr.mxu0 0.0
        %1851 = vmatpush1.msra.mxu0 %v1817
        %1852 = vmatprep.subr.mxu0 0.0
        %1853 = vmatpush1.msra.mxu0 %v1818
        %1854 = vmatprep.subr.mxu0 0.0
        %1855 = vmatpush1.msra.mxu0 %v1819
        %1856 = vmatprep.subr.mxu0 0.0
        %1857 = vmatpush1.msra.mxu0 %v1820
        %1858 = vmatprep.subr.mxu0 0.0
        %1859 = vmatpush1.msra.mxu0 %v1821
        %1860 = vmatprep.subr.mxu0 0.0
        %1861 = vmatpush1.msra.mxu0 %v1822
        %1862 = vmatprep.subr.mxu0 0.0
        %1863 = vmatpush1.msra.mxu0 0.0
        %1864 = vmatprep.subr.mxu0 0.0
        %1865 = vmatpush1.msra.mxu0 0.0
        %1866 = vmatprep.subr.mxu0 0.0
        %1867 = vmatpush1.msra.mxu0 0.0
        %1868 = vmatprep.subr.mxu0 0.0
        %1869 = vmatpush1.msra.mxu0 0.0
        %1870 = vmatprep.subr.mxu0 0.0
        %1871 = vmatpush1.msra.mxu0 0.0
        %1872 = vmatprep.subr.mxu0 0.0
        %1873 = vmatpush1.msra.mxu0 0.0
        %1874 = vmatprep.subr.mxu0 0.0
        %1875 = vmatpush1.msra.mxu0 0.0
        %1876 = vmatprep.subr.mxu0 0.0
        %1877 = vmatpush1.msra.mxu0 0.0
        %1878 = vmatprep.subr.mxu0 0.0
        %1879 = vmatpush1.msra.mxu0 0.0
        %1880 = vmatprep.subr.mxu0 0.0
        %1881 = vmatpush1.msra.mxu0 0.0
        %1882 = vmatprep.subr.mxu0 0.0
        %1883 = vmatpush1.msra.mxu0 0.0
        %1884 = vmatprep.subr.mxu0 0.0
        %1885 = vmatpush1.msra.mxu0 0.0
        %1886 = vmatprep.subr.mxu0 0.0
        %1887 = vmatpush1.msra.mxu0 0.0
        %1888 = vmatprep.subr.mxu0 0.0
        %1889 = vmatpush1.msra.mxu0 0.0
        %1890 = vmatprep.subr.mxu0 0.0
        %1891 = vmatpush1.msra.mxu0 0.0
        %1892 = vmatprep.subr.mxu0 0.0
        %1893 = vmatpush1.msra.mxu0 0.0
        %1894 = vmatprep.mubr.f32.mxu0 0.0
        %1895 = vmatmul.mubr.f32.gmra.mrb[0].mxu0 %v1806
        %v1896 = vpop.f32.mrb[0].mxu0
        %v1897 = vadd.f32 %v1828, %v1896
        %v1898 = vpop.f32.mrb[0].mxu0
        %1899 = vdwg.mxu0
        %v1900 = vadd.f32 %v1721, %v1897
        %v1901 = vld [vmem:[#allocation24] sm:$0x1]
        %v1902 = vld [vmem:[#allocation26] sm:$0x1]
        %v1903 = vsel %vm828, %v1900, 0.0
        %1904 = vadd.xlane.f32.xlu0 %v1903
        %v1905 = vpop.xlane.xlu0 %1904
        %v1906 = vmul.f32 %v1905, %v1697
        %v1907 = vsub.f32 %v1900, %v1906
        %v1908 = vmul.f32 %v1907, %v1907
        %v1909 = vsel %vm828, %v1908, 0.0
        %1910 = vadd.xlane.f32.xlu0 %v1909
        %v1911 = vpop.xlane.xlu0 %1910
        %v1912 = vmul.f32 %v1911, %v1697
        %v1913 = vadd.f32 %v1912, 1e-05
        %v1914 = vrsqrt.pop %v1913
        %v1915 = vmul.f32 %v1907, %v1914
        %v1917 = vlaneseq
        %v1918 = vshrl.u32 %v1917, 7
        %v1919 = vsub.s32 0, %v1918
        %v1920 = vrot.slane %v1901, %v1919
        %v1922 = vmul.f32 %v1915, %v1920
        %v1924 = vlaneseq
        %v1925 = vshrl.u32 %v1924, 7
        %v1926 = vsub.s32 0, %v1925
        %v1927 = vrot.slane %v1902, %v1926
        %v1929 = vadd.f32 %v1922, %v1927
        %1930 = vst.msk [vmem:[%s711] sm:$0xff] %vm828, %v1929
        %s1931 = sand.u32 %s381, 1
        %s1932 = scalar_lea.sflag [#allocation5], %s1931
        %s1933 = sand.u32 %s381, 1
        %s1934 = smul.addr %s1933, 8
        %s1935 = scalar_lea.vmem [#allocation27], %s1934
        // Predicated region
        $region145: #{tpu_custom_call.1} parent=79 // pred_check
          %p1936 = pneg %p391
        $region146: #{tpu_custom_call.1} parent=79 // pred_check_branch
          %1938 = sbr.rel (%p1936) target = $region148
        $region147: #{tpu_custom_call.1} parent=79 // pred_region
          %s1940 = ssub.s32 128, 128
          %1941 = vsyncadd %s1932, %s1940
          %s1942 = smul.addr %s43, 2
          %s1943 = sadd.s32 %s44, %s1942
          %s1944 = smul.addr %s1943, 128
          %s1945 = scalar_lea.hbm %s15, %s1944
          %s1947 = sshll.u32 %s1935, 4
          %s1948 = int_to_ptr.vmem [resolvable:$true] %s1947
          %1950 = dma.vmem_to_hbm [thread:$0]  %s1948, 128, %s1945, %s1932
        $region148: #{tpu_custom_call.1} parent=79 // pred_fallthru
          _
      $region80: #{tpu_custom_call.1} parent=5 // pred_fallthru
        _
      %p1951 = scmp.le.s32.totalorder 2, %s34
      // Predicated region
      $region149: #{tpu_custom_call.1} parent=5 // pred_check
        %p1952 = pneg %p1951
      $region150: #{tpu_custom_call.1} parent=5 // pred_check_branch
        %1954 = sbr.rel (%p1952) target = $region152
      $region151: #{tpu_custom_call.1} parent=5 // pred_region
        %s1955 = ssub.s32 %s34, 2
        // Predicated region
        $region153: #{tpu_custom_call.1} parent=151 // pred_check
          %p1956 = pneg %p397
        $region154: #{tpu_custom_call.1} parent=151 // pred_check_branch
          %1958 = sbr.rel (%p1956) target = $region156
        $region155: #{tpu_custom_call.1} parent=151 // pred_region
          %s1959 = sand.u32 %s382, 1
          %s1960 = scalar_lea.sflag [#allocation5], %s1959
          %s1961 = sand.u32 %s382, 1
          %s1962 = smul.addr %s1961, 8
          %s1963 = scalar_lea.vmem [#allocation27], %s1962
          %1964 = dma.done %s1960, 128
        $region156: #{tpu_custom_call.1} parent=151 // pred_fallthru
          _
      $region152: #{tpu_custom_call.1} parent=5 // pred_fallthru
        _
    $region6: #{tpu_custom_call.1} parent=1 // loop_footer
      %s38 = sadd.s32 1, %s34
    $region7: #{tpu_custom_call.1} parent=1 // loop_footer_branch
      %33 = sbr.rel target = $region3
    $region8: #{tpu_custom_call.1} parent=1 // loop_exit
      _
    %1965 = vsyncpa [#allocation4], 1
    %s1966 = scalar_lea.sflag [#allocation4], 1
    %1967 = vsyncpa %s1966, 1
    %1968 = vsyncpa [#allocation7], 1
    %1969 = vsyncpa [#allocation10], 1
    %1970 = vsyncpa [#allocation13], 1
    %1971 = vsyncpa [#allocation16], 1
    %1972 = vsyncpa [#allocation19], 1
    %1973 = vsyncpa [#allocation22], 1
    %1974 = vsyncpa [#allocation25], 1
    %1975 = vsyncpa [#allocation5], 1
    %s1976 = scalar_lea.sflag [#allocation5], 1
    %1977 = vsyncpa %s1976, 1

// kernel: tpu_custom_call.1
$region0: #{tpu_custom_call.1}
  #allocation0 [shape = 'u32[]', space=smem, size = 0x4, offset = 0x4, fixed_abs, tag = 'smem constant byte address 0x4 - core index']
  #allocation1 [shape = 'u32[144,128]{1,0:T(1,128)}', space=vmem, size = 0x12000, scoped, tag = 'internal scratch']
  #allocation2 [shape = 'f32[16,64]{1,0:T(8,128)}', space=vmem, size = 0x2000, scoped, tag = 'scratch operand']
  %s0 = inlined_call_operand.hbm [shape: f32[2,16,32], index: 0, kind: input, shape index: {}]
  %s1 = inlined_call_operand.hbm [shape: f32[32,32], index: 1, kind: input, shape index: {}]
  %s2 = inlined_call_operand.hbm [shape: f32[1,32], index: 2, kind: input, shape index: {}]
  %s3 = inlined_call_operand.hbm [shape: f32[32,64], index: 3, kind: input, shape index: {}]
  %s4 = inlined_call_operand.hbm [shape: f32[1,64], index: 4, kind: input, shape index: {}]
  %s5 = inlined_call_operand.hbm [shape: f32[32,32], index: 5, kind: input, shape index: {}]
  %s6 = inlined_call_operand.hbm [shape: f32[1,32], index: 6, kind: input, shape index: {}]
  %s7 = inlined_call_operand.hbm [shape: f32[1,32], index: 7, kind: input, shape index: {}]
  %s8 = inlined_call_operand.hbm [shape: f32[1,32], index: 8, kind: input, shape index: {}]
  %s9 = inlined_call_operand.hbm [shape: f32[32,128], index: 9, kind: input, shape index: {}]
  %s10 = inlined_call_operand.hbm [shape: f32[1,128], index: 10, kind: input, shape index: {}]
  %s11 = inlined_call_operand.hbm [shape: f32[128,32], index: 11, kind: input, shape index: {}]
  %s12 = inlined_call_operand.hbm [shape: f32[1,32], index: 12, kind: input, shape index: {}]
  %s13 = inlined_call_operand.hbm [shape: f32[1,32], index: 13, kind: input, shape index: {}]
  %s14 = inlined_call_operand.hbm [shape: f32[1,32], index: 14, kind: input, shape index: {}]
  %s15 = inlined_call_operand.hbm [shape: f32[2,16,32], index: 15, kind: output, shape index: {}]
  %s16 = sld [smem:[#allocation0]]
  $region157: #{tpu_custom_call.1} parent=0
    _
  %s18 = ssub.s32 1, %s16
  %s19 = scalar_select 0, %s18, %s16
  $region1: #{tpu_custom_call.1} parent=0
    #allocation3 [shape = 'u8[16384]{0}', space=vmem, size = 0x4000, scoped, tag = 'input window, operand 0']
    #allocation4 [shape = 's32[2]{0}', space=sflag, size = 0x8, scoped, tag = 'scoped memory for tpu_custom_call.1']
    #allocation5 [shape = 's32[2]{0}', space=sflag, size = 0x8, scoped, tag = 'scoped memory for tpu_custom_call.1']
    #allocation6 [shape = 'u8[16384]{0}', space=vmem, size = 0x4000, scoped, tag = 'input window, operand 1, single buffered']
    #allocation7 [shape = 's32[1]{0}', space=sflag, size = 0x4, scoped, tag = 'scoped memory for tpu_custom_call.1']
    #allocation8 [shape = 'u8[512]{0}', space=vmem, size = 0x400, scoped, tag = 'input window, operand 2, single buffered']
    #allocation9 [shape = 'u8[16384]{0}', space=vmem, size = 0x4000, scoped, tag = 'input window, operand 3, single buffered']
    #allocation10 [shape = 's32[1]{0}', space=sflag, size = 0x4, scoped, tag = 'scoped memory for tpu_custom_call.1']
    #allocation11 [shape = 'u8[512]{0}', space=vmem, size = 0x400, scoped, tag = 'input window, operand 4, single buffered']
    #allocation12 [shape = 'u8[16384]{0}', space=vmem, size = 0x4000, scoped, tag = 'input window, operand 5, single buffered']
    #allocation13 [shape = 's32[1]{0}', space=sflag, size = 0x4, scoped, tag = 'scoped memory for tpu_custom_call.1']
    #allocation14 [shape = 'u8[512]{0}', space=vmem, size = 0x400, scoped, tag = 'input window, operand 6, single buffered']
    #allocation15 [shape = 'u8[512]{0}', space=vmem, size = 0x400, scoped, tag = 'input window, operand 7, single buffered']
    #allocation16 [shape = 's32[1]{0}', space=sflag, size = 0x4, scoped, tag = 'scoped memory for tpu_custom_call.1']
    #allocation17 [shape = 'u8[512]{0}', space=vmem, size = 0x400, scoped, tag = 'input window, operand 8, single buffered']
    #allocation18 [shape = 'u8[16384]{0}', space=vmem, size = 0x4000, scoped, tag = 'input window, operand 9, single buffered']
    #allocation19 [shape = 's32[1]{0}', space=sflag, size = 0x4, scoped, tag = 'scoped memory for tpu_custom_call.1']
    #allocation20 [shape = 'u8[512]{0}', space=vmem, size = 0x400, scoped, tag = 'input window, operand 10, single buffered']
    #allocation21 [shape = 'u8[65536]{0}', space=vmem, size = 0x10000, scoped, tag = 'input window, operand 11, single buffered']
    #allocation22 [shape = 's32[1]{0}', space=sflag, size = 0x4, scoped, tag = 'scoped memory for tpu_custom_call.1']
    #allocation23 [shape = 'u8[512]{0}', space=vmem, size = 0x400, scoped, tag = 'input window, operand 12, single buffered']
    #allocation24 [shape = 'u8[512]{0}', space=vmem, size = 0x400, scoped, tag = 'input window, operand 13, single buffered']
    #allocation25 [shape = 's32[1]{0}', space=sflag, size = 0x4, scoped, tag = 'scoped memory for tpu_custom_call.1']
    #allocation26 [shape = 'u8[512]{0}', space=vmem, size = 0x400, scoped, tag = 'input window, operand 14, single buffered']
    #allocation27 [shape = 'u8[8192]{0}', space=vmem, size = 0x2000, scoped, tag = 'output window, operand 0']
    %20 = vsyncpa [#allocation4], 0
    %s21 = scalar_lea.sflag [#allocation4], 1
    %22 = vsyncpa %s21, 0
    %23 = vsyncpa [#allocation7], 0
    %24 = vsyncpa [#allocation10], 0
    %25 = vsyncpa [#allocation13], 0
    %26 = vsyncpa [#allocation16], 0
    %27 = vsyncpa [#allocation19], 0
    %28 = vsyncpa [#allocation22], 0
    %29 = vsyncpa [#allocation25], 0
    %30 = vsyncpa [#allocation5], 0
    %s31 = scalar_lea.sflag [#allocation5], 1
    %32 = vsyncpa %s31, 0
    loop: start=0, step=1, limit=6
    $region2: #{tpu_custom_call.1} parent=1 // loop_pre_header
      _
    $region3: #{tpu_custom_call.1} parent=1 // loop_header
      %s34 = sphi 0, %s38
      %p35 = scmp.ge.s32.totalorder %s34, 6
      %s41 = sphi 0, %s53
      %s42 = sphi 0, %s49
      %s43 = sphi 0, %s41
      %s44 = sphi 0, %s42
      %s45 = sphi 0, %s43
      %s46 = sphi 0, %s44
      %s56 = sphi 0, %s58
      %s59 = sphi 0, %s56
      %s60 = sphi 0, %s59
      %s76 = sphi 0, %s60
      %s80 = sphi 0, %s80
      %s82 = sphi 0, %s80
      %s83 = sphi 0, %s82
      %s97 = sphi 0, %s83
      %s101 = sphi 0, %s101
      %s103 = sphi 0, %s101
      %s104 = sphi 0, %s103
      %s118 = sphi 0, %s104
      %s122 = sphi 0, %s122
      %s124 = sphi 0, %s122
      %s125 = sphi 0, %s124
      %s139 = sphi 0, %s125
      %s143 = sphi 0, %s143
      %s145 = sphi 0, %s143
      %s146 = sphi 0, %s145
      %s160 = sphi 0, %s146
      %s164 = sphi 0, %s164
      %s166 = sphi 0, %s164
      %s167 = sphi 0, %s166
      %s181 = sphi 0, %s167
      %s185 = sphi 0, %s185
      %s187 = sphi 0, %s185
      %s188 = sphi 0, %s187
      %s202 = sphi 0, %s188
      %s206 = sphi 0, %s206
      %s208 = sphi 0, %s206
      %s209 = sphi 0, %s208
      %s223 = sphi 0, %s209
      %s227 = sphi 0, %s227
      %s229 = sphi 0, %s227
      %s230 = sphi 0, %s229
      %s244 = sphi 0, %s230
      %s248 = sphi 0, %s248
      %s250 = sphi 0, %s248
      %s251 = sphi 0, %s250
      %s265 = sphi 0, %s251
      %s269 = sphi 0, %s269
      %s271 = sphi 0, %s269
      %s272 = sphi 0, %s271
      %s286 = sphi 0, %s272
      %s290 = sphi 0, %s290
      %s292 = sphi 0, %s290
      %s293 = sphi 0, %s292
      %s307 = sphi 0, %s293
      %s311 = sphi 0, %s311
      %s313 = sphi 0, %s311
      %s314 = sphi 0, %s313
      %s328 = sphi 0, %s314
      %s332 = sphi 0, %s332
      %s334 = sphi 0, %s332
      %s335 = sphi 0, %s334
      %s349 = sphi 0, %s335
      %s353 = sphi 0, %s353
      %s355 = sphi 0, %s353
      %s356 = sphi 0, %s355
      %s370 = sphi 0, %s356
      %s378 = sphi 0, %s380
      %s381 = sphi 0, %s378
      %s382 = sphi 0, %s381
      %s398 = sphi 0, %s382
    $region4: #{tpu_custom_call.1} parent=1 // loop_header_branch
      %37 = sbr.rel (%p35) target = $region8
    $region5: #{tpu_custom_call.1} parent=1 // loop_body
      %s39 = ssub.s32 %s34, 1
      %s40 = ssub.s32 %s34, 2
      %s47 = sadd.s32 1, %s42
      %p48 = scmp.ge.s32.totalorder %s47, 2
      %s49 = scalar_select %p48, 0, %s47
      %s50 = sadd.s32 1, %s41
      %s51 = scalar_select %p48, %s50, %s41
      %p52 = scmp.ge.s32.totalorder %s51, 2
      %s53 = scalar_select %p52, 0, %s51
      %s54 = ssub.s32 %s41, %s53
      %p55 = scmp.eq.s32.totalorder %s54, 0
      %s57 = sadd.s32 %s56, 1
      %s58 = scalar_select %p55, %s56, %s57
      %p61 = pneg %p55
      %p62 = scmp.eq.s32.totalorder %s34, 3
      %p63 = por %p61, %p62
      %p64 = scmp.ne.s32.totalorder %s56, %s59
      %p65 = scmp.eq.s32.totalorder %s34, 0
      %p66 = por %p64, %p65
      %p67 = scmp.ne.s32.totalorder %s56, %s59
      %p68 = scmp.eq.s32.totalorder %s39, 3
      %p69 = por %p67, %p68
      %p70 = scmp.ne.s32.totalorder %s59, %s60
      %p71 = scmp.eq.s32.totalorder %s39, 0
      %p72 = por %p70, %p71
      %p73 = scmp.ne.s32.totalorder %s59, %s60
      %p74 = scmp.eq.s32.totalorder %s40, 3
      %p75 = por %p73, %p74
      %p77 = scmp.ne.s32.totalorder %s60, %s76
      %p78 = scmp.eq.s32.totalorder %s40, 0
      %p79 = por %p77, %p78
      %s81 = sadd.s32 %s80, 1
      %p84 = scmp.eq.s32.totalorder %s34, 3
      %p85 = scmp.ne.s32.totalorder %s80, %s82
      %p86 = scmp.eq.s32.totalorder %s34, 0
      %p87 = por %p85, %p86
      %p88 = scmp.ne.s32.totalorder %s80, %s82
      %p89 = scmp.eq.s32.totalorder %s39, 3
      %p90 = por %p88, %p89
      %p91 = scmp.ne.s32.totalorder %s82, %s83
      %p92 = scmp.eq.s32.totalorder %s39, 0
      %p93 = por %p91, %p92
      %p94 = scmp.ne.s32.totalorder %s82, %s83
      %p95 = scmp.eq.s32.totalorder %s40, 3
      %p96 = por %p94, %p95
      %p98 = scmp.ne.s32.totalorder %s83, %s97
      %p99 = scmp.eq.s32.totalorder %s40, 0
      %p100 = por %p98, %p99
      %s102 = sadd.s32 %s101, 1
      %p105 = scmp.eq.s32.totalorder %s34, 3
      %p106 = scmp.ne.s32.totalorder %s101, %s103
      %p107 = scmp.eq.s32.totalorder %s34, 0
      %p108 = por %p106, %p107
      %p109 = scmp.ne.s32.totalorder %s101, %s103
      %p110 = scmp.eq.s32.totalorder %s39, 3
      %p111 = por %p109, %p110
      %p112 = scmp.ne.s32.totalorder %s103, %s104
      %p113 = scmp.eq.s32.totalorder %s39, 0
      %p114 = por %p112, %p113
      %p115 = scmp.ne.s32.totalorder %s103, %s104
      %p116 = scmp.eq.s32.totalorder %s40, 3
      %p117 = por %p115, %p116
      %p119 = scmp.ne.s32.totalorder %s104, %s118
      %p120 = scmp.eq.s32.totalorder %s40, 0
      %p121 = por %p119, %p120
      %s123 = sadd.s32 %s122, 1
      %p126 = scmp.eq.s32.totalorder %s34, 3
      %p127 = scmp.ne.s32.totalorder %s122, %s124
      %p128 = scmp.eq.s32.totalorder %s34, 0
      %p129 = por %p127, %p128
      %p130 = scmp.ne.s32.totalorder %s122, %s124
      %p131 = scmp.eq.s32.totalorder %s39, 3
      %p132 = por %p130, %p131
      %p133 = scmp.ne.s32.totalorder %s124, %s125
      %p134 = scmp.eq.s32.totalorder %s39, 0
      %p135 = por %p133, %p134
      %p136 = scmp.ne.s32.totalorder %s124, %s125
      %p137 = scmp.eq.s32.totalorder %s40, 3
      %p138 = por %p136, %p137
      %p140 = scmp.ne.s32.totalorder %s125, %s139
      %p141 = scmp.eq.s32.totalorder %s40, 0
      %p142 = por %p140, %p141
      %s144 = sadd.s32 %s143, 1
      %p147 = scmp.eq.s32.totalorder %s34, 3
      %p148 = scmp.ne.s32.totalorder %s143, %s145
      %p149 = scmp.eq.s32.totalorder %s34, 0
      %p150 = por %p148, %p149
      %p151 = scmp.ne.s32.totalorder %s143, %s145
      %p152 = scmp.eq.s32.totalorder %s39, 3
      %p153 = por %p151, %p152
      %p154 = scmp.ne.s32.totalorder %s145, %s146
      %p155 = scmp.eq.s32.totalorder %s39, 0
      %p156 = por %p154, %p155
      %p157 = scmp.ne.s32.totalorder %s145, %s146
      %p158 = scmp.eq.s32.totalorder %s40, 3
      %p159 = por %p157, %p158
      %p161 = scmp.ne.s32.totalorder %s146, %s160
      %p162 = scmp.eq.s32.totalorder %s40, 0
      %p163 = por %p161, %p162
      %s165 = sadd.s32 %s164, 1
      %p168 = scmp.eq.s32.totalorder %s34, 3
      %p169 = scmp.ne.s32.totalorder %s164, %s166
      %p170 = scmp.eq.s32.totalorder %s34, 0
      %p171 = por %p169, %p170
      %p172 = scmp.ne.s32.totalorder %s164, %s166
      %p173 = scmp.eq.s32.totalorder %s39, 3
      %p174 = por %p172, %p173
      %p175 = scmp.ne.s32.totalorder %s166, %s167
      %p176 = scmp.eq.s32.totalorder %s39, 0
      %p177 = por %p175, %p176
      %p178 = scmp.ne.s32.totalorder %s166, %s167
      %p179 = scmp.eq.s32.totalorder %s40, 3
      %p180 = por %p178, %p179
      %p182 = scmp.ne.s32.totalorder %s167, %s181
      %p183 = scmp.eq.s32.totalorder %s40, 0
      %p184 = por %p182, %p183
      %s186 = sadd.s32 %s185, 1
      %p189 = scmp.eq.s32.totalorder %s34, 3
      %p190 = scmp.ne.s32.totalorder %s185, %s187
      %p191 = scmp.eq.s32.totalorder %s34, 0
      %p192 = por %p190, %p191
      %p193 = scmp.ne.s32.totalorder %s185, %s187
      %p194 = scmp.eq.s32.totalorder %s39, 3
      %p195 = por %p193, %p194
      %p196 = scmp.ne.s32.totalorder %s187, %s188
      %p197 = scmp.eq.s32.totalorder %s39, 0
      %p198 = por %p196, %p197
      %p199 = scmp.ne.s32.totalorder %s187, %s188
      %p200 = scmp.eq.s32.totalorder %s40, 3
      %p201 = por %p199, %p200
      %p203 = scmp.ne.s32.totalorder %s188, %s202
      %p204 = scmp.eq.s32.totalorder %s40, 0
      %p205 = por %p203, %p204
      %s207 = sadd.s32 %s206, 1
      %p210 = scmp.eq.s32.totalorder %s34, 3
      %p211 = scmp.ne.s32.totalorder %s206, %s208
      %p212 = scmp.eq.s32.totalorder %s34, 0
      %p213 = por %p211, %p212
      %p214 = scmp.ne.s32.totalorder %s206, %s208
      %p215 = scmp.eq.s32.totalorder %s39, 3
      %p216 = por %p214, %p215
      %p217 = scmp.ne.s32.totalorder %s208, %s209
      %p218 = scmp.eq.s32.totalorder %s39, 0
      %p219 = por %p217, %p218
      %p220 = scmp.ne.s32.totalorder %s208, %s209
      %p221 = scmp.eq.s32.totalorder %s40, 3
      %p222 = por %p220, %p221
      %p224 = scmp.ne.s32.totalorder %s209, %s223
      %p225 = scmp.eq.s32.totalorder %s40, 0
      %p226 = por %p224, %p225
      %s228 = sadd.s32 %s227, 1
      %p231 = scmp.eq.s32.totalorder %s34, 3
      %p232 = scmp.ne.s32.totalorder %s227, %s229
      %p233 = scmp.eq.s32.totalorder %s34, 0
      %p234 = por %p232, %p233
      %p235 = scmp.ne.s32.totalorder %s227, %s229
      %p236 = scmp.eq.s32.totalorder %s39, 3
      %p237 = por %p235, %p236
      %p238 = scmp.ne.s32.totalorder %s229, %s230
      %p239 = scmp.eq.s32.totalorder %s39, 0
      %p240 = por %p238, %p239
      %p241 = scmp.ne.s32.totalorder %s229, %s230
      %p242 = scmp.eq.s32.totalorder %s40, 3
      %p243 = por %p241, %p242
      %p245 = scmp.ne.s32.totalorder %s230, %s244
      %p246 = scmp.eq.s32.totalorder %s40, 0
      %p247 = por %p245, %p246
      %s249 = sadd.s32 %s248, 1
      %p252 = scmp.eq.s32.totalorder %s34, 3
      %p253 = scmp.ne.s32.totalorder %s248, %s250
      %p254 = scmp.eq.s32.totalorder %s34, 0
      %p255 = por %p253, %p254
      %p256 = scmp.ne.s32.totalorder %s248, %s250
      %p257 = scmp.eq.s32.totalorder %s39, 3
      %p258 = por %p256, %p257
      %p259 = scmp.ne.s32.totalorder %s250, %s251
      %p260 = scmp.eq.s32.totalorder %s39, 0
      %p261 = por %p259, %p260
      %p262 = scmp.ne.s32.totalorder %s250, %s251
      %p263 = scmp.eq.s32.totalorder %s40, 3
      %p264 = por %p262, %p263
      %p266 = scmp.ne.s32.totalorder %s251, %s265
      %p267 = scmp.eq.s32.totalorder %s40, 0
      %p268 = por %p266, %p267
      %s270 = sadd.s32 %s269, 1
      %p273 = scmp.eq.s32.totalorder %s34, 3
      %p274 = scmp.ne.s32.totalorder %s269, %s271
      %p275 = scmp.eq.s32.totalorder %s34, 0
      %p276 = por %p274, %p275
      %p277 = scmp.ne.s32.totalorder %s269, %s271
      %p278 = scmp.eq.s32.totalorder %s39, 3
      %p279 = por %p277, %p278
      %p280 = scmp.ne.s32.totalorder %s271, %s272
      %p281 = scmp.eq.s32.totalorder %s39, 0
      %p282 = por %p280, %p281
      %p283 = scmp.ne.s32.totalorder %s271, %s272
      %p284 = scmp.eq.s32.totalorder %s40, 3
      %p285 = por %p283, %p284
      %p287 = scmp.ne.s32.totalorder %s272, %s286
      %p288 = scmp.eq.s32.totalorder %s40, 0
      %p289 = por %p287, %p288
      %s291 = sadd.s32 %s290, 1
      %p294 = scmp.eq.s32.totalorder %s34, 3
      %p295 = scmp.ne.s32.totalorder %s290, %s292
      %p296 = scmp.eq.s32.totalorder %s34, 0
      %p297 = por %p295, %p296
      %p298 = scmp.ne.s32.totalorder %s290, %s292
      %p299 = scmp.eq.s32.totalorder %s39, 3
      %p300 = por %p298, %p299
      %p301 = scmp.ne.s32.totalorder %s292, %s293
      %p302 = scmp.eq.s32.totalorder %s39, 0
      %p303 = por %p301, %p302
      %p304 = scmp.ne.s32.totalorder %s292, %s293
      %p305 = scmp.eq.s32.totalorder %s40, 3
      %p306 = por %p304, %p305
      %p308 = scmp.ne.s32.totalorder %s293, %s307
      %p309 = scmp.eq.s32.totalorder %s40, 0
      %p310 = por %p308, %p309
      %s312 = sadd.s32 %s311, 1
      %p315 = scmp.eq.s32.totalorder %s34, 3
      %p316 = scmp.ne.s32.totalorder %s311, %s313
      %p317 = scmp.eq.s32.totalorder %s34, 0
      %p318 = por %p316, %p317
      %p319 = scmp.ne.s32.totalorder %s311, %s313
      %p320 = scmp.eq.s32.totalorder %s39, 3
      %p321 = por %p319, %p320
      %p322 = scmp.ne.s32.totalorder %s313, %s314
      %p323 = scmp.eq.s32.totalorder %s39, 0
      %p324 = por %p322, %p323
      %p325 = scmp.ne.s32.totalorder %s313, %s314
      %p326 = scmp.eq.s32.totalorder %s40, 3
      %p327 = por %p325, %p326
      %p329 = scmp.ne.s32.totalorder %s314, %s328
      %p330 = scmp.eq.s32.totalorder %s40, 0
      %p331 = por %p329, %p330
      %s333 = sadd.s32 %s332, 1
      %p336 = scmp.eq.s32.totalorder %s34, 3
      %p337 = scmp.ne.s32.totalorder %s332, %s334
      %p338 = scmp.eq.s32.totalorder %s34, 0
      %p339 = por %p337, %p338
      %p340 = scmp.ne.s32.totalorder %s332, %s334
      %p341 = scmp.eq.s32.totalorder %s39, 3
      %p342 = por %p340, %p341
      %p343 = scmp.ne.s32.totalorder %s334, %s335
      %p344 = scmp.eq.s32.totalorder %s39, 0
      %p345 = por %p343, %p344
      %p346 = scmp.ne.s32.totalorder %s334, %s335
      %p347 = scmp.eq.s32.totalorder %s40, 3
      %p348 = por %p346, %p347
      %p350 = scmp.ne.s32.totalorder %s335, %s349
      %p351 = scmp.eq.s32.totalorder %s40, 0
      %p352 = por %p350, %p351
      %s354 = sadd.s32 %s353, 1
      %p357 = scmp.eq.s32.totalorder %s34, 3
      %p358 = scmp.ne.s32.totalorder %s353, %s355
      %p359 = scmp.eq.s32.totalorder %s34, 0
      %p360 = por %p358, %p359
      %p361 = scmp.ne.s32.totalorder %s353, %s355
      %p362 = scmp.eq.s32.totalorder %s39, 3
      %p363 = por %p361, %p362
      %p364 = scmp.ne.s32.totalorder %s355, %s356
      %p365 = scmp.eq.s32.totalorder %s39, 0
      %p366 = por %p364, %p365
      %p367 = scmp.ne.s32.totalorder %s355, %s356
      %p368 = scmp.eq.s32.totalorder %s40, 3
      %p369 = por %p367, %p368
      %p371 = scmp.ne.s32.totalorder %s356, %s370
      %p372 = scmp.eq.s32.totalorder %s40, 0
      %p373 = por %p371, %p372
      %s374 = ssub.s32 %s41, %s53
      %s375 = ssub.s32 %s42, %s49
      %s376 = sor.u32 %s374, %s375
      %p377 = scmp.eq.s32.totalorder %s376, 0
      %s379 = sadd.s32 %s378, 1
      %s380 = scalar_select %p377, %s378, %s379
      %p383 = pneg %p377
      %p384 = scmp.eq.s32.totalorder %s34, 3
      %p385 = por %p383, %p384
      %p386 = scmp.ne.s32.totalorder %s378, %s381
      %p387 = scmp.eq.s32.totalorder %s34, 0
      %p388 = por %p386, %p387
      %p389 = scmp.ne.s32.totalorder %s378, %s381
      %p390 = scmp.eq.s32.totalorder %s39, 3
      %p391 = por %p389, %p390
      %p392 = scmp.ne.s32.totalorder %s381, %s382
      %p393 = scmp.eq.s32.totalorder %s39, 0
      %p394 = por %p392, %p393
      %p395 = scmp.ne.s32.totalorder %s381, %s382
      %p396 = scmp.eq.s32.totalorder %s40, 3
      %p397 = por %p395, %p396
      %p399 = scmp.ne.s32.totalorder %s382, %s398
      %p400 = scmp.eq.s32.totalorder %s40, 0
      %p401 = por %p399, %p400
      %p402 = scmp.le.s32.totalorder 1, %s34
      %p403 = scmp.lt.s32.totalorder %s34, 5
      %p404 = pnand %p402, %p403
      %p405 = pneg %p404
      // Predicated region
      $region9: #{tpu_custom_call.1} parent=5 // pred_check
        _
      $region10: #{tpu_custom_call.1} parent=5 // pred_check_branch
        %407 = sbr.rel (%p404) target = $region12
      $region11: #{tpu_custom_call.1} parent=5 // pred_region
        %s408 = ssub.s32 %s34, 1
        // Predicated region
        $region13: #{tpu_custom_call.1} parent=11 // pred_check
          %p409 = pneg %p93
        $region14: #{tpu_custom_call.1} parent=11 // pred_check_branch
          %411 = sbr.rel (%p409) target = $region16
        $region15: #{tpu_custom_call.1} parent=11 // pred_region
          %s413 = ssub.s32 512, 512
          %414 = vsyncadd [#allocation7], %s413
          %s415 = sshll.u32 [#allocation6], 4
          %s416 = int_to_ptr.vmem [resolvable:$true] %s415
          %421 = dma.hbm_to_vmem [thread:$0]  %s1, 512, %s416, [#allocation7], 128, 128, 8
        $region16: #{tpu_custom_call.1} parent=11 // pred_fallthru
          _
        // Predicated region
        $region17: #{tpu_custom_call.1} parent=11 // pred_check
          %p422 = pneg %p114
        $region18: #{tpu_custom_call.1} parent=11 // pred_check_branch
          %424 = sbr.rel (%p422) target = $region20
        $region19: #{tpu_custom_call.1} parent=11 // pred_region
          %s426 = ssub.s32 16, 16
          %427 = vsyncadd [#allocation7], %s426
          %s429 = sshll.u32 [#allocation8], 4
          %s430 = int_to_ptr.vmem [resolvable:$true] %s429
          %432 = dma.hbm_to_vmem [thread:$0]  %s2, 16, %s430, [#allocation7]
        $region20: #{tpu_custom_call.1} parent=11 // pred_fallthru
          _
        // Predicated region
        $region21: #{tpu_custom_call.1} parent=11 // pred_check
          %p433 = pneg %p135
        $region22: #{tpu_custom_call.1} parent=11 // pred_check_branch
          %435 = sbr.rel (%p433) target = $region24
        $region23: #{tpu_custom_call.1} parent=11 // pred_region
          %s437 = ssub.s32 512, 512
          %438 = vsyncadd [#allocation10], %s437
          %s439 = sshll.u32 [#allocation9], 4
          %s440 = int_to_ptr.vmem [resolvable:$true] %s439
          %445 = dma.hbm_to_vmem [thread:$0]  %s3, 512, %s440, [#allocation10], 128, 128, 8
        $region24: #{tpu_custom_call.1} parent=11 // pred_fallthru
          _
        // Predicated region
        $region25: #{tpu_custom_call.1} parent=11 // pred_check
          %p446 = pneg %p156
        $region26: #{tpu_custom_call.1} parent=11 // pred_check_branch
          %448 = sbr.rel (%p446) target = $region28
        $region27: #{tpu_custom_call.1} parent=11 // pred_region
          %s450 = ssub.s32 16, 16
          %451 = vsyncadd [#allocation10], %s450
          %s453 = sshll.u32 [#allocation11], 4
          %s454 = int_to_ptr.vmem [resolvable:$true] %s453
          %456 = dma.hbm_to_vmem [thread:$0]  %s4, 16, %s454, [#allocation10]
        $region28: #{tpu_custom_call.1} parent=11 // pred_fallthru
          _
        // Predicated region
        $region29: #{tpu_custom_call.1} parent=11 // pred_check
          %p457 = pneg %p177
        $region30: #{tpu_custom_call.1} parent=11 // pred_check_branch
          %459 = sbr.rel (%p457) target = $region32
        $region31: #{tpu_custom_call.1} parent=11 // pred_region
          %s461 = ssub.s32 512, 512
          %462 = vsyncadd [#allocation13], %s461
          %s463 = sshll.u32 [#allocation12], 4
          %s464 = int_to_ptr.vmem [resolvable:$true] %s463
          %469 = dma.hbm_to_vmem [thread:$0]  %s5, 512, %s464, [#allocation13], 128, 128, 8
        $region32: #{tpu_custom_call.1} parent=11 // pred_fallthru
          _
        // Predicated region
        $region33: #{tpu_custom_call.1} parent=11 // pred_check
          %p470 = pneg %p198
        $region34: #{tpu_custom_call.1} parent=11 // pred_check_branch
          %472 = sbr.rel (%p470) target = $region36
        $region35: #{tpu_custom_call.1} parent=11 // pred_region
          %s474 = ssub.s32 16, 16
          %475 = vsyncadd [#allocation13], %s474
          %s477 = sshll.u32 [#allocation14], 4
          %s478 = int_to_ptr.vmem [resolvable:$true] %s477
          %480 = dma.hbm_to_vmem [thread:$0]  %s6, 16, %s478, [#allocation13]
        $region36: #{tpu_custom_call.1} parent=11 // pred_fallthru
          _
        // Predicated region
        $region37: #{tpu_custom_call.1} parent=11 // pred_check
          %p481 = pneg %p219
        $region38: #{tpu_custom_call.1} parent=11 // pred_check_branch
          %483 = sbr.rel (%p481) target = $region40
        $region39: #{tpu_custom_call.1} parent=11 // pred_region
          %s485 = ssub.s32 16, 16
          %486 = vsyncadd [#allocation16], %s485
          %s488 = sshll.u32 [#allocation15], 4
          %s489 = int_to_ptr.vmem [resolvable:$true] %s488
          %491 = dma.hbm_to_vmem [thread:$0]  %s7, 16, %s489, [#allocation16]
        $region40: #{tpu_custom_call.1} parent=11 // pred_fallthru
          _
        // Predicated region
        $region41: #{tpu_custom_call.1} parent=11 // pred_check
          %p492 = pneg %p240
        $region42: #{tpu_custom_call.1} parent=11 // pred_check_branch
          %494 = sbr.rel (%p492) target = $region44
        $region43: #{tpu_custom_call.1} parent=11 // pred_region
          %s496 = ssub.s32 16, 16
          %497 = vsyncadd [#allocation16], %s496
          %s499 = sshll.u32 [#allocation17], 4
          %s500 = int_to_ptr.vmem [resolvable:$true] %s499
          %502 = dma.hbm_to_vmem [thread:$0]  %s8, 16, %s500, [#allocation16]
        $region44: #{tpu_custom_call.1} parent=11 // pred_fallthru
          _
        // Predicated region
        $region45: #{tpu_custom_call.1} parent=11 // pred_check
          %p503 = pneg %p261
        $region46: #{tpu_custom_call.1} parent=11 // pred_check_branch
          %505 = sbr.rel (%p503) target = $region48
        $region47: #{tpu_custom_call.1} parent=11 // pred_region
          %s507 = ssub.s32 512, 512
          %508 = vsyncadd [#allocation19], %s507
          %s509 = sshll.u32 [#allocation18], 4
          %s510 = int_to_ptr.vmem [resolvable:$true] %s509
          %515 = dma.hbm_to_vmem [thread:$0]  %s9, 512, %s510, [#allocation19], 128, 128, 8
        $region48: #{tpu_custom_call.1} parent=11 // pred_fallthru
          _
        // Predicated region
        $region49: #{tpu_custom_call.1} parent=11 // pred_check
          %p516 = pneg %p282
        $region50: #{tpu_custom_call.1} parent=11 // pred_check_branch
          %518 = sbr.rel (%p516) target = $region52
        $region51: #{tpu_custom_call.1} parent=11 // pred_region
          %s520 = ssub.s32 16, 16
          %521 = vsyncadd [#allocation19], %s520
          %s523 = sshll.u32 [#allocation20], 4
          %s524 = int_to_ptr.vmem [resolvable:$true] %s523
          %526 = dma.hbm_to_vmem [thread:$0]  %s10, 16, %s524, [#allocation19]
        $region52: #{tpu_custom_call.1} parent=11 // pred_fallthru
          _
        // Predicated region
        $region53: #{tpu_custom_call.1} parent=11 // pred_check
          %p527 = pneg %p303
        $region54: #{tpu_custom_call.1} parent=11 // pred_check_branch
          %529 = sbr.rel (%p527) target = $region56
        $region55: #{tpu_custom_call.1} parent=11 // pred_region
          %s531 = ssub.s32 2048, 2048
          %532 = vsyncadd [#allocation22], %s531
          %s533 = sshll.u32 [#allocation21], 4
          %s534 = int_to_ptr.vmem [resolvable:$true] %s533
          %539 = dma.hbm_to_vmem [thread:$0]  %s11, 2048, %s534, [#allocation22], 128, 128, 8
        $region56: #{tpu_custom_call.1} parent=11 // pred_fallthru
          _
        // Predicated region
        $region57: #{tpu_custom_call.1} parent=11 // pred_check
          %p540 = pneg %p324
        $region58: #{tpu_custom_call.1} parent=11 // pred_check_branch
          %542 = sbr.rel (%p540) target = $region60
        $region59: #{tpu_custom_call.1} parent=11 // pred_region
          %s544 = ssub.s32 16, 16
          %545 = vsyncadd [#allocation22], %s544
          %s547 = sshll.u32 [#allocation23], 4
          %s548 = int_to_ptr.vmem [resolvable:$true] %s547
          %550 = dma.hbm_to_vmem [thread:$0]  %s12, 16, %s548, [#allocation22]
        $region60: #{tpu_custom_call.1} parent=11 // pred_fallthru
          _
        // Predicated region
        $region61: #{tpu_custom_call.1} parent=11 // pred_check
          %p551 = pneg %p345
        $region62: #{tpu_custom_call.1} parent=11 // pred_check_branch
          %553 = sbr.rel (%p551) target = $region64
        $region63: #{tpu_custom_call.1} parent=11 // pred_region
          %s555 = ssub.s32 16, 16
          %556 = vsyncadd [#allocation25], %s555
          %s558 = sshll.u32 [#allocation24], 4
          %s559 = int_to_ptr.vmem [resolvable:$true] %s558
          %561 = dma.hbm_to_vmem [thread:$0]  %s13, 16, %s559, [#allocation25]
        $region64: #{tpu_custom_call.1} parent=11 // pred_fallthru
          _
        // Predicated region
        $region65: #{tpu_custom_call.1} parent=11 // pred_check
          %p562 = pneg %p366
        $region66: #{tpu_custom_call.1} parent=11 // pred_check_branch
          %564 = sbr.rel (%p562) target = $region68
        $region67: #{tpu_custom_call.1} parent=11 // pred_region
          %s566 = ssub.s32 16, 16
          %567 = vsyncadd [#allocation25], %s566
          %s569 = sshll.u32 [#allocation26], 4
          %s570 = int_to_ptr.vmem [resolvable:$true] %s569
          %572 = dma.hbm_to_vmem [thread:$0]  %s14, 16, %s570, [#allocation25]
        $region68: #{tpu_custom_call.1} parent=11 // pred_fallthru
          _
      $region12: #{tpu_custom_call.1} parent=5 // pred_fallthru
        _
      %p573 = scmp.lt.s32.totalorder %s34, 4
      // Predicated region
      $region69: #{tpu_custom_call.1} parent=5 // pred_check
        %p574 = pneg %p573
      $region70: #{tpu_custom_call.1} parent=5 // pred_check_branch
        %576 = sbr.rel (%p574) target = $region72
      $region71: #{tpu_custom_call.1} parent=5 // pred_region
        // Predicated region
        $region73: #{tpu_custom_call.1} parent=71 // pred_check
          %p577 = pneg %p66
        $region74: #{tpu_custom_call.1} parent=71 // pred_check_branch
          %579 = sbr.rel (%p577) target = $region76
        $region75: #{tpu_custom_call.1} parent=71 // pred_region
          %s580 = sand.u32 %s56, 1
          %s581 = scalar_lea.sflag [#allocation4], %s580
          %s582 = sand.u32 %s56, 1
          %s583 = smul.addr %s582, 16
          %s584 = scalar_lea.vmem [#allocation3], %s583
          %s586 = ssub.s32 256, 256
          %587 = vsyncadd %s581, %s586
          %s588 = smul.addr %s41, 2
          %s589 = smul.addr %s588, 128
          %s590 = scalar_lea.hbm %s0, %s589
          %s591 = sshll.u32 %s584, 4
          %s592 = int_to_ptr.vmem [resolvable:$true] %s591
          %597 = dma.hbm_to_vmem [thread:$0]  %s590, 256, %s592, %s581, 128, 128, 8
        $region76: #{tpu_custom_call.1} parent=71 // pred_fallthru
          _
      $region72: #{tpu_custom_call.1} parent=5 // pred_fallthru
        _
      %p598 = scmp.le.s32.totalorder 1, %s34
      %p599 = scmp.lt.s32.totalorder %s34, 5
      %p600 = pnand %p598, %p599
      %p601 = pneg %p600
      // Predicated region
      $region77: #{tpu_custom_call.1} parent=5 // pred_check
        _
      $region78: #{tpu_custom_call.1} parent=5 // pred_check_branch
        %603 = sbr.rel (%p600) target = $region80
      $region79: #{tpu_custom_call.1} parent=5 // pred_region
        %s604 = ssub.s32 %s34, 1
        %s605 = sand.u32 %s59, 1
        %s606 = scalar_lea.sflag [#allocation4], %s605
        %s607 = sand.u32 %s59, 1
        %s608 = smul.addr %s607, 16
        %s609 = scalar_lea.vmem [#allocation3], %s608
        // Predicated region
        $region81: #{tpu_custom_call.1} parent=79 // pred_check
          %p610 = pneg %p72
        $region82: #{tpu_custom_call.1} parent=79 // pred_check_branch
          %612 = sbr.rel (%p610) target = $region84
        $region83: #{tpu_custom_call.1} parent=79 // pred_region
          %613 = dma.done %s606, 256
        $region84: #{tpu_custom_call.1} parent=79 // pred_fallthru
          _
        // Predicated region
        $region85: #{tpu_custom_call.1} parent=79 // pred_check
          %p614 = pneg %p93
        $region86: #{tpu_custom_call.1} parent=79 // pred_check_branch
          %616 = sbr.rel (%p614) target = $region88
        $region87: #{tpu_custom_call.1} parent=79 // pred_region
          %617 = dma.done [#allocation7], 512
        $region88: #{tpu_custom_call.1} parent=79 // pred_fallthru
          _
        // Predicated region
        $region89: #{tpu_custom_call.1} parent=79 // pred_check
          %p618 = pneg %p114
        $region90: #{tpu_custom_call.1} parent=79 // pred_check_branch
          %620 = sbr.rel (%p618) target = $region92
        $region91: #{tpu_custom_call.1} parent=79 // pred_region
          %621 = dma.done [#allocation7], 16
        $region92: #{tpu_custom_call.1} parent=79 // pred_fallthru
          _
        // Predicated region
        $region93: #{tpu_custom_call.1} parent=79 // pred_check
          %p622 = pneg %p135
        $region94: #{tpu_custom_call.1} parent=79 // pred_check_branch
          %624 = sbr.rel (%p622) target = $region96
        $region95: #{tpu_custom_call.1} parent=79 // pred_region
          %625 = dma.done [#allocation10], 512
        $region96: #{tpu_custom_call.1} parent=79 // pred_fallthru
          _
        // Predicated region
        $region97: #{tpu_custom_call.1} parent=79 // pred_check
          %p626 = pneg %p156
        $region98: #{tpu_custom_call.1} parent=79 // pred_check_branch
          %628 = sbr.rel (%p626) target = $region100
        $region99: #{tpu_custom_call.1} parent=79 // pred_region
          %629 = dma.done [#allocation10], 16
        $region100: #{tpu_custom_call.1} parent=79 // pred_fallthru
          _
        // Predicated region
        $region101: #{tpu_custom_call.1} parent=79 // pred_check
          %p630 = pneg %p177
        $region102: #{tpu_custom_call.1} parent=79 // pred_check_branch
          %632 = sbr.rel (%p630) target = $region104
        $region103: #{tpu_custom_call.1} parent=79 // pred_region
          %633 = dma.done [#allocation13], 512
        $region104: #{tpu_custom_call.1} parent=79 // pred_fallthru
          _
        // Predicated region
        $region105: #{tpu_custom_call.1} parent=79 // pred_check
          %p634 = pneg %p198
        $region106: #{tpu_custom_call.1} parent=79 // pred_check_branch
          %636 = sbr.rel (%p634) target = $region108
        $region107: #{tpu_custom_call.1} parent=79 // pred_region
          %637 = dma.done [#allocation13], 16
        $region108: #{tpu_custom_call.1} parent=79 // pred_fallthru
          _
        // Predicated region
        $region109: #{tpu_custom_call.1} parent=79 // pred_check
          %p638 = pneg %p219
        $region110: #{tpu_custom_call.1} parent=79 // pred_check_branch
          %640 = sbr.rel (%p638) target = $region112
        $region111: #{tpu_custom_call.1} parent=79 // pred_region
          %641 = dma.done [#allocation16], 16
        $region112: #{tpu_custom_call.1} parent=79 // pred_fallthru
          _
        // Predicated region
        $region113: #{tpu_custom_call.1} parent=79 // pred_check
          %p642 = pneg %p240
        $region114: #{tpu_custom_call.1} parent=79 // pred_check_branch
          %644 = sbr.rel (%p642) target = $region116
        $region115: #{tpu_custom_call.1} parent=79 // pred_region
          %645 = dma.done [#allocation16], 16
        $region116: #{tpu_custom_call.1} parent=79 // pred_fallthru
          _
        // Predicated region
        $region117: #{tpu_custom_call.1} parent=79 // pred_check
          %p646 = pneg %p261
        $region118: #{tpu_custom_call.1} parent=79 // pred_check_branch
          %648 = sbr.rel (%p646) target = $region120
        $region119: #{tpu_custom_call.1} parent=79 // pred_region
          %649 = dma.done [#allocation19], 512
        $region120: #{tpu_custom_call.1} parent=79 // pred_fallthru
          _
        // Predicated region
        $region121: #{tpu_custom_call.1} parent=79 // pred_check
          %p650 = pneg %p282
        $region122: #{tpu_custom_call.1} parent=79 // pred_check_branch
          %652 = sbr.rel (%p650) target = $region124
        $region123: #{tpu_custom_call.1} parent=79 // pred_region
          %653 = dma.done [#allocation19], 16
        $region124: #{tpu_custom_call.1} parent=79 // pred_fallthru
          _
        // Predicated region
        $region125: #{tpu_custom_call.1} parent=79 // pred_check
          %p654 = pneg %p303
        $region126: #{tpu_custom_call.1} parent=79 // pred_check_branch
          %656 = sbr.rel (%p654) target = $region128
        $region127: #{tpu_custom_call.1} parent=79 // pred_region
          %657 = dma.done [#allocation22], 2048
        $region128: #{tpu_custom_call.1} parent=79 // pred_fallthru
          _
        // Predicated region
        $region129: #{tpu_custom_call.1} parent=79 // pred_check
          %p658 = pneg %p324
        $region130: #{tpu_custom_call.1} parent=79 // pred_check_branch
          %660 = sbr.rel (%p658) target = $region132
        $region131: #{tpu_custom_call.1} parent=79 // pred_region
          %661 = dma.done [#allocation22], 16
        $region132: #{tpu_custom_call.1} parent=79 // pred_fallthru
          _
        // Predicated region
        $region133: #{tpu_custom_call.1} parent=79 // pred_check
          %p662 = pneg %p345
        $region134: #{tpu_custom_call.1} parent=79 // pred_check_branch
          %664 = sbr.rel (%p662) target = $region136
        $region135: #{tpu_custom_call.1} parent=79 // pred_region
          %665 = dma.done [#allocation25], 16
        $region136: #{tpu_custom_call.1} parent=79 // pred_fallthru
          _
        // Predicated region
        $region137: #{tpu_custom_call.1} parent=79 // pred_check
          %p666 = pneg %p366
        $region138: #{tpu_custom_call.1} parent=79 // pred_check_branch
          %668 = sbr.rel (%p666) target = $region140
        $region139: #{tpu_custom_call.1} parent=79 // pred_region
          %669 = dma.done [#allocation25], 16
        $region140: #{tpu_custom_call.1} parent=79 // pred_fallthru
          _
        %s670 = sand.u32 %s59, 1
        %s671 = scalar_lea.sflag [#allocation4], %s670
        %s672 = sand.u32 %s59, 1
        %s673 = smul.addr %s672, 16
        %s674 = scalar_lea.vmem [#allocation3], %s673
        %p675 = pneg %p72
        %p676 = pneg %p69
        %p677 = pneg %p93
        %p678 = pneg %p90
        %p679 = pneg %p114
        %p680 = pneg %p111
        %p681 = pneg %p135
        %p682 = pneg %p132
        %p683 = pneg %p156
        %p684 = pneg %p153
        %p685 = pneg %p177
        %p686 = pneg %p174
        %p687 = pneg %p198
        %p688 = pneg %p195
        %p689 = pneg %p219
        %p690 = pneg %p216
        %p691 = pneg %p240
        %p692 = pneg %p237
        %p693 = pneg %p261
        %p694 = pneg %p258
        %p695 = pneg %p282
        %p696 = pneg %p279
        %p697 = pneg %p303
        %p698 = pneg %p300
        %p699 = pneg %p324
        %p700 = pneg %p321
        %p701 = pneg %p345
        %p702 = pneg %p342
        %p703 = pneg %p366
        %p704 = pneg %p363
        %p705 = pneg %p394
        %p706 = pneg %p391
        %s707 = sand.u32 %s381, 1
        %s708 = scalar_lea.sflag [#allocation5], %s707
        %s709 = sand.u32 %s381, 1
        %s710 = smul.addr %s709, 8
        %s711 = scalar_lea.vmem [#allocation27], %s710
        %p712 = scmp.eq.s32.totalorder %s44, 0
        // Predicated region
        $region141: #{tpu_custom_call.1} parent=79 // pred_check
          %p713 = pneg %p712
        $region142: #{tpu_custom_call.1} parent=79 // pred_check_branch
          %715 = sbr.rel (%p713) target = $region144
        $region143: #{tpu_custom_call.1} parent=79 // pred_region
          %v716 = vld [vmem:[%s609] sm:$0xff]
          %v717 = vld [vmem:[%s609 + $0x8] sm:$0xff]
          %v718 = vld [vmem:[#allocation9] sm:$0xff]
          %v719 = vld [vmem:[#allocation9 + $0x8] sm:$0xff]
          %v720 = vld [vmem:[#allocation9 + $0x10] sm:$0xff]
          %v721 = vld [vmem:[#allocation9 + $0x18] sm:$0xff]
          %v722 = vld [vmem:[#allocation11] sm:$0x1]
          %v724 = vlaneseq
          %v725 = vshrl.u32 %v724, 7
          %v726 = vsub.s32 0, %v725
          %v727 = vrot.slane %v722, %v726
          %vm729 = vcmask 261120
          %v731 = vsel %vm729, %v716, 0
          %v734 = vsel %vm729, %v717, 0
          %736 = vmatprep.subr.mxu0 0.0
          %737 = vmatpush1.msra.mxu0 %v718
          %738 = vmatprep.subr.mxu0 0.0
          %739 = vmatpush1.msra.mxu0 %v719
          %740 = vmatprep.subr.mxu0 0.0
          %741 = vmatpush1.msra.mxu0 %v720
          %742 = vmatprep.subr.mxu0 0.0
          %743 = vmatpush1.msra.mxu0 %v721
          %744 = vmatprep.subr.mxu0 0.0
          %745 = vmatpush1.msra.mxu0 0.0
          %746 = vmatprep.subr.mxu0 0.0
          %747 = vmatpush1.msra.mxu0 0.0
          %748 = vmatprep.subr.mxu0 0.0
          %749 = vmatpush1.msra.mxu0 0.0
          %750 = vmatprep.subr.mxu0 0.0
          %751 = vmatpush1.msra.mxu0 0.0
          %752 = vmatprep.subr.mxu0 0.0
          %753 = vmatpush1.msra.mxu0 0.0
          %754 = vmatprep.subr.mxu0 0.0
          %755 = vmatpush1.msra.mxu0 0.0
          %756 = vmatprep.subr.mxu0 0.0
          %757 = vmatpush1.msra.mxu0 0.0
          %758 = vmatprep.subr.mxu0 0.0
          %759 = vmatpush1.msra.mxu0 0.0
          %760 = vmatprep.subr.mxu0 0.0
          %761 = vmatpush1.msra.mxu0 0.0
          %762 = vmatprep.subr.mxu0 0.0
          %763 = vmatpush1.msra.mxu0 0.0
          %764 = vmatprep.subr.mxu0 0.0
          %765 = vmatpush1.msra.mxu0 0.0
          %766 = vmatprep.subr.mxu0 0.0
          %767 = vmatpush1.msra.mxu0 0.0
          %768 = vmatprep.subr.mxu0 0.0
          %769 = vmatpush1.msra.mxu0 0.0
          %770 = vmatprep.subr.mxu0 0.0
          %771 = vmatpush1.msra.mxu0 0.0
          %772 = vmatprep.subr.mxu0 0.0
          %773 = vmatpush1.msra.mxu0 0.0
          %774 = vmatprep.subr.mxu0 0.0
          %775 = vmatpush1.msra.mxu0 0.0
          %776 = vmatprep.subr.mxu0 0.0
          %777 = vmatpush1.msra.mxu0 0.0
          %778 = vmatprep.subr.mxu0 0.0
          %779 = vmatpush1.msra.mxu0 0.0
          %780 = vmatprep.subr.mxu0 0.0
          %781 = vmatpush1.msra.mxu0 0.0
          %782 = vmatprep.subr.mxu0 0.0
          %783 = vmatpush1.msra.mxu0 0.0
          %784 = vmatprep.subr.mxu0 0.0
          %785 = vmatpush1.msra.mxu0 0.0
          %786 = vmatprep.subr.mxu0 0.0
          %787 = vmatpush1.msra.mxu0 0.0
          %788 = vmatprep.subr.mxu0 0.0
          %789 = vmatpush1.msra.mxu0 0.0
          %790 = vmatprep.subr.mxu0 0.0
          %791 = vmatpush1.msra.mxu0 0.0
          %792 = vmatprep.subr.mxu0 0.0
          %793 = vmatpush1.msra.mxu0 0.0
          %794 = vmatprep.subr.mxu0 0.0
          %795 = vmatpush1.msra.mxu0 0.0
          %796 = vmatprep.subr.mxu0 0.0
          %797 = vmatpush1.msra.mxu0 0.0
          %798 = vmatprep.subr.mxu0 0.0
          %799 = vmatpush1.msra.mxu0 0.0
          %800 = vmatprep.mubr.f32.mxu0 0.0
          %801 = vmatmul.mubr.f32.gmra.mrb[0].mxu0 %v731
          %v802 = vpop.f32.mrb[0].mxu0
          %v803 = vadd.f32 %v727, %v802
          %v804 = vpop.f32.mrb[0].mxu0
          %805 = vmatprep.mubr.f32.mxu0 0.0
          %806 = vmatmul.mubr.f32.gmra.mrb[0].mxu0 %v734
          %v807 = vpop.f32.mrb[0].mxu0
          %v808 = vadd.f32 %v727, %v807
          %v809 = vpop.f32.mrb[0].mxu0
          %810 = vdwg.mxu0
          %vm811 = vcmask 523264
          %812 = vst.msk [vmem:[#allocation2] sm:$0xff] %vm811, %v803
          %813 = vst.msk [vmem:[#allocation2 + $0x8] sm:$0xff] %vm811, %v808
        $region144: #{tpu_custom_call.1} parent=79 // pred_fallthru
          _
        %s814 = smul.u32 %s44, 8
        %s815 = scalar_lea.vmem %s609, %s814 [#allocation3]
        %v816 = vld [vmem:[%s815] sm:$0xff]
        %v817 = vld [vmem:[#allocation6] sm:$0xff]
        %v818 = vld [vmem:[#allocation6 + $0x8] sm:$0xff]
        %v819 = vld [vmem:[#allocation6 + $0x10] sm:$0xff]
        %v820 = vld [vmem:[#allocation6 + $0x18] sm:$0xff]
        %v821 = vld [vmem:[#allocation8] sm:$0x1]
        %v823 = vlaneseq
        %v824 = vshrl.u32 %v823, 7
        %v825 = vsub.s32 0, %v824
        %v826 = vrot.slane %v821, %v825
        %vm828 = vcmask 261120
        %v830 = vsel %vm828, %v816, 0
        %832 = vmatprep.subr.mxu0 0.0
        %833 = vmatpush1.msra.mxu0 %v817
        %834 = vmatprep.subr.mxu0 0.0
        %835 = vmatpush1.msra.mxu0 %v818
        %836 = vmatprep.subr.mxu0 0.0
        %837 = vmatpush1.msra.mxu0 %v819
        %838 = vmatprep.subr.mxu0 0.0
        %839 = vmatpush1.msra.mxu0 %v820
        %840 = vmatprep.subr.mxu0 0.0
        %841 = vmatpush1.msra.mxu0 0.0
        %842 = vmatprep.subr.mxu0 0.0
        %843 = vmatpush1.msra.mxu0 0.0
        %844 = vmatprep.subr.mxu0 0.0
        %845 = vmatpush1.msra.mxu0 0.0
        %846 = vmatprep.subr.mxu0 0.0
        %847 = vmatpush1.msra.mxu0 0.0
        %848 = vmatprep.subr.mxu0 0.0
        %849 = vmatpush1.msra.mxu0 0.0
        %850 = vmatprep.subr.mxu0 0.0
        %851 = vmatpush1.msra.mxu0 0.0
        %852 = vmatprep.subr.mxu0 0.0
        %853 = vmatpush1.msra.mxu0 0.0
        %854 = vmatprep.subr.mxu0 0.0
        %855 = vmatpush1.msra.mxu0 0.0
        %856 = vmatprep.subr.mxu0 0.0
        %857 = vmatpush1.msra.mxu0 0.0
        %858 = vmatprep.subr.mxu0 0.0
        %859 = vmatpush1.msra.mxu0 0.0
        %860 = vmatprep.subr.mxu0 0.0
        %861 = vmatpush1.msra.mxu0 0.0
        %862 = vmatprep.subr.mxu0 0.0
        %863 = vmatpush1.msra.mxu0 0.0
        %864 = vmatprep.subr.mxu0 0.0
        %865 = vmatpush1.msra.mxu0 0.0
        %866 = vmatprep.subr.mxu0 0.0
        %867 = vmatpush1.msra.mxu0 0.0
        %868 = vmatprep.subr.mxu0 0.0
        %869 = vmatpush1.msra.mxu0 0.0
        %870 = vmatprep.subr.mxu0 0.0
        %871 = vmatpush1.msra.mxu0 0.0
        %872 = vmatprep.subr.mxu0 0.0
        %873 = vmatpush1.msra.mxu0 0.0
        %874 = vmatprep.subr.mxu0 0.0
        %875 = vmatpush1.msra.mxu0 0.0
        %876 = vmatprep.subr.mxu0 0.0
        %877 = vmatpush1.msra.mxu0 0.0
        %878 = vmatprep.subr.mxu0 0.0
        %879 = vmatpush1.msra.mxu0 0.0
        %880 = vmatprep.subr.mxu0 0.0
        %881 = vmatpush1.msra.mxu0 0.0
        %882 = vmatprep.subr.mxu0 0.0
        %883 = vmatpush1.msra.mxu0 0.0
        %884 = vmatprep.subr.mxu0 0.0
        %885 = vmatpush1.msra.mxu0 0.0
        %886 = vmatprep.subr.mxu0 0.0
        %887 = vmatpush1.msra.mxu0 0.0
        %888 = vmatprep.subr.mxu0 0.0
        %889 = vmatpush1.msra.mxu0 0.0
        %890 = vmatprep.subr.mxu0 0.0
        %891 = vmatpush1.msra.mxu0 0.0
        %892 = vmatprep.subr.mxu0 0.0
        %893 = vmatpush1.msra.mxu0 0.0
        %894 = vmatprep.subr.mxu0 0.0
        %895 = vmatpush1.msra.mxu0 0.0
        %896 = vmatprep.mubr.f32.mxu0 0.0
        %897 = vmatmul.mubr.f32.gmra.mrb[0].mxu0 %v830
        %v898 = vpop.f32.mrb[0].mxu0
        %v899 = vadd.f32 %v826, %v898
        %v900 = vpop.f32.mrb[0].mxu0
        %901 = vdwg.mxu0
        %v902 = vld [vmem:[#allocation2] sm:$0xff]
        %v903 = vld [vmem:[#allocation2 + $0x8] sm:$0xff]
        %vm904 = vcmask 64512
        %v906 = vsel %vm904, %v899, 0
        %v909 = vsel %vm904, %v902, 0
        %v912 = vsel %vm904, %v903, 0
        %914 = vmatprep.subr.mxu0 0.0
        %915 = vmatpush1.xpose.msra.mxu0 %v909
        %916 = vmatprep.subr.mxu0 0.0
        %917 = vmatpush1.xpose.msra.mxu0 %v912
        %918 = vmatprep.subr.mxu0 0.0
        %919 = vmatpush1.xpose.msra.mxu0 0.0
        %920 = vmatprep.subr.mxu0 0.0
        %921 = vmatpush1.xpose.msra.mxu0 0.0
        %922 = vmatprep.subr.mxu0 0.0
        %923 = vmatpush1.xpose.msra.mxu0 0.0
        %924 = vmatprep.subr.mxu0 0.0
        %925 = vmatpush1.xpose.msra.mxu0 0.0
        %926 = vmatprep.subr.mxu0 0.0
        %927 = vmatpush1.xpose.msra.mxu0 0.0
        %928 = vmatprep.subr.mxu0 0.0
        %929 = vmatpush1.xpose.msra.mxu0 0.0
        %930 = vmatprep.subr.mxu0 0.0
        %931 = vmatpush1.xpose.msra.mxu0 0.0
        %932 = vmatprep.subr.mxu0 0.0
        %933 = vmatpush1.xpose.msra.mxu0 0.0
        %934 = vmatprep.subr.mxu0 0.0
        %935 = vmatpush1.xpose.msra.mxu0 0.0
        %936 = vmatprep.subr.mxu0 0.0
        %937 = vmatpush1.xpose.msra.mxu0 0.0
        %938 = vmatprep.subr.mxu0 0.0
        %939 = vmatpush1.xpose.msra.mxu0 0.0
        %940 = vmatprep.subr.mxu0 0.0
        %941 = vmatpush1.xpose.msra.mxu0 0.0
        %942 = vmatprep.subr.mxu0 0.0
        %943 = vmatpush1.xpose.msra.mxu0 0.0
        %944 = vmatprep.subr.mxu0 0.0
        %945 = vmatpush1.xpose.msra.mxu0 0.0
        %946 = vmatprep.subr.mxu0 0.0
        %947 = vmatpush1.xpose.msra.mxu0 0.0
        %948 = vmatprep.subr.mxu0 0.0
        %949 = vmatpush1.xpose.msra.mxu0 0.0
        %950 = vmatprep.subr.mxu0 0.0
        %951 = vmatpush1.xpose.msra.mxu0 0.0
        %952 = vmatprep.subr.mxu0 0.0
        %953 = vmatpush1.xpose.msra.mxu0 0.0
        %954 = vmatprep.subr.mxu0 0.0
        %955 = vmatpush1.xpose.msra.mxu0 0.0
        %956 = vmatprep.subr.mxu0 0.0
        %957 = vmatpush1.xpose.msra.mxu0 0.0
        %958 = vmatprep.subr.mxu0 0.0
        %959 = vmatpush1.xpose.msra.mxu0 0.0
        %960 = vmatprep.subr.mxu0 0.0
        %961 = vmatpush1.xpose.msra.mxu0 0.0
        %962 = vmatprep.subr.mxu0 0.0
        %963 = vmatpush1.xpose.msra.mxu0 0.0
        %964 = vmatprep.subr.mxu0 0.0
        %965 = vmatpush1.xpose.msra.mxu0 0.0
        %966 = vmatprep.subr.mxu0 0.0
        %967 = vmatpush1.xpose.msra.mxu0 0.0
        %968 = vmatprep.subr.mxu0 0.0
        %969 = vmatpush1.xpose.msra.mxu0 0.0
        %970 = vmatprep.subr.mxu0 0.0
        %971 = vmatpush1.xpose.msra.mxu0 0.0
        %972 = vmatprep.subr.mxu0 0.0
        %973 = vmatpush1.xpose.msra.mxu0 0.0
        %974 = vmatprep.subr.mxu0 0.0
        %975 = vmatpush1.xpose.msra.mxu0 0.0
        %976 = vmatprep.subr.mxu0 0.0
        %977 = vmatpush1.xpose.msra.mxu0 0.0
        %978 = vmatprep.mubr.f32.mxu0 0.0
        %979 = vmatmul.mubr.f32.gmra.mrb[0].mxu0 %v906
        %v980 = vpop.f32.mrb[0].mxu0
        %v981 = vadd.f32 0.0, %v980
        %v982 = vpop.f32.mrb[0].mxu0
        %983 = vdwg.mxu0
        %vm984 = vcmask 130048
        %v985 = vsel %vm984, %v981, -inf
        %986 = vmax.xlane.f32.xlu0 %v985
        %v987 = vpop.xlane.xlu0 %986
        %v988 = vsub.f32 %v981, %v987
        %v989 = vmul.f32 %v988, 1.442695
        %v990 = vpow.pop %v989
        %v991 = vsel %vm984, %v990, 0.0
        %992 = vadd.xlane.f32.xlu0 %v991
        %v993 = vpop.xlane.xlu0 %992
        %v994 = vrcp.pop %v993
        %v995 = vmul.f32 %v990, %v994
        %996 = vrot.lane.b32.xlu0 %v902, 96
        %v997 = vpop.permute.xlu0 %996
        %998 = vrot.lane.b32.xlu0 %v903, 96
        %v999 = vpop.permute.xlu0 %998
        %v1003 = vsel %vm984, %v995, 0
        %1005 = vmatprep.subr.mxu0 0.0
        %1006 = vmatpush1.msra.mxu0 %v997
        %1007 = vmatprep.subr.mxu0 0.0
        %1008 = vmatpush1.msra.mxu0 %v999
        %1009 = vmatprep.subr.mxu0 0.0
        %1010 = vmatpush1.msra.mxu0 0.0
        %1011 = vmatprep.subr.mxu0 0.0
        %1012 = vmatpush1.msra.mxu0 0.0
        %1013 = vmatprep.subr.mxu0 0.0
        %1014 = vmatpush1.msra.mxu0 0.0
        %1015 = vmatprep.subr.mxu0 0.0
        %1016 = vmatpush1.msra.mxu0 0.0
        %1017 = vmatprep.subr.mxu0 0.0
        %1018 = vmatpush1.msra.mxu0 0.0
        %1019 = vmatprep.subr.mxu0 0.0
        %1020 = vmatpush1.msra.mxu0 0.0
        %1021 = vmatprep.subr.mxu0 0.0
        %1022 = vmatpush1.msra.mxu0 0.0
        %1023 = vmatprep.subr.mxu0 0.0
        %1024 = vmatpush1.msra.mxu0 0.0
        %1025 = vmatprep.subr.mxu0 0.0
        %1026 = vmatpush1.msra.mxu0 0.0
        %1027 = vmatprep.subr.mxu0 0.0
        %1028 = vmatpush1.msra.mxu0 0.0
        %1029 = vmatprep.subr.mxu0 0.0
        %1030 = vmatpush1.msra.mxu0 0.0
        %1031 = vmatprep.subr.mxu0 0.0
        %1032 = vmatpush1.msra.mxu0 0.0
        %1033 = vmatprep.subr.mxu0 0.0
        %1034 = vmatpush1.msra.mxu0 0.0
        %1035 = vmatprep.subr.mxu0 0.0
        %1036 = vmatpush1.msra.mxu0 0.0
        %1037 = vmatprep.subr.mxu0 0.0
        %1038 = vmatpush1.msra.mxu0 0.0
        %1039 = vmatprep.subr.mxu0 0.0
        %1040 = vmatpush1.msra.mxu0 0.0
        %1041 = vmatprep.subr.mxu0 0.0
        %1042 = vmatpush1.msra.mxu0 0.0
        %1043 = vmatprep.subr.mxu0 0.0
        %1044 = vmatpush1.msra.mxu0 0.0
        %1045 = vmatprep.subr.mxu0 0.0
        %1046 = vmatpush1.msra.mxu0 0.0
        %1047 = vmatprep.subr.mxu0 0.0
        %1048 = vmatpush1.msra.mxu0 0.0
        %1049 = vmatprep.subr.mxu0 0.0
        %1050 = vmatpush1.msra.mxu0 0.0
        %1051 = vmatprep.subr.mxu0 0.0
        %1052 = vmatpush1.msra.mxu0 0.0
        %1053 = vmatprep.subr.mxu0 0.0
        %1054 = vmatpush1.msra.mxu0 0.0
        %1055 = vmatprep.subr.mxu0 0.0
        %1056 = vmatpush1.msra.mxu0 0.0
        %1057 = vmatprep.subr.mxu0 0.0
        %1058 = vmatpush1.msra.mxu0 0.0
        %1059 = vmatprep.subr.mxu0 0.0
        %1060 = vmatpush1.msra.mxu0 0.0
        %1061 = vmatprep.subr.mxu0 0.0
        %1062 = vmatpush1.msra.mxu0 0.0
        %1063 = vmatprep.subr.mxu0 0.0
        %1064 = vmatpush1.msra.mxu0 0.0
        %1065 = vmatprep.subr.mxu0 0.0
        %1066 = vmatpush1.msra.mxu0 0.0
        %1067 = vmatprep.subr.mxu0 0.0
        %1068 = vmatpush1.msra.mxu0 0.0
        %1069 = vmatprep.mubr.f32.mxu0 0.0
        %1070 = vmatmul.mubr.f32.gmra.mrb[0].mxu0 %v1003
        %v1071 = vpop.f32.mrb[0].mxu0
        %v1072 = vadd.f32 0.0, %v1071
        %v1073 = vpop.f32.mrb[0].mxu0
        %1074 = vdwg.mxu0
        %1075 = vrot.lane.b32.xlu0 %v899, 120
        %v1076 = vpop.permute.xlu0 %1075
        %1077 = vrot.lane.b32.xlu0 %v902, 120
        %v1078 = vpop.permute.xlu0 %1077
        %1079 = vrot.lane.b32.xlu0 %v903, 120
        %v1080 = vpop.permute.xlu0 %1079
        %v1081 = vsel %vm904, %v1076, 0
        %v1083 = vsel %vm904, %v1078, 0
        %v1085 = vsel %vm904, %v1080, 0
        %1087 = vmatprep.subr.mxu0 0.0
        %1088 = vmatpush1.xpose.msra.mxu0 %v1083
        %1089 = vmatprep.subr.mxu0 0.0
        %1090 = vmatpush1.xpose.msra.mxu0 %v1085
        %1091 = vmatprep.subr.mxu0 0.0
        %1092 = vmatpush1.xpose.msra.mxu0 0.0
        %1093 = vmatprep.subr.mxu0 0.0
        %1094 = vmatpush1.xpose.msra.mxu0 0.0
        %1095 = vmatprep.subr.mxu0 0.0
        %1096 = vmatpush1.xpose.msra.mxu0 0.0
        %1097 = vmatprep.subr.mxu0 0.0
        %1098 = vmatpush1.xpose.msra.mxu0 0.0
        %1099 = vmatprep.subr.mxu0 0.0
        %1100 = vmatpush1.xpose.msra.mxu0 0.0
        %1101 = vmatprep.subr.mxu0 0.0
        %1102 = vmatpush1.xpose.msra.mxu0 0.0
        %1103 = vmatprep.subr.mxu0 0.0
        %1104 = vmatpush1.xpose.msra.mxu0 0.0
        %1105 = vmatprep.subr.mxu0 0.0
        %1106 = vmatpush1.xpose.msra.mxu0 0.0
        %1107 = vmatprep.subr.mxu0 0.0
        %1108 = vmatpush1.xpose.msra.mxu0 0.0
        %1109 = vmatprep.subr.mxu0 0.0
        %1110 = vmatpush1.xpose.msra.mxu0 0.0
        %1111 = vmatprep.subr.mxu0 0.0
        %1112 = vmatpush1.xpose.msra.mxu0 0.0
        %1113 = vmatprep.subr.mxu0 0.0
        %1114 = vmatpush1.xpose.msra.mxu0 0.0
        %1115 = vmatprep.subr.mxu0 0.0
        %1116 = vmatpush1.xpose.msra.mxu0 0.0
        %1117 = vmatprep.subr.mxu0 0.0
        %1118 = vmatpush1.xpose.msra.mxu0 0.0
        %1119 = vmatprep.subr.mxu0 0.0
        %1120 = vmatpush1.xpose.msra.mxu0 0.0
        %1121 = vmatprep.subr.mxu0 0.0
        %1122 = vmatpush1.xpose.msra.mxu0 0.0
        %1123 = vmatprep.subr.mxu0 0.0
        %1124 = vmatpush1.xpose.msra.mxu0 0.0
        %1125 = vmatprep.subr.mxu0 0.0
        %1126 = vmatpush1.xpose.msra.mxu0 0.0
        %1127 = vmatprep.subr.mxu0 0.0
        %1128 = vmatpush1.xpose.msra.mxu0 0.0
        %1129 = vmatprep.subr.mxu0 0.0
        %1130 = vmatpush1.xpose.msra.mxu0 0.0
        %1131 = vmatprep.subr.mxu0 0.0
        %1132 = vmatpush1.xpose.msra.mxu0 0.0
        %1133 = vmatprep.subr.mxu0 0.0
        %1134 = vmatpush1.xpose.msra.mxu0 0.0
        %1135 = vmatprep.subr.mxu0 0.0
        %1136 = vmatpush1.xpose.msra.mxu0 0.0
        %1137 = vmatprep.subr.mxu0 0.0
        %1138 = vmatpush1.xpose.msra.mxu0 0.0
        %1139 = vmatprep.subr.mxu0 0.0
        %1140 = vmatpush1.xpose.msra.mxu0 0.0
        %1141 = vmatprep.subr.mxu0 0.0
        %1142 = vmatpush1.xpose.msra.mxu0 0.0
        %1143 = vmatprep.subr.mxu0 0.0
        %1144 = vmatpush1.xpose.msra.mxu0 0.0
        %1145 = vmatprep.subr.mxu0 0.0
        %1146 = vmatpush1.xpose.msra.mxu0 0.0
        %1147 = vmatprep.subr.mxu0 0.0
        %1148 = vmatpush1.xpose.msra.mxu0 0.0
        %1149 = vmatprep.subr.mxu0 0.0
        %1150 = vmatpush1.xpose.msra.mxu0 0.0
        %1151 = vmatprep.mubr.f32.mxu0 0.0
        %1152 = vmatmul.mubr.f32.gmra.mrb[0].mxu0 %v1081
        %v1153 = vpop.f32.mrb[0].mxu0
        %v1154 = vadd.f32 0.0, %v1153
        %v1155 = vpop.f32.mrb[0].mxu0
        %1156 = vdwg.mxu0
        %v1157 = vsel %vm984, %v1154, -inf
        %1158 = vmax.xlane.f32.xlu0 %v1157
        %v1159 = vpop.xlane.xlu0 %1158
        %v1160 = vsub.f32 %v1154, %v1159
        %v1161 = vmul.f32 %v1160, 1.442695
        %v1162 = vpow.pop %v1161
        %v1163 = vsel %vm984, %v1162, 0.0
        %1164 = vadd.xlane.f32.xlu0 %v1163
        %v1165 = vpop.xlane.xlu0 %1164
        %v1166 = vrcp.pop %v1165
        %v1167 = vmul.f32 %v1162, %v1166
        %1168 = vrot.lane.b32.xlu0 %v902, 88
        %v1169 = vpop.permute.xlu0 %1168
        %1170 = vrot.lane.b32.xlu0 %v903, 88
        %v1171 = vpop.permute.xlu0 %1170
        %v1175 = vsel %vm984, %v1167, 0
        %1177 = vmatprep.subr.mxu0 0.0
        %1178 = vmatpush1.msra.mxu0 %v1169
        %1179 = vmatprep.subr.mxu0 0.0
        %1180 = vmatpush1.msra.mxu0 %v1171
        %1181 = vmatprep.subr.mxu0 0.0
        %1182 = vmatpush1.msra.mxu0 0.0
        %1183 = vmatprep.subr.mxu0 0.0
        %1184 = vmatpush1.msra.mxu0 0.0
        %1185 = vmatprep.subr.mxu0 0.0
        %1186 = vmatpush1.msra.mxu0 0.0
        %1187 = vmatprep.subr.mxu0 0.0
        %1188 = vmatpush1.msra.mxu0 0.0
        %1189 = vmatprep.subr.mxu0 0.0
        %1190 = vmatpush1.msra.mxu0 0.0
        %1191 = vmatprep.subr.mxu0 0.0
        %1192 = vmatpush1.msra.mxu0 0.0
        %1193 = vmatprep.subr.mxu0 0.0
        %1194 = vmatpush1.msra.mxu0 0.0
        %1195 = vmatprep.subr.mxu0 0.0
        %1196 = vmatpush1.msra.mxu0 0.0
        %1197 = vmatprep.subr.mxu0 0.0
        %1198 = vmatpush1.msra.mxu0 0.0
        %1199 = vmatprep.subr.mxu0 0.0
        %1200 = vmatpush1.msra.mxu0 0.0
        %1201 = vmatprep.subr.mxu0 0.0
        %1202 = vmatpush1.msra.mxu0 0.0
        %1203 = vmatprep.subr.mxu0 0.0
        %1204 = vmatpush1.msra.mxu0 0.0
        %1205 = vmatprep.subr.mxu0 0.0
        %1206 = vmatpush1.msra.mxu0 0.0
        %1207 = vmatprep.subr.mxu0 0.0
        %1208 = vmatpush1.msra.mxu0 0.0
        %1209 = vmatprep.subr.mxu0 0.0
        %1210 = vmatpush1.msra.mxu0 0.0
        %1211 = vmatprep.subr.mxu0 0.0
        %1212 = vmatpush1.msra.mxu0 0.0
        %1213 = vmatprep.subr.mxu0 0.0
        %1214 = vmatpush1.msra.mxu0 0.0
        %1215 = vmatprep.subr.mxu0 0.0
        %1216 = vmatpush1.msra.mxu0 0.0
        %1217 = vmatprep.subr.mxu0 0.0
        %1218 = vmatpush1.msra.mxu0 0.0
        %1219 = vmatprep.subr.mxu0 0.0
        %1220 = vmatpush1.msra.mxu0 0.0
        %1221 = vmatprep.subr.mxu0 0.0
        %1222 = vmatpush1.msra.mxu0 0.0
        %1223 = vmatprep.subr.mxu0 0.0
        %1224 = vmatpush1.msra.mxu0 0.0
        %1225 = vmatprep.subr.mxu0 0.0
        %1226 = vmatpush1.msra.mxu0 0.0
        %1227 = vmatprep.subr.mxu0 0.0
        %1228 = vmatpush1.msra.mxu0 0.0
        %1229 = vmatprep.subr.mxu0 0.0
        %1230 = vmatpush1.msra.mxu0 0.0
        %1231 = vmatprep.subr.mxu0 0.0
        %1232 = vmatpush1.msra.mxu0 0.0
        %1233 = vmatprep.subr.mxu0 0.0
        %1234 = vmatpush1.msra.mxu0 0.0
        %1235 = vmatprep.subr.mxu0 0.0
        %1236 = vmatpush1.msra.mxu0 0.0
        %1237 = vmatprep.subr.mxu0 0.0
        %1238 = vmatpush1.msra.mxu0 0.0
        %1239 = vmatprep.subr.mxu0 0.0
        %1240 = vmatpush1.msra.mxu0 0.0
        %1241 = vmatprep.mubr.f32.mxu0 0.0
        %1242 = vmatmul.mubr.f32.gmra.mrb[0].mxu0 %v1175
        %v1243 = vpop.f32.mrb[0].mxu0
        %v1244 = vadd.f32 0.0, %v1243
        %v1245 = vpop.f32.mrb[0].mxu0
        %1246 = vdwg.mxu0
        %1247 = vrot.lane.b32.xlu0 %v899, 112
        %v1248 = vpop.permute.xlu0 %1247
        %1249 = vrot.lane.b32.xlu0 %v902, 112
        %v1250 = vpop.permute.xlu0 %1249
        %1251 = vrot.lane.b32.xlu0 %v903, 112
        %v1252 = vpop.permute.xlu0 %1251
        %v1253 = vsel %vm904, %v1248, 0
        %v1255 = vsel %vm904, %v1250, 0
        %v1257 = vsel %vm904, %v1252, 0
        %1259 = vmatprep.subr.mxu0 0.0
        %1260 = vmatpush1.xpose.msra.mxu0 %v1255
        %1261 = vmatprep.subr.mxu0 0.0
        %1262 = vmatpush1.xpose.msra.mxu0 %v1257
        %1263 = vmatprep.subr.mxu0 0.0
        %1264 = vmatpush1.xpose.msra.mxu0 0.0
        %1265 = vmatprep.subr.mxu0 0.0
        %1266 = vmatpush1.xpose.msra.mxu0 0.0
        %1267 = vmatprep.subr.mxu0 0.0
        %1268 = vmatpush1.xpose.msra.mxu0 0.0
        %1269 = vmatprep.subr.mxu0 0.0
        %1270 = vmatpush1.xpose.msra.mxu0 0.0
        %1271 = vmatprep.subr.mxu0 0.0
        %1272 = vmatpush1.xpose.msra.mxu0 0.0
        %1273 = vmatprep.subr.mxu0 0.0
        %1274 = vmatpush1.xpose.msra.mxu0 0.0
        %1275 = vmatprep.subr.mxu0 0.0
        %1276 = vmatpush1.xpose.msra.mxu0 0.0
        %1277 = vmatprep.subr.mxu0 0.0
        %1278 = vmatpush1.xpose.msra.mxu0 0.0
        %1279 = vmatprep.subr.mxu0 0.0
        %1280 = vmatpush1.xpose.msra.mxu0 0.0
        %1281 = vmatprep.subr.mxu0 0.0
        %1282 = vmatpush1.xpose.msra.mxu0 0.0
        %1283 = vmatprep.subr.mxu0 0.0
        %1284 = vmatpush1.xpose.msra.mxu0 0.0
        %1285 = vmatprep.subr.mxu0 0.0
        %1286 = vmatpush1.xpose.msra.mxu0 0.0
        %1287 = vmatprep.subr.mxu0 0.0
        %1288 = vmatpush1.xpose.msra.mxu0 0.0
        %1289 = vmatprep.subr.mxu0 0.0
        %1290 = vmatpush1.xpose.msra.mxu0 0.0
        %1291 = vmatprep.subr.mxu0 0.0
        %1292 = vmatpush1.xpose.msra.mxu0 0.0
        %1293 = vmatprep.subr.mxu0 0.0
        %1294 = vmatpush1.xpose.msra.mxu0 0.0
        %1295 = vmatprep.subr.mxu0 0.0
        %1296 = vmatpush1.xpose.msra.mxu0 0.0
        %1297 = vmatprep.subr.mxu0 0.0
        %1298 = vmatpush1.xpose.msra.mxu0 0.0
        %1299 = vmatprep.subr.mxu0 0.0
        %1300 = vmatpush1.xpose.msra.mxu0 0.0
        %1301 = vmatprep.subr.mxu0 0.0
        %1302 = vmatpush1.xpose.msra.mxu0 0.0
        %1303 = vmatprep.subr.mxu0 0.0
        %1304 = vmatpush1.xpose.msra.mxu0 0.0
        %1305 = vmatprep.subr.mxu0 0.0
        %1306 = vmatpush1.xpose.msra.mxu0 0.0
        %1307 = vmatprep.subr.mxu0 0.0
        %1308 = vmatpush1.xpose.msra.mxu0 0.0
        %1309 = vmatprep.subr.mxu0 0.0
        %1310 = vmatpush1.xpose.msra.mxu0 0.0
        %1311 = vmatprep.subr.mxu0 0.0
        %1312 = vmatpush1.xpose.msra.mxu0 0.0
        %1313 = vmatprep.subr.mxu0 0.0
        %1314 = vmatpush1.xpose.msra.mxu0 0.0
        %1315 = vmatprep.subr.mxu0 0.0
        %1316 = vmatpush1.xpose.msra.mxu0 0.0
        %1317 = vmatprep.subr.mxu0 0.0
        %1318 = vmatpush1.xpose.msra.mxu0 0.0
        %1319 = vmatprep.subr.mxu0 0.0
        %1320 = vmatpush1.xpose.msra.mxu0 0.0
        %1321 = vmatprep.subr.mxu0 0.0
        %1322 = vmatpush1.xpose.msra.mxu0 0.0
        %1323 = vmatprep.mubr.f32.mxu0 0.0
        %1324 = vmatmul.mubr.f32.gmra.mrb[0].mxu0 %v1253
        %v1325 = vpop.f32.mrb[0].mxu0
        %v1326 = vadd.f32 0.0, %v1325
        %v1327 = vpop.f32.mrb[0].mxu0
        %1328 = vdwg.mxu0
        %v1329 = vsel %vm984, %v1326, -inf
        %1330 = vmax.xlane.f32.xlu0 %v1329
        %v1331 = vpop.xlane.xlu0 %1330
        %v1332 = vsub.f32 %v1326, %v1331
        %v1333 = vmul.f32 %v1332, 1.442695
        %v1334 = vpow.pop %v1333
        %v1335 = vsel %vm984, %v1334, 0.0
        %1336 = vadd.xlane.f32.xlu0 %v1335
        %v1337 = vpop.xlane.xlu0 %1336
        %v1338 = vrcp.pop %v1337
        %v1339 = vmul.f32 %v1334, %v1338
        %1340 = vrot.lane.b32.xlu0 %v902, 80
        %v1341 = vpop.permute.xlu0 %1340
        %1342 = vrot.lane.b32.xlu0 %v903, 80
        %v1343 = vpop.permute.xlu0 %1342
        %v1347 = vsel %vm984, %v1339, 0
        %1349 = vmatprep.subr.mxu0 0.0
        %1350 = vmatpush1.msra.mxu0 %v1341
        %1351 = vmatprep.subr.mxu0 0.0
        %1352 = vmatpush1.msra.mxu0 %v1343
        %1353 = vmatprep.subr.mxu0 0.0
        %1354 = vmatpush1.msra.mxu0 0.0
        %1355 = vmatprep.subr.mxu0 0.0
        %1356 = vmatpush1.msra.mxu0 0.0
        %1357 = vmatprep.subr.mxu0 0.0
        %1358 = vmatpush1.msra.mxu0 0.0
        %1359 = vmatprep.subr.mxu0 0.0
        %1360 = vmatpush1.msra.mxu0 0.0
        %1361 = vmatprep.subr.mxu0 0.0
        %1362 = vmatpush1.msra.mxu0 0.0
        %1363 = vmatprep.subr.mxu0 0.0
        %1364 = vmatpush1.msra.mxu0 0.0
        %1365 = vmatprep.subr.mxu0 0.0
        %1366 = vmatpush1.msra.mxu0 0.0
        %1367 = vmatprep.subr.mxu0 0.0
        %1368 = vmatpush1.msra.mxu0 0.0
        %1369 = vmatprep.subr.mxu0 0.0
        %1370 = vmatpush1.msra.mxu0 0.0
        %1371 = vmatprep.subr.mxu0 0.0
        %1372 = vmatpush1.msra.mxu0 0.0
        %1373 = vmatprep.subr.mxu0 0.0
        %1374 = vmatpush1.msra.mxu0 0.0
        %1375 = vmatprep.subr.mxu0 0.0
        %1376 = vmatpush1.msra.mxu0 0.0
        %1377 = vmatprep.subr.mxu0 0.0
        %1378 = vmatpush1.msra.mxu0 0.0
        %1379 = vmatprep.subr.mxu0 0.0
        %1380 = vmatpush1.msra.mxu0 0.0
        %1381 = vmatprep.subr.mxu0 0.0
        %1382 = vmatpush1.msra.mxu0 0.0
        %1383 = vmatprep.subr.mxu0 0.0
        %1384 = vmatpush1.msra.mxu0 0.0
        %1385 = vmatprep.subr.mxu0 0.0
        %1386 = vmatpush1.msra.mxu0 0.0
        %1387 = vmatprep.subr.mxu0 0.0
        %1388 = vmatpush1.msra.mxu0 0.0
        %1389 = vmatprep.subr.mxu0 0.0
        %1390 = vmatpush1.msra.mxu0 0.0
        %1391 = vmatprep.subr.mxu0 0.0
        %1392 = vmatpush1.msra.mxu0 0.0
        %1393 = vmatprep.subr.mxu0 0.0
        %1394 = vmatpush1.msra.mxu0 0.0
        %1395 = vmatprep.subr.mxu0 0.0
        %1396 = vmatpush1.msra.mxu0 0.0
        %1397 = vmatprep.subr.mxu0 0.0
        %1398 = vmatpush1.msra.mxu0 0.0
        %1399 = vmatprep.subr.mxu0 0.0
        %1400 = vmatpush1.msra.mxu0 0.0
        %1401 = vmatprep.subr.mxu0 0.0
        %1402 = vmatpush1.msra.mxu0 0.0
        %1403 = vmatprep.subr.mxu0 0.0
        %1404 = vmatpush1.msra.mxu0 0.0
        %1405 = vmatprep.subr.mxu0 0.0
        %1406 = vmatpush1.msra.mxu0 0.0
        %1407 = vmatprep.subr.mxu0 0.0
        %1408 = vmatpush1.msra.mxu0 0.0
        %1409 = vmatprep.subr.mxu0 0.0
        %1410 = vmatpush1.msra.mxu0 0.0
        %1411 = vmatprep.subr.mxu0 0.0
        %1412 = vmatpush1.msra.mxu0 0.0
        %1413 = vmatprep.mubr.f32.mxu0 0.0
        %1414 = vmatmul.mubr.f32.gmra.mrb[0].mxu0 %v1347
        %v1415 = vpop.f32.mrb[0].mxu0
        %v1416 = vadd.f32 0.0, %v1415
        %v1417 = vpop.f32.mrb[0].mxu0
        %1418 = vdwg.mxu0
        %1419 = vrot.lane.b32.xlu0 %v899, 104
        %v1420 = vpop.permute.xlu0 %1419
        %1421 = vrot.lane.b32.xlu0 %v902, 104
        %v1422 = vpop.permute.xlu0 %1421
        %1423 = vrot.lane.b32.xlu0 %v903, 104
        %v1424 = vpop.permute.xlu0 %1423
        %v1425 = vsel %vm904, %v1420, 0
        %v1427 = vsel %vm904, %v1422, 0
        %v1429 = vsel %vm904, %v1424, 0
        %1431 = vmatprep.subr.mxu0 0.0
        %1432 = vmatpush1.xpose.msra.mxu0 %v1427
        %1433 = vmatprep.subr.mxu0 0.0
        %1434 = vmatpush1.xpose.msra.mxu0 %v1429
        %1435 = vmatprep.subr.mxu0 0.0
        %1436 = vmatpush1.xpose.msra.mxu0 0.0
        %1437 = vmatprep.subr.mxu0 0.0
        %1438 = vmatpush1.xpose.msra.mxu0 0.0
        %1439 = vmatprep.subr.mxu0 0.0
        %1440 = vmatpush1.xpose.msra.mxu0 0.0
        %1441 = vmatprep.subr.mxu0 0.0
        %1442 = vmatpush1.xpose.msra.mxu0 0.0
        %1443 = vmatprep.subr.mxu0 0.0
        %1444 = vmatpush1.xpose.msra.mxu0 0.0
        %1445 = vmatprep.subr.mxu0 0.0
        %1446 = vmatpush1.xpose.msra.mxu0 0.0
        %1447 = vmatprep.subr.mxu0 0.0
        %1448 = vmatpush1.xpose.msra.mxu0 0.0
        %1449 = vmatprep.subr.mxu0 0.0
        %1450 = vmatpush1.xpose.msra.mxu0 0.0
        %1451 = vmatprep.subr.mxu0 0.0
        %1452 = vmatpush1.xpose.msra.mxu0 0.0
        %1453 = vmatprep.subr.mxu0 0.0
        %1454 = vmatpush1.xpose.msra.mxu0 0.0
        %1455 = vmatprep.subr.mxu0 0.0
        %1456 = vmatpush1.xpose.msra.mxu0 0.0
        %1457 = vmatprep.subr.mxu0 0.0
        %1458 = vmatpush1.xpose.msra.mxu0 0.0
        %1459 = vmatprep.subr.mxu0 0.0
        %1460 = vmatpush1.xpose.msra.mxu0 0.0
        %1461 = vmatprep.subr.mxu0 0.0
        %1462 = vmatpush1.xpose.msra.mxu0 0.0
        %1463 = vmatprep.subr.mxu0 0.0
        %1464 = vmatpush1.xpose.msra.mxu0 0.0
        %1465 = vmatprep.subr.mxu0 0.0
        %1466 = vmatpush1.xpose.msra.mxu0 0.0
        %1467 = vmatprep.subr.mxu0 0.0
        %1468 = vmatpush1.xpose.msra.mxu0 0.0
        %1469 = vmatprep.subr.mxu0 0.0
        %1470 = vmatpush1.xpose.msra.mxu0 0.0
        %1471 = vmatprep.subr.mxu0 0.0
        %1472 = vmatpush1.xpose.msra.mxu0 0.0
        %1473 = vmatprep.subr.mxu0 0.0
        %1474 = vmatpush1.xpose.msra.mxu0 0.0
        %1475 = vmatprep.subr.mxu0 0.0
        %1476 = vmatpush1.xpose.msra.mxu0 0.0
        %1477 = vmatprep.subr.mxu0 0.0
        %1478 = vmatpush1.xpose.msra.mxu0 0.0
        %1479 = vmatprep.subr.mxu0 0.0
        %1480 = vmatpush1.xpose.msra.mxu0 0.0
        %1481 = vmatprep.subr.mxu0 0.0
        %1482 = vmatpush1.xpose.msra.mxu0 0.0
        %1483 = vmatprep.subr.mxu0 0.0
        %1484 = vmatpush1.xpose.msra.mxu0 0.0
        %1485 = vmatprep.subr.mxu0 0.0
        %1486 = vmatpush1.xpose.msra.mxu0 0.0
        %1487 = vmatprep.subr.mxu0 0.0
        %1488 = vmatpush1.xpose.msra.mxu0 0.0
        %1489 = vmatprep.subr.mxu0 0.0
        %1490 = vmatpush1.xpose.msra.mxu0 0.0
        %1491 = vmatprep.subr.mxu0 0.0
        %1492 = vmatpush1.xpose.msra.mxu0 0.0
        %1493 = vmatprep.subr.mxu0 0.0
        %1494 = vmatpush1.xpose.msra.mxu0 0.0
        %1495 = vmatprep.mubr.f32.mxu0 0.0
        %1496 = vmatmul.mubr.f32.gmra.mrb[0].mxu0 %v1425
        %v1497 = vpop.f32.mrb[0].mxu0
        %v1498 = vadd.f32 0.0, %v1497
        %v1499 = vpop.f32.mrb[0].mxu0
        %1500 = vdwg.mxu0
        %v1501 = vsel %vm984, %v1498, -inf
        %1502 = vmax.xlane.f32.xlu0 %v1501
        %v1503 = vpop.xlane.xlu0 %1502
        %v1504 = vsub.f32 %v1498, %v1503
        %v1505 = vmul.f32 %v1504, 1.442695
        %v1506 = vpow.pop %v1505
        %v1507 = vsel %vm984, %v1506, 0.0
        %1508 = vadd.xlane.f32.xlu0 %v1507
        %v1509 = vpop.xlane.xlu0 %1508
        %v1510 = vrcp.pop %v1509
        %v1511 = vmul.f32 %v1506, %v1510
        %1512 = vrot.lane.b32.xlu0 %v902, 72
        %v1513 = vpop.permute.xlu0 %1512
        %1514 = vrot.lane.b32.xlu0 %v903, 72
        %v1515 = vpop.permute.xlu0 %1514
        %v1519 = vsel %vm984, %v1511, 0
        %1521 = vmatprep.subr.mxu0 0.0
        %1522 = vmatpush1.msra.mxu0 %v1513
        %1523 = vmatprep.subr.mxu0 0.0
        %1524 = vmatpush1.msra.mxu0 %v1515
        %1525 = vmatprep.subr.mxu0 0.0
        %1526 = vmatpush1.msra.mxu0 0.0
        %1527 = vmatprep.subr.mxu0 0.0
        %1528 = vmatpush1.msra.mxu0 0.0
        %1529 = vmatprep.subr.mxu0 0.0
        %1530 = vmatpush1.msra.mxu0 0.0
        %1531 = vmatprep.subr.mxu0 0.0
        %1532 = vmatpush1.msra.mxu0 0.0
        %1533 = vmatprep.subr.mxu0 0.0
        %1534 = vmatpush1.msra.mxu0 0.0
        %1535 = vmatprep.subr.mxu0 0.0
        %1536 = vmatpush1.msra.mxu0 0.0
        %1537 = vmatprep.subr.mxu0 0.0
        %1538 = vmatpush1.msra.mxu0 0.0
        %1539 = vmatprep.subr.mxu0 0.0
        %1540 = vmatpush1.msra.mxu0 0.0
        %1541 = vmatprep.subr.mxu0 0.0
        %1542 = vmatpush1.msra.mxu0 0.0
        %1543 = vmatprep.subr.mxu0 0.0
        %1544 = vmatpush1.msra.mxu0 0.0
        %1545 = vmatprep.subr.mxu0 0.0
        %1546 = vmatpush1.msra.mxu0 0.0
        %1547 = vmatprep.subr.mxu0 0.0
        %1548 = vmatpush1.msra.mxu0 0.0
        %1549 = vmatprep.subr.mxu0 0.0
        %1550 = vmatpush1.msra.mxu0 0.0
        %1551 = vmatprep.subr.mxu0 0.0
        %1552 = vmatpush1.msra.mxu0 0.0
        %1553 = vmatprep.subr.mxu0 0.0
        %1554 = vmatpush1.msra.mxu0 0.0
        %1555 = vmatprep.subr.mxu0 0.0
        %1556 = vmatpush1.msra.mxu0 0.0
        %1557 = vmatprep.subr.mxu0 0.0
        %1558 = vmatpush1.msra.mxu0 0.0
        %1559 = vmatprep.subr.mxu0 0.0
        %1560 = vmatpush1.msra.mxu0 0.0
        %1561 = vmatprep.subr.mxu0 0.0
        %1562 = vmatpush1.msra.mxu0 0.0
        %1563 = vmatprep.subr.mxu0 0.0
        %1564 = vmatpush1.msra.mxu0 0.0
        %1565 = vmatprep.subr.mxu0 0.0
        %1566 = vmatpush1.msra.mxu0 0.0
        %1567 = vmatprep.subr.mxu0 0.0
        %1568 = vmatpush1.msra.mxu0 0.0
        %1569 = vmatprep.subr.mxu0 0.0
        %1570 = vmatpush1.msra.mxu0 0.0
        %1571 = vmatprep.subr.mxu0 0.0
        %1572 = vmatpush1.msra.mxu0 0.0
        %1573 = vmatprep.subr.mxu0 0.0
        %1574 = vmatpush1.msra.mxu0 0.0
        %1575 = vmatprep.subr.mxu0 0.0
        %1576 = vmatpush1.msra.mxu0 0.0
        %1577 = vmatprep.subr.mxu0 0.0
        %1578 = vmatpush1.msra.mxu0 0.0
        %1579 = vmatprep.subr.mxu0 0.0
        %1580 = vmatpush1.msra.mxu0 0.0
        %1581 = vmatprep.subr.mxu0 0.0
        %1582 = vmatpush1.msra.mxu0 0.0
        %1583 = vmatprep.subr.mxu0 0.0
        %1584 = vmatpush1.msra.mxu0 0.0
        %1585 = vmatprep.mubr.f32.mxu0 0.0
        %1586 = vmatmul.mubr.f32.gmra.mrb[0].mxu0 %v1519
        %v1587 = vpop.f32.mrb[0].mxu0
        %v1588 = vadd.f32 0.0, %v1587
        %v1589 = vpop.f32.mrb[0].mxu0
        %1590 = vdwg.mxu0
        %1592 = vrot.lane.b32.xlu0 %v1244, 8
        %v1593 = vpop.permute.xlu0 %1592
        %1596 = vrot.lane.b32.xlu0 %v1416, 16
        %v1597 = vpop.permute.xlu0 %1596
        %1600 = vrot.lane.b32.xlu0 %v1588, 24
        %v1601 = vpop.permute.xlu0 %1600
        %v1603 = vsel %vm904, %v1072, %v1593
        %v1604 = vsel %vm984, %v1603, %v1597
        %vm1605 = vcmask 195584
        %v1606 = vsel %vm1605, %v1604, %v1601
        %v1607 = vld [vmem:[#allocation12] sm:$0xff]
        %v1608 = vld [vmem:[#allocation12 + $0x8] sm:$0xff]
        %v1609 = vld [vmem:[#allocation12 + $0x10] sm:$0xff]
        %v1610 = vld [vmem:[#allocation12 + $0x18] sm:$0xff]
        %v1611 = vld [vmem:[#allocation14] sm:$0x1]
        %v1613 = vlaneseq
        %v1614 = vshrl.u32 %v1613, 7
        %v1615 = vsub.s32 0, %v1614
        %v1616 = vrot.slane %v1611, %v1615
        %v1619 = vsel %vm828, %v1606, 0
        %1621 = vmatprep.subr.mxu0 0.0
        %1622 = vmatpush1.msra.mxu0 %v1607
        %1623 = vmatprep.subr.mxu0 0.0
        %1624 = vmatpush1.msra.mxu0 %v1608
        %1625 = vmatprep.subr.mxu0 0.0
        %1626 = vmatpush1.msra.mxu0 %v1609
        %1627 = vmatprep.subr.mxu0 0.0
        %1628 = vmatpush1.msra.mxu0 %v1610
        %1629 = vmatprep.subr.mxu0 0.0
        %1630 = vmatpush1.msra.mxu0 0.0
        %1631 = vmatprep.subr.mxu0 0.0
        %1632 = vmatpush1.msra.mxu0 0.0
        %1633 = vmatprep.subr.mxu0 0.0
        %1634 = vmatpush1.msra.mxu0 0.0
        %1635 = vmatprep.subr.mxu0 0.0
        %1636 = vmatpush1.msra.mxu0 0.0
        %1637 = vmatprep.subr.mxu0 0.0
        %1638 = vmatpush1.msra.mxu0 0.0
        %1639 = vmatprep.subr.mxu0 0.0
        %1640 = vmatpush1.msra.mxu0 0.0
        %1641 = vmatprep.subr.mxu0 0.0
        %1642 = vmatpush1.msra.mxu0 0.0
        %1643 = vmatprep.subr.mxu0 0.0
        %1644 = vmatpush1.msra.mxu0 0.0
        %1645 = vmatprep.subr.mxu0 0.0
        %1646 = vmatpush1.msra.mxu0 0.0
        %1647 = vmatprep.subr.mxu0 0.0
        %1648 = vmatpush1.msra.mxu0 0.0
        %1649 = vmatprep.subr.mxu0 0.0
        %1650 = vmatpush1.msra.mxu0 0.0
        %1651 = vmatprep.subr.mxu0 0.0
        %1652 = vmatpush1.msra.mxu0 0.0
        %1653 = vmatprep.subr.mxu0 0.0
        %1654 = vmatpush1.msra.mxu0 0.0
        %1655 = vmatprep.subr.mxu0 0.0
        %1656 = vmatpush1.msra.mxu0 0.0
        %1657 = vmatprep.subr.mxu0 0.0
        %1658 = vmatpush1.msra.mxu0 0.0
        %1659 = vmatprep.subr.mxu0 0.0
        %1660 = vmatpush1.msra.mxu0 0.0
        %1661 = vmatprep.subr.mxu0 0.0
        %1662 = vmatpush1.msra.mxu0 0.0
        %1663 = vmatprep.subr.mxu0 0.0
        %1664 = vmatpush1.msra.mxu0 0.0
        %1665 = vmatprep.subr.mxu0 0.0
        %1666 = vmatpush1.msra.mxu0 0.0
        %1667 = vmatprep.subr.mxu0 0.0
        %1668 = vmatpush1.msra.mxu0 0.0
        %1669 = vmatprep.subr.mxu0 0.0
        %1670 = vmatpush1.msra.mxu0 0.0
        %1671 = vmatprep.subr.mxu0 0.0
        %1672 = vmatpush1.msra.mxu0 0.0
        %1673 = vmatprep.subr.mxu0 0.0
        %1674 = vmatpush1.msra.mxu0 0.0
        %1675 = vmatprep.subr.mxu0 0.0
        %1676 = vmatpush1.msra.mxu0 0.0
        %1677 = vmatprep.subr.mxu0 0.0
        %1678 = vmatpush1.msra.mxu0 0.0
        %1679 = vmatprep.subr.mxu0 0.0
        %1680 = vmatpush1.msra.mxu0 0.0
        %1681 = vmatprep.subr.mxu0 0.0
        %1682 = vmatpush1.msra.mxu0 0.0
        %1683 = vmatprep.subr.mxu0 0.0
        %1684 = vmatpush1.msra.mxu0 0.0
        %1685 = vmatprep.mubr.f32.mxu0 0.0
        %1686 = vmatmul.mubr.f32.gmra.mrb[0].mxu0 %v1619
        %v1687 = vpop.f32.mrb[0].mxu0
        %v1688 = vadd.f32 %v1616, %v1687
        %v1689 = vpop.f32.mrb[0].mxu0
        %1690 = vdwg.mxu0
        %v1691 = vadd.f32 %v816, %v1688
        %v1692 = vld [vmem:[#allocation15] sm:$0x1]
        %v1693 = vld [vmem:[#allocation17] sm:$0x1]
        %v1694 = vsel %vm828, %v1691, 0.0
        %1695 = vadd.xlane.f32.xlu0 %v1694
        %v1696 = vpop.xlane.xlu0 %1695
        %v1697 = vrcp.pop 32.0
        %v1698 = vmul.f32 %v1696, %v1697
        %v1699 = vsub.f32 %v1691, %v1698
        %v1700 = vmul.f32 %v1699, %v1699
        %v1701 = vsel %vm828, %v1700, 0.0
        %1702 = vadd.xlane.f32.xlu0 %v1701
        %v1703 = vpop.xlane.xlu0 %1702
        %v1704 = vmul.f32 %v1703, %v1697
        %v1705 = vadd.f32 %v1704, 1e-05
        %v1706 = vrsqrt.pop %v1705
        %v1707 = vmul.f32 %v1699, %v1706
        %v1709 = vlaneseq
        %v1710 = vshrl.u32 %v1709, 7
        %v1711 = vsub.s32 0, %v1710
        %v1712 = vrot.slane %v1692, %v1711
        %v1714 = vmul.f32 %v1707, %v1712
        %v1716 = vlaneseq
        %v1717 = vshrl.u32 %v1716, 7
        %v1718 = vsub.s32 0, %v1717
        %v1719 = vrot.slane %v1693, %v1718
        %v1721 = vadd.f32 %v1714, %v1719
        %v1722 = vld [vmem:[#allocation18] sm:$0xff]
        %v1723 = vld [vmem:[#allocation18 + $0x8] sm:$0xff]
        %v1724 = vld [vmem:[#allocation18 + $0x10] sm:$0xff]
        %v1725 = vld [vmem:[#allocation18 + $0x18] sm:$0xff]
        %v1726 = vld [vmem:[#allocation20] sm:$0x1]
        %v1728 = vlaneseq
        %v1729 = vshrl.u32 %v1728, 7
        %v1730 = vsub.s32 0, %v1729
        %v1731 = vrot.slane %v1726, %v1730
        %v1734 = vsel %vm828, %v1721, 0
        %1736 = vmatprep.subr.mxu0 0.0
        %1737 = vmatpush1.msra.mxu0 %v1722
        %1738 = vmatprep.subr.mxu0 0.0
        %1739 = vmatpush1.msra.mxu0 %v1723
        %1740 = vmatprep.subr.mxu0 0.0
        %1741 = vmatpush1.msra.mxu0 %v1724
        %1742 = vmatprep.subr.mxu0 0.0
        %1743 = vmatpush1.msra.mxu0 %v1725
        %1744 = vmatprep.subr.mxu0 0.0
        %1745 = vmatpush1.msra.mxu0 0.0
        %1746 = vmatprep.subr.mxu0 0.0
        %1747 = vmatpush1.msra.mxu0 0.0
        %1748 = vmatprep.subr.mxu0 0.0
        %1749 = vmatpush1.msra.mxu0 0.0
        %1750 = vmatprep.subr.mxu0 0.0
        %1751 = vmatpush1.msra.mxu0 0.0
        %1752 = vmatprep.subr.mxu0 0.0
        %1753 = vmatpush1.msra.mxu0 0.0
        %1754 = vmatprep.subr.mxu0 0.0
        %1755 = vmatpush1.msra.mxu0 0.0
        %1756 = vmatprep.subr.mxu0 0.0
        %1757 = vmatpush1.msra.mxu0 0.0
        %1758 = vmatprep.subr.mxu0 0.0
        %1759 = vmatpush1.msra.mxu0 0.0
        %1760 = vmatprep.subr.mxu0 0.0
        %1761 = vmatpush1.msra.mxu0 0.0
        %1762 = vmatprep.subr.mxu0 0.0
        %1763 = vmatpush1.msra.mxu0 0.0
        %1764 = vmatprep.subr.mxu0 0.0
        %1765 = vmatpush1.msra.mxu0 0.0
        %1766 = vmatprep.subr.mxu0 0.0
        %1767 = vmatpush1.msra.mxu0 0.0
        %1768 = vmatprep.subr.mxu0 0.0
        %1769 = vmatpush1.msra.mxu0 0.0
        %1770 = vmatprep.subr.mxu0 0.0
        %1771 = vmatpush1.msra.mxu0 0.0
        %1772 = vmatprep.subr.mxu0 0.0
        %1773 = vmatpush1.msra.mxu0 0.0
        %1774 = vmatprep.subr.mxu0 0.0
        %1775 = vmatpush1.msra.mxu0 0.0
        %1776 = vmatprep.subr.mxu0 0.0
        %1777 = vmatpush1.msra.mxu0 0.0
        %1778 = vmatprep.subr.mxu0 0.0
        %1779 = vmatpush1.msra.mxu0 0.0
        %1780 = vmatprep.subr.mxu0 0.0
        %1781 = vmatpush1.msra.mxu0 0.0
        %1782 = vmatprep.subr.mxu0 0.0
        %1783 = vmatpush1.msra.mxu0 0.0
        %1784 = vmatprep.subr.mxu0 0.0
        %1785 = vmatpush1.msra.mxu0 0.0
        %1786 = vmatprep.subr.mxu0 0.0
        %1787 = vmatpush1.msra.mxu0 0.0
        %1788 = vmatprep.subr.mxu0 0.0
        %1789 = vmatpush1.msra.mxu0 0.0
        %1790 = vmatprep.subr.mxu0 0.0
        %1791 = vmatpush1.msra.mxu0 0.0
        %1792 = vmatprep.subr.mxu0 0.0
        %1793 = vmatpush1.msra.mxu0 0.0
        %1794 = vmatprep.subr.mxu0 0.0
        %1795 = vmatpush1.msra.mxu0 0.0
        %1796 = vmatprep.subr.mxu0 0.0
        %1797 = vmatpush1.msra.mxu0 0.0
        %1798 = vmatprep.subr.mxu0 0.0
        %1799 = vmatpush1.msra.mxu0 0.0
        %1800 = vmatprep.mubr.f32.mxu0 0.0
        %1801 = vmatmul.mubr.f32.gmra.mrb[0].mxu0 %v1734
        %v1802 = vpop.f32.mrb[0].mxu0
        %v1803 = vadd.f32 %v1731, %v1802
        %v1804 = vpop.f32.mrb[0].mxu0
        %1805 = vdwg.mxu0
        %v1806 = vmax.f32 %v1803, 0.0
        %v1807 = vld [vmem:[#allocation21] sm:$0xff]
        %v1808 = vld [vmem:[#allocation21 + $0x8] sm:$0xff]
        %v1809 = vld [vmem:[#allocation21 + $0x10] sm:$0xff]
        %v1810 = vld [vmem:[#allocation21 + $0x18] sm:$0xff]
        %v1811 = vld [vmem:[#allocation21 + $0x20] sm:$0xff]
        %v1812 = vld [vmem:[#allocation21 + $0x28] sm:$0xff]
        %v1813 = vld [vmem:[#allocation21 + $0x30] sm:$0xff]
        %v1814 = vld [vmem:[#allocation21 + $0x38] sm:$0xff]
        %v1815 = vld [vmem:[#allocation21 + $0x40] sm:$0xff]
        %v1816 = vld [vmem:[#allocation21 + $0x48] sm:$0xff]
        %v1817 = vld [vmem:[#allocation21 + $0x50] sm:$0xff]
        %v1818 = vld [vmem:[#allocation21 + $0x58] sm:$0xff]
        %v1819 = vld [vmem:[#allocation21 + $0x60] sm:$0xff]
        %v1820 = vld [vmem:[#allocation21 + $0x68] sm:$0xff]
        %v1821 = vld [vmem:[#allocation21 + $0x70] sm:$0xff]
        %v1822 = vld [vmem:[#allocation21 + $0x78] sm:$0xff]
        %v1823 = vld [vmem:[#allocation23] sm:$0x1]
        %v1825 = vlaneseq
        %v1826 = vshrl.u32 %v1825, 7
        %v1827 = vsub.s32 0, %v1826
        %v1828 = vrot.slane %v1823, %v1827
        %1830 = vmatprep.subr.mxu0 0.0
        %1831 = vmatpush1.msra.mxu0 %v1807
        %1832 = vmatprep.subr.mxu0 0.0
        %1833 = vmatpush1.msra.mxu0 %v1808
        %1834 = vmatprep.subr.mxu0 0.0
        %1835 = vmatpush1.msra.mxu0 %v1809
        %1836 = vmatprep.subr.mxu0 0.0
        %1837 = vmatpush1.msra.mxu0 %v1810
        %1838 = vmatprep.subr.mxu0 0.0
        %1839 = vmatpush1.msra.mxu0 %v1811
        %1840 = vmatprep.subr.mxu0 0.0
        %1841 = vmatpush1.msra.mxu0 %v1812
        %1842 = vmatprep.subr.mxu0 0.0
        %1843 = vmatpush1.msra.mxu0 %v1813
        %1844 = vmatprep.subr.mxu0 0.0
        %1845 = vmatpush1.msra.mxu0 %v1814
        %1846 = vmatprep.subr.mxu0 0.0
        %1847 = vmatpush1.msra.mxu0 %v1815
        %1848 = vmatprep.subr.mxu0 0.0
        %1849 = vmatpush1.msra.mxu0 %v1816
        %1850 = vmatprep.subr.mxu0 0.0
        %1851 = vmatpush1.msra.mxu0 %v1817
        %1852 = vmatprep.subr.mxu0 0.0
        %1853 = vmatpush1.msra.mxu0 %v1818
        %1854 = vmatprep.subr.mxu0 0.0
        %1855 = vmatpush1.msra.mxu0 %v1819
        %1856 = vmatprep.subr.mxu0 0.0
        %1857 = vmatpush1.msra.mxu0 %v1820
        %1858 = vmatprep.subr.mxu0 0.0
        %1859 = vmatpush1.msra.mxu0 %v1821
        %1860 = vmatprep.subr.mxu0 0.0
        %1861 = vmatpush1.msra.mxu0 %v1822
        %1862 = vmatprep.subr.mxu0 0.0
        %1863 = vmatpush1.msra.mxu0 0.0
        %1864 = vmatprep.subr.mxu0 0.0
        %1865 = vmatpush1.msra.mxu0 0.0
        %1866 = vmatprep.subr.mxu0 0.0
        %1867 = vmatpush1.msra.mxu0 0.0
        %1868 = vmatprep.subr.mxu0 0.0
        %1869 = vmatpush1.msra.mxu0 0.0
        %1870 = vmatprep.subr.mxu0 0.0
        %1871 = vmatpush1.msra.mxu0 0.0
        %1872 = vmatprep.subr.mxu0 0.0
        %1873 = vmatpush1.msra.mxu0 0.0
        %1874 = vmatprep.subr.mxu0 0.0
        %1875 = vmatpush1.msra.mxu0 0.0
        %1876 = vmatprep.subr.mxu0 0.0
        %1877 = vmatpush1.msra.mxu0 0.0
        %1878 = vmatprep.subr.mxu0 0.0
        %1879 = vmatpush1.msra.mxu0 0.0
        %1880 = vmatprep.subr.mxu0 0.0
        %1881 = vmatpush1.msra.mxu0 0.0
        %1882 = vmatprep.subr.mxu0 0.0
        %1883 = vmatpush1.msra.mxu0 0.0
        %1884 = vmatprep.subr.mxu0 0.0
        %1885 = vmatpush1.msra.mxu0 0.0
        %1886 = vmatprep.subr.mxu0 0.0
        %1887 = vmatpush1.msra.mxu0 0.0
        %1888 = vmatprep.subr.mxu0 0.0
        %1889 = vmatpush1.msra.mxu0 0.0
        %1890 = vmatprep.subr.mxu0 0.0
        %1891 = vmatpush1.msra.mxu0 0.0
        %1892 = vmatprep.subr.mxu0 0.0
        %1893 = vmatpush1.msra.mxu0 0.0
        %1894 = vmatprep.mubr.f32.mxu0 0.0
        %1895 = vmatmul.mubr.f32.gmra.mrb[0].mxu0 %v1806
        %v1896 = vpop.f32.mrb[0].mxu0
        %v1897 = vadd.f32 %v1828, %v1896
        %v1898 = vpop.f32.mrb[0].mxu0
        %1899 = vdwg.mxu0
        %v1900 = vadd.f32 %v1721, %v1897
        %v1901 = vld [vmem:[#allocation24] sm:$0x1]
        %v1902 = vld [vmem:[#allocation26] sm:$0x1]
        %v1903 = vsel %vm828, %v1900, 0.0
        %1904 = vadd.xlane.f32.xlu0 %v1903
        %v1905 = vpop.xlane.xlu0 %1904
        %v1906 = vmul.f32 %v1905, %v1697
        %v1907 = vsub.f32 %v1900, %v1906
        %v1908 = vmul.f32 %v1907, %v1907
        %v1909 = vsel %vm828, %v1908, 0.0
        %1910 = vadd.xlane.f32.xlu0 %v1909
        %v1911 = vpop.xlane.xlu0 %1910
        %v1912 = vmul.f32 %v1911, %v1697
        %v1913 = vadd.f32 %v1912, 1e-05
        %v1914 = vrsqrt.pop %v1913
        %v1915 = vmul.f32 %v1907, %v1914
        %v1917 = vlaneseq
        %v1918 = vshrl.u32 %v1917, 7
        %v1919 = vsub.s32 0, %v1918
        %v1920 = vrot.slane %v1901, %v1919
        %v1922 = vmul.f32 %v1915, %v1920
        %v1924 = vlaneseq
        %v1925 = vshrl.u32 %v1924, 7
        %v1926 = vsub.s32 0, %v1925
        %v1927 = vrot.slane %v1902, %v1926
        %v1929 = vadd.f32 %v1922, %v1927
        %1930 = vst.msk [vmem:[%s711] sm:$0xff] %vm828, %v1929
        %s1931 = sand.u32 %s381, 1
        %s1932 = scalar_lea.sflag [#allocation5], %s1931
        %s1933 = sand.u32 %s381, 1
        %s1934 = smul.addr %s1933, 8
        %s1935 = scalar_lea.vmem [#allocation27], %s1934
        // Predicated region
        $region145: #{tpu_custom_call.1} parent=79 // pred_check
          %p1936 = pneg %p391
        $region146: #{tpu_custom_call.1} parent=79 // pred_check_branch
          %1938 = sbr.rel (%p1936) target = $region148
        $region147: #{tpu_custom_call.1} parent=79 // pred_region
          %s1940 = ssub.s32 128, 128
          %1941 = vsyncadd %s1932, %s1940
          %s1942 = smul.addr %s43, 2
          %s1943 = sadd.s32 %s44, %s1942
          %s1944 = smul.addr %s1943, 128
          %s1945 = scalar_lea.hbm %s15, %s1944
          %s1947 = sshll.u32 %s1935, 4
          %s1948 = int_to_ptr.vmem [resolvable:$true] %s1947
          %1950 = dma.vmem_to_hbm [thread:$0]  %s1948, 128, %s1945, %s1932
        $region148: #{tpu_custom_call.1} parent=79 // pred_fallthru
          _
      $region80: #{tpu_custom_call.1} parent=5 // pred_fallthru
        _
      %p1951 = scmp.le.s32.totalorder 2, %s34
      // Predicated region
      $region149: #{tpu_custom_call.1} parent=5 // pred_check
        %p1952 = pneg %p1951
      $region150: #{tpu_custom_call.1} parent=5 // pred_check_branch
        %1954 = sbr.rel (%p1952) target = $region152
      $region151: #{tpu_custom_call.1} parent=5 // pred_region
        %s1955 = ssub.s32 %s34, 2
        // Predicated region
        $region153: #{tpu_custom_call.1} parent=151 // pred_check
          %p1956 = pneg %p397
        $region154: #{tpu_custom_call.1} parent=151 // pred_check_branch
          %1958 = sbr.rel (%p1956) target = $region156
        $region155: #{tpu_custom_call.1} parent=151 // pred_region
          %s1959 = sand.u32 %s382, 1
          %s1960 = scalar_lea.sflag [#allocation5], %s1959
          %s1961 = sand.u32 %s382, 1
          %s1962 = smul.addr %s1961, 8
          %s1963 = scalar_lea.vmem [#allocation27], %s1962
          %1964 = dma.done %s1960, 128
        $region156: #{tpu_custom_call.1} parent=151 // pred_fallthru
          _
      $region152: #{tpu_custom_call.1} parent=5 // pred_fallthru
        _
    $region6: #{tpu_custom_call.1} parent=1 // loop_footer
      %s38 = sadd.s32 1, %s34
    $region7: #{tpu_custom_call.1} parent=1 // loop_footer_branch
      %33 = sbr.rel target = $region3
    $region8: #{tpu_custom_call.1} parent=1 // loop_exit
      _
    %1965 = vsyncpa [#allocation4], 1
    %s1966 = scalar_lea.sflag [#allocation4], 1
    %1967 = vsyncpa %s1966, 1
    %1968 = vsyncpa [#allocation7], 1
    %1969 = vsyncpa [#allocation10], 1
    %1970 = vsyncpa [#allocation13], 1
    %1971 = vsyncpa [#allocation16], 1
    %1972 = vsyncpa [#allocation19], 1
    %1973 = vsyncpa [#allocation22], 1
    %1974 = vsyncpa [#allocation25], 1
    %1975 = vsyncpa [#allocation5], 1
    %s1976 = scalar_lea.sflag [#allocation5], 1
    %1977 = vsyncpa %s1976, 1

</llo_original>
